<compile_context>
chip_gen: v6e
topology: v6e:2x2x1
jax: 0.10.0
libtpu: 0.0.40
codegen_flags: <defaults>
</compile_context>

<pallas_src>
import jax
import jax.numpy as jnp
import numpy as np
from jax import lax
from jax.experimental import pallas as pl
from jax.experimental.pallas import tpu as pltpu

SEQ = 103         # dense1 in_features
DIM = 768         # dense2 in_features (hidden size of embeds)
OUT = 20          # dense2 out_features
OUT_PAD = 128     # lane-padded output width (multiple of 128 -> unmasked stores)
NEG_SLOPE = 0.01  # nn.LeakyReLU default negative slope
BLOCK_B = 32      # default batch tile (multiple of 8); 32-64 is a good range


def _make_kernel(total_rows, block_rows, ragged):
    """Builds the kernel with static shapes/raggedness baked in via closure."""

    def kernel(x_ref, w1bd_ref, b1_ref, w2t_ref, b2_ref, out_ref):
        # x_ref:    (bB*SEQ, DIM)   input dtype (streamed, double-buffered)
        # w1bd_ref: (bB, bB*SEQ)    bf16, block-diagonal dense1 weight (resident)
        # b1_ref:   (1, 1)          f32  SMEM scalar
        # w2t_ref:  (DIM, OUT_PAD)  bf16 (resident)
        # b2_ref:   (1, OUT_PAD)    f32  (resident)
        # out_ref:  (bB, OUT_PAD)   f32
        x = x_ref[...].astype(jnp.bfloat16)           # in-VMEM cast (cheap, hidden)

        if ragged:
            # Zero out-of-bounds rows of a partial block so the zeros in the
            # block-diagonal W1 never multiply stale (possibly NaN/Inf) VMEM.
            n_valid = total_rows - pl.program_id(0) * block_rows
            row = lax.broadcasted_iota(jnp.int32, (block_rows, 1), 0)
            x = jnp.where(row < n_valid, x, jnp.zeros_like(x))

        # dense1 on the MXU via block-diagonal weight:
        #   feats[b, d] = sum_s w1[s] * embeds[b, s, d] + b1
        feats = jnp.dot(w1bd_ref[...], x,
                        preferred_element_type=jnp.float32)       # (bB, DIM) f32
        feats = feats + b1_ref[0, 0]

        # LeakyReLU (slope in (0,1) => max(x, slope*x) is exact)
        feats = jnp.maximum(feats, NEG_SLOPE * feats)

        # dense2 on the MXU: (bB, DIM) @ (DIM, OUT_PAD) + b2 (padded cols are 0)
        out = jnp.dot(feats.astype(jnp.bfloat16), w2t_ref[...],
                      preferred_element_type=jnp.float32) + b2_ref[...]
        out_ref[...] = out

    return kernel


def prepare_params(w1, b1, w2, b2, *, block_b=BLOCK_B):
    """One-time layout prep (do NOT redo per forward call).

    w1 -> block-diagonal (block_b, block_b*SEQ) bf16 (dense1 as one MXU matmul)
    b1 -> (1, 1) f32 SMEM scalar
    w2 -> transposed, lane-padded (DIM, 128) bf16
    b2 -> lane-padded (1, 128) f32
    """
    assert block_b % 8 == 0, "block_b must be a multiple of 8 (sublane tiling)"
    w1_row = jnp.asarray(w1, jnp.float32).reshape(1, SEQ)
    w1bd = jnp.kron(jnp.eye(block_b, dtype=jnp.float32),
                    w1_row).astype(jnp.bfloat16)                  # (bB, bB*SEQ)
    b1p = jnp.asarray(b1, jnp.float32).reshape(1, 1)
    w2t = jnp.zeros((DIM, OUT_PAD), jnp.float32)
    w2t = w2t.at[:, :OUT].set(jnp.asarray(w2, jnp.float32).T).astype(jnp.bfloat16)
    b2p = jnp.zeros((1, OUT_PAD), jnp.float32)
    b2p = b2p.at[:, :OUT].set(jnp.asarray(b2, jnp.float32).reshape(1, OUT))
    return {"block_b": block_b, "w1bd": w1bd, "b1": b1p, "w2t": w2t, "b2": b2p}


def classifier_forward(embeds, params):
    """embeds: (B, 103, 768), any float dtype (streamed as-is, cast to bf16 in-kernel)."""
    B = embeds.shape[0]
    assert embeds.shape[1] == SEQ and embeds.shape[2] == DIM
    bB = params["block_b"]
    n_tiles = (B + bB - 1) // bB
    ragged = (B % bB) != 0

    total_rows = B * SEQ
    block_rows = bB * SEQ                      # multiple of 8 since bB % 8 == 0
    x2d = embeds.reshape(total_rows, DIM)      # free (contiguous) reshape

    kernel = _make_kernel(total_rows, block_rows, ragged)

    itemsize = jnp.dtype(embeds.dtype).itemsize
    cost = pl.CostEstimate(
        flops=2 * B * SEQ * DIM + 2 * B * DIM * OUT,
        transcendentals=0,
        bytes_accessed=total_rows * DIM * itemsize + B * OUT_PAD * 4,
    )

    out_padded = pl.pallas_call(
        kernel,
        out_shape=jax.ShapeDtypeStruct((B, OUT_PAD), jnp.float32),
        grid=(n_tiles,),
        in_specs=[
            # embeds slab: batch-tiled, pipelined HBM->VMEM stream
            pl.BlockSpec((block_rows, DIM), lambda i: (i, 0)),
            # weights/biases: constant index_map -> resident in VMEM
            pl.BlockSpec((bB, block_rows), lambda i: (0, 0)),
            pl.BlockSpec(memory_space=pltpu.MemorySpace.SMEM),   # b1 scalar
            pl.BlockSpec((DIM, OUT_PAD), lambda i: (0, 0)),
            pl.BlockSpec((1, OUT_PAD), lambda i: (0, 0)),
        ],
        out_specs=pl.BlockSpec((bB, OUT_PAD), lambda i: (i, 0)),
        compiler_params=pltpu.CompilerParams(
            dimension_semantics=("parallel",),      # shard batch tiles across TCs
            vmem_limit_bytes=48 * 1024 * 1024,      # safe on v7x (64 MiB physical)
        ),
        cost_estimate=cost,
    )(x2d, params["w1bd"], params["b1"], params["w2t"], params["b2"])

    return out_padded[:, :OUT]


def reference_forward(embeds_f32, w1, b1, w2, b2):
    # Pure-JAX reference mirroring the PyTorch semantics exactly (f32).
    image_embeds = jnp.swapaxes(embeds_f32, 1, 2)                  # (B, 768, 103)
    feats = image_embeds @ w1.reshape(SEQ, 1) + b1                 # (B, 768, 1)
    feats = jnp.squeeze(jnp.swapaxes(feats, 1, 2), axis=1)         # (B, 768)
    feats = jnp.where(feats >= 0, feats, NEG_SLOPE * feats)        # LeakyReLU
    return feats @ w2.T + b2                                       # (B, 20)


def _torch_linear_init(key, out_f, in_f):
    # Deterministic init matching nn.Linear's U(-1/sqrt(fan_in), 1/sqrt(fan_in)).
    kw, kb = jax.random.split(key)
    bound = 1.0 / np.sqrt(in_f)
    w = jax.random.uniform(kw, (out_f, in_f), jnp.float32, -bound, bound)
    b = jax.random.uniform(kb, (out_f,), jnp.float32, -bound, bound)
    return w, b


if __name__ == "__main__":
    key = jax.random.PRNGKey(0)
    k_d1, k_d2, k_x = jax.random.split(key, 3)

    # dense1: Linear(103, 1); dense2: Linear(768, 20)
    w1, b1 = _torch_linear_init(k_d1, 1, SEQ)     # (1, 103), (1,)
    w2, b2 = _torch_linear_init(k_d2, OUT, DIM)   # (20, 768), (20,)

    # (B, block_b): single ragged tile / multi-tile ragged / multi-tile exact.
    cases = [(2, 8), (50, 16), (32, 16)]
    for idx, (B, block_b) in enumerate(cases):
        kx = jax.random.fold_in(k_x, idx)
        embeds = jax.random.normal(kx, (B, SEQ, DIM), jnp.float32)

        params = prepare_params(w1, b1, w2, b2, block_b=block_b)
        out = jax.block_until_ready(classifier_forward(embeds, params))

        # Reference on bf16-quantized embeds (upcast) so the comparison isolates
        # kernel correctness from the intentional in-kernel bf16 cast.
        ref = reference_forward(embeds.astype(jnp.bfloat16).astype(jnp.float32),
                                w1, b1, w2, b2)
        np.testing.assert_allclose(np.asarray(out), np.asarray(ref),
                                   rtol=2e-2, atol=2e-2)

    print("KERNEL_OK")
</pallas_src>

<mosaic_0001>
module attributes {stable_mosaic.version = 11 : i64} {
  func.func @kernel(%arg0: i32, %arg1: memref<824x768xf32, #tpu.memory_space<vmem>>, %arg2: memref<8x824xbf16, #tpu.memory_space<vmem>>, %arg3: memref<1x1xf32, #tpu.memory_space<smem>>, %arg4: memref<768x128xbf16, #tpu.memory_space<vmem>>, %arg5: memref<1x128xf32, #tpu.memory_space<vmem>>, %arg6: memref<8x128xf32, #tpu.memory_space<vmem>>) attributes {dimension_semantics = [#tpu.dimension_semantics<parallel>], iteration_bounds = array<i64: 1>, scalar_prefetch = 0 : i64, scratch_operands = 0 : i64, tpu.core_type = #tpu.core_type<tc>, window_params = [{transform_indices = @transform_0, window_bounds = array<i64: 824, 768>}, {pipeline_mode = #tpu.pipeline_mode<synchronous>, transform_indices = @transform_1, window_bounds = array<i64: 8, 824>}, {transform_indices = @transform_2, window_bounds = array<i64: 1, 1>}, {pipeline_mode = #tpu.pipeline_mode<synchronous>, transform_indices = @transform_3, window_bounds = array<i64: 768, 128>}, {pipeline_mode = #tpu.pipeline_mode<synchronous>, transform_indices = @transform_4, window_bounds = array<i64: 1, 128>}, {transform_indices = @transform_5, window_bounds = array<i64: 8, 128>}]} {
    %c0 = arith.constant 0 : index
    %c0_0 = arith.constant 0 : index
    %0 = vector.load %arg1[%c0, %c0_0] : memref<824x768xf32, #tpu.memory_space<vmem>>, vector<824x768xf32>
    %1 = arith.truncf %0 : vector<824x768xf32> to vector<824x768xbf16>
    %c824_i32 = arith.constant 824 : i32
    %2 = arith.muli %arg0, %c824_i32 : i32
    %c206_i32 = arith.constant 206 : i32
    %3 = arith.subi %c206_i32, %2 : i32
    %4 = tpu.iota {dimensions = array<i32: 0>} : vector<824x1xi32>
    %5 = vector.broadcast %3 : i32 to vector<824x1xi32>
    %6 = arith.cmpi slt, %4, %5 : vector<824x1xi32>
    %cst = arith.constant 0.000000e+00 : bf16
    %7 = vector.broadcast %cst : bf16 to vector<824x768xbf16>
    %8 = vector.shape_cast %6 : vector<824x1xi1> to vector<824x1xi1>
    %9 = vector.broadcast %8 : vector<824x1xi1> to vector<824x768xi1>
    %10 = arith.select %9, %1, %7 : vector<824x768xi1>, vector<824x768xbf16>
    %c0_1 = arith.constant 0 : index
    %c0_2 = arith.constant 0 : index
    %11 = vector.load %arg2[%c0_1, %c0_2] : memref<8x824xbf16, #tpu.memory_space<vmem>>, vector<8x824xbf16>
    %cst_3 = arith.constant dense<0.000000e+00> : vector<8x768xf32>
    %12 = tpu.matmul %11, %10, %cst_3 {dimension_numbers = #tpu.dot_dimension_numbers<[1], [0], [0], [1], [0, 0, 1, 1], [], []>} : vector<8x824xbf16>, vector<824x768xbf16>, vector<8x768xf32> -> vector<8x768xf32>
    %c0_4 = arith.constant 0 : index
    %c0_5 = arith.constant 0 : index
    %13 = memref.load %arg3[%c0_4, %c0_5] : memref<1x1xf32, #tpu.memory_space<smem>>
    %14 = vector.broadcast %13 : f32 to vector<8x768xf32>
    %15 = arith.addf %12, %14 : vector<8x768xf32>
    %cst_6 = arith.constant 0.00999999977 : f32
    %16 = vector.broadcast %cst_6 : f32 to vector<8x768xf32>
    %17 = arith.mulf %16, %15 : vector<8x768xf32>
    %18 = arith.maximumf %15, %17 : vector<8x768xf32>
    %19 = arith.truncf %18 : vector<8x768xf32> to vector<8x768xbf16>
    %c0_7 = arith.constant 0 : index
    %c0_8 = arith.constant 0 : index
    %20 = vector.load %arg4[%c0_7, %c0_8] : memref<768x128xbf16, #tpu.memory_space<vmem>>, vector<768x128xbf16>
    %cst_9 = arith.constant dense<0.000000e+00> : vector<8x128xf32>
    %21 = tpu.matmul %19, %20, %cst_9 {dimension_numbers = #tpu.dot_dimension_numbers<[1], [0], [0], [1], [0, 0, 1, 1], [], []>} : vector<8x768xbf16>, vector<768x128xbf16>, vector<8x128xf32> -> vector<8x128xf32>
    %c0_10 = arith.constant 0 : index
    %c0_11 = arith.constant 0 : index
    %22 = vector.load %arg5[%c0_10, %c0_11] : memref<1x128xf32, #tpu.memory_space<vmem>>, vector<1x128xf32>
    %23 = vector.broadcast %22 : vector<1x128xf32> to vector<8x128xf32>
    %24 = arith.addf %21, %23 : vector<8x128xf32>
    %c0_12 = arith.constant 0 : index
    %c0_13 = arith.constant 0 : index
    %25 = vector.load %arg6[%c0_12, %c0_13] : memref<8x128xf32, #tpu.memory_space<vmem>>, vector<8x128xf32>
    tpu.vector_store %arg6[%c0_12, %c0_13], %24 {strides = array<i32>} : memref<8x128xf32, #tpu.memory_space<vmem>>, vector<8x128xf32>,
    return
  }
  func.func @transform_0(%arg0: i32) -> (i32, i32) {
    %c0_i32 = arith.constant 0 : i32
    %c0_i32_0 = arith.constant 0 : i32
    return %arg0, %c0_i32 : i32, i32
  }
  func.func @transform_1(%arg0: i32) -> (i32, i32) {
    %c0_i32 = arith.constant 0 : i32
    %c0_i32_0 = arith.constant 0 : i32
    %c0_i32_1 = arith.constant 0 : i32
    return %c0_i32, %c0_i32_0 : i32, i32
  }
  func.func @transform_2(%arg0: i32) -> (i32, i32) {
    %c0_i32 = arith.constant 0 : i32
    %c0_i32_0 = arith.constant 0 : i32
    %c0_i32_1 = arith.constant 0 : i32
    return %c0_i32, %c0_i32_0 : i32, i32
  }
  func.func @transform_3(%arg0: i32) -> (i32, i32) {
    %c0_i32 = arith.constant 0 : i32
    %c0_i32_0 = arith.constant 0 : i32
    %c0_i32_1 = arith.constant 0 : i32
    return %c0_i32, %c0_i32_0 : i32, i32
  }
  func.func @transform_4(%arg0: i32) -> (i32, i32) {
    %c0_i32 = arith.constant 0 : i32
    %c0_i32_0 = arith.constant 0 : i32
    %c0_i32_1 = arith.constant 0 : i32
    return %c0_i32, %c0_i32_0 : i32, i32
  }
  func.func @transform_5(%arg0: i32) -> (i32, i32) {
    %c0_i32 = arith.constant 0 : i32
    %c0_i32_0 = arith.constant 0 : i32
    return %arg0, %c0_i32 : i32, i32
  }
}

</mosaic_0001>

<llo_original>
// kernel: tpu_custom_call.1
$region0: #{tpu_custom_call.1}
  #allocation0 [shape = 'u32[]', space=smem, size = 0x4, offset = 0x4, fixed_abs, tag = 'smem constant byte address 0x4 - core index']
  #allocation1 [shape = 'u32[144,128]{1,0:T(1,128)}', space=vmem, size = 0x12000, scoped, tag = 'internal scratch']
  #allocation2 [shape = 'f32[1,1]{1,0:T(1,128)S(6)}', space=smem, size = 0x200, scoped, tag = 'scoped memory for tpu_custom_call.1']
  %s0 = inlined_call_operand.hbm [shape: f32[206,768], index: 0, kind: input, shape index: {}]
  %s1 = inlined_call_operand.hbm [shape: bf16[8,824], index: 1, kind: input, shape index: {}]
  %s2 = inlined_call_operand.<no memory space> [shape: f32[1,1], index: 2, kind: input, shape index: {}]
  %s3 = inlined_call_operand.hbm [shape: bf16[768,128], index: 3, kind: input, shape index: {}]
  %s4 = inlined_call_operand.vmem [shape: f32[1,128], index: 4, kind: input, shape index: {}]
  %s5 = inlined_call_operand.hbm [shape: f32[2,128], index: 5, kind: output, shape index: {}]
  %s6 = sld [smem:[#allocation0]]
  $region42: #{tpu_custom_call.1} parent=0
    _
  %s8 = ssub.s32 1, %s6
  %s9 = scalar_select 0, %s8, %s6
  %10 = sst [smem:[#allocation2]] %s2
  $region1: #{tpu_custom_call.1} parent=0
    #allocation3 [shape = 'u8[2531328]{0}', space=vmem, size = 0x26a000, scoped, tag = 'input window, operand 0, single buffered']
    #allocation4 [shape = 's32[1]{0}', space=sflag, size = 0x4, scoped, tag = 'scoped memory for tpu_custom_call.1']
    #allocation5 [shape = 's32[1]{0}', space=sflag, size = 0x4, scoped, tag = 'scoped memory for tpu_custom_call.1']
    #allocation6 [shape = 'u8[14336]{0}', space=vmem, size = 0x3800, scoped, tag = 'input window, operand 1, single buffered']
    #allocation7 [shape = 's32[1]{0}', space=sflag, size = 0x4, scoped, tag = 'scoped memory for tpu_custom_call.1']
    #allocation8 [shape = 'u8[196608]{0}', space=vmem, size = 0x30000, scoped, tag = 'input window, operand 3, single buffered']
    #allocation9 [shape = 'u8[4096]{0}', space=vmem, size = 0x1000, scoped, tag = 'output window, operand 0, single buffered']
    %11 = vsyncpa [#allocation4], 0
    %12 = vsyncpa [#allocation7], 0
    %13 = vsyncpa [#allocation5], 0
    // Predicated region
    $region2: #{tpu_custom_call.1} parent=1 // pred_check
      _
    $region3: #{tpu_custom_call.1} parent=1 // pred_check_branch
      %15 = sbr.rel (0) target = $region5
    $region4: #{tpu_custom_call.1} parent=1 // pred_region
      %s17 = ssub.s32 79104, 19968
      %18 = vsyncadd [#allocation4], %s17
      %s19 = sshll.u32 [#allocation3], 4
      %s20 = int_to_ptr.vmem [resolvable:$true] %s19
      %25 = dma.hbm_to_vmem [thread:$0]  %s0, 19968, %s20, [#allocation4], 768, 768, 48
    $region5: #{tpu_custom_call.1} parent=1 // pred_fallthru
      _
    // Predicated region
    $region6: #{tpu_custom_call.1} parent=1 // pred_check
      _
    $region7: #{tpu_custom_call.1} parent=1 // pred_check_branch
      %27 = sbr.rel (0) target = $region9
    $region8: #{tpu_custom_call.1} parent=1 // pred_region
      %s29 = ssub.s32 448, 448
      %30 = vsyncadd [#allocation7], %s29
      %s32 = sshll.u32 [#allocation6], 4
      %s33 = int_to_ptr.vmem [resolvable:$true] %s32
      %35 = dma.hbm_to_vmem [thread:$0]  %s1, 448, %s33, [#allocation7]
    $region9: #{tpu_custom_call.1} parent=1 // pred_fallthru
      _
    // Predicated region
    $region10: #{tpu_custom_call.1} parent=1 // pred_check
      _
    $region11: #{tpu_custom_call.1} parent=1 // pred_check_branch
      %37 = sbr.rel (0) target = $region13
    $region12: #{tpu_custom_call.1} parent=1 // pred_region
      _
    $region13: #{tpu_custom_call.1} parent=1 // pred_fallthru
      _
    // Predicated region
    $region14: #{tpu_custom_call.1} parent=1 // pred_check
      _
    $region15: #{tpu_custom_call.1} parent=1 // pred_check_branch
      %39 = sbr.rel (0) target = $region17
    $region16: #{tpu_custom_call.1} parent=1 // pred_region
      %s41 = ssub.s32 6144, 6144
      %42 = vsyncadd [#allocation7], %s41
      %s43 = sshll.u32 [#allocation8], 4
      %s44 = int_to_ptr.vmem [resolvable:$true] %s43
      %49 = dma.hbm_to_vmem [thread:$0]  %s3, 6144, %s44, [#allocation7], 64, 64, 4
    $region17: #{tpu_custom_call.1} parent=1 // pred_fallthru
      _
    // Predicated region
    $region18: #{tpu_custom_call.1} parent=1 // pred_check
      _
    $region19: #{tpu_custom_call.1} parent=1 // pred_check_branch
      %51 = sbr.rel (0) target = $region21
    $region20: #{tpu_custom_call.1} parent=1 // pred_region
      _
    $region21: #{tpu_custom_call.1} parent=1 // pred_fallthru
      _
    // Predicated region
    $region22: #{tpu_custom_call.1} parent=1 // pred_check
      _
    $region23: #{tpu_custom_call.1} parent=1 // pred_check_branch
      %53 = sbr.rel (0) target = $region25
    $region24: #{tpu_custom_call.1} parent=1 // pred_region
      %54 = dma.done [#allocation4], 79104
    $region25: #{tpu_custom_call.1} parent=1 // pred_fallthru
      _
    // Predicated region
    $region26: #{tpu_custom_call.1} parent=1 // pred_check
      _
    $region27: #{tpu_custom_call.1} parent=1 // pred_check_branch
      %56 = sbr.rel (0) target = $region29
    $region28: #{tpu_custom_call.1} parent=1 // pred_region
      %57 = dma.done [#allocation7], 448
    $region29: #{tpu_custom_call.1} parent=1 // pred_fallthru
      _
    // Predicated region
    $region30: #{tpu_custom_call.1} parent=1 // pred_check
      _
    $region31: #{tpu_custom_call.1} parent=1 // pred_check_branch
      %59 = sbr.rel (0) target = $region33
    $region32: #{tpu_custom_call.1} parent=1 // pred_region
      %60 = dma.done [#allocation7], 6144
    $region33: #{tpu_custom_call.1} parent=1 // pred_fallthru
      _
    %v64 = vld [vmem:[#allocation3] sm:$0xff]
    %v65 = vld [vmem:[#allocation3 + $0x8] sm:$0xff]
    %v66 = vld [vmem:[#allocation3 + $0x10] sm:$0xff]
    %v67 = vld [vmem:[#allocation3 + $0x18] sm:$0xff]
    %v68 = vld [vmem:[#allocation3 + $0x20] sm:$0xff]
    %v69 = vld [vmem:[#allocation3 + $0x28] sm:$0xff]
    %v70 = vld [vmem:[#allocation3 + $0x30] sm:$0xff]
    %v71 = vld [vmem:[#allocation3 + $0x38] sm:$0xff]
    %v72 = vld [vmem:[#allocation3 + $0x40] sm:$0xff]
    %v73 = vld [vmem:[#allocation3 + $0x48] sm:$0xff]
    %v74 = vld [vmem:[#allocation3 + $0x50] sm:$0xff]
    %v75 = vld [vmem:[#allocation3 + $0x58] sm:$0xff]
    %v76 = vld [vmem:[#allocation3 + $0x60] sm:$0xff]
    %v77 = vld [vmem:[#allocation3 + $0x68] sm:$0xff]
    %v78 = vld [vmem:[#allocation3 + $0x70] sm:$0xff]
    %v79 = vld [vmem:[#allocation3 + $0x78] sm:$0xff]
    %v80 = vld [vmem:[#allocation3 + $0x80] sm:$0xff]
    %v81 = vld [vmem:[#allocation3 + $0x88] sm:$0xff]
    %v82 = vld [vmem:[#allocation3 + $0x90] sm:$0xff]
    %v83 = vld [vmem:[#allocation3 + $0x98] sm:$0xff]
    %v84 = vld [vmem:[#allocation3 + $0xa0] sm:$0xff]
    %v85 = vld [vmem:[#allocation3 + $0xa8] sm:$0xff]
    %v86 = vld [vmem:[#allocation3 + $0xb0] sm:$0xff]
    %v87 = vld [vmem:[#allocation3 + $0xb8] sm:$0xff]
    %v88 = vld [vmem:[#allocation3 + $0xc0] sm:$0xff]
    %v89 = vld [vmem:[#allocation3 + $0xc8] sm:$0xff]
    %v90 = vld [vmem:[#allocation3 + $0xd0] sm:$0xff]
    %v91 = vld [vmem:[#allocation3 + $0xd8] sm:$0xff]
    %v92 = vld [vmem:[#allocation3 + $0xe0] sm:$0xff]
    %v93 = vld [vmem:[#allocation3 + $0xe8] sm:$0xff]
    %v94 = vld [vmem:[#allocation3 + $0xf0] sm:$0xff]
    %v95 = vld [vmem:[#allocation3 + $0xf8] sm:$0xff]
    %v96 = vld [vmem:[#allocation3 + $0x100] sm:$0xff]
    %v97 = vld [vmem:[#allocation3 + $0x108] sm:$0xff]
    %v98 = vld [vmem:[#allocation3 + $0x110] sm:$0xff]
    %v99 = vld [vmem:[#allocation3 + $0x118] sm:$0xff]
    %v100 = vld [vmem:[#allocation3 + $0x120] sm:$0xff]
    %v101 = vld [vmem:[#allocation3 + $0x128] sm:$0xff]
    %v102 = vld [vmem:[#allocation3 + $0x130] sm:$0xff]
    %v103 = vld [vmem:[#allocation3 + $0x138] sm:$0xff]
    %v104 = vld [vmem:[#allocation3 + $0x140] sm:$0xff]
    %v105 = vld [vmem:[#allocation3 + $0x148] sm:$0xff]
    %v106 = vld [vmem:[#allocation3 + $0x150] sm:$0xff]
    %v107 = vld [vmem:[#allocation3 + $0x158] sm:$0xff]
    %v108 = vld [vmem:[#allocation3 + $0x160] sm:$0xff]
    %v109 = vld [vmem:[#allocation3 + $0x168] sm:$0xff]
    %v110 = vld [vmem:[#allocation3 + $0x170] sm:$0xff]
    %v111 = vld [vmem:[#allocation3 + $0x178] sm:$0xff]
    %v112 = vld [vmem:[#allocation3 + $0x180] sm:$0xff]
    %v113 = vld [vmem:[#allocation3 + $0x188] sm:$0xff]
    %v114 = vld [vmem:[#allocation3 + $0x190] sm:$0xff]
    %v115 = vld [vmem:[#allocation3 + $0x198] sm:$0xff]
    %v116 = vld [vmem:[#allocation3 + $0x1a0] sm:$0xff]
    %v117 = vld [vmem:[#allocation3 + $0x1a8] sm:$0xff]
    %v118 = vld [vmem:[#allocation3 + $0x1b0] sm:$0xff]
    %v119 = vld [vmem:[#allocation3 + $0x1b8] sm:$0xff]
    %v120 = vld [vmem:[#allocation3 + $0x1c0] sm:$0xff]
    %v121 = vld [vmem:[#allocation3 + $0x1c8] sm:$0xff]
    %v122 = vld [vmem:[#allocation3 + $0x1d0] sm:$0xff]
    %v123 = vld [vmem:[#allocation3 + $0x1d8] sm:$0xff]
    %v124 = vld [vmem:[#allocation3 + $0x1e0] sm:$0xff]
    %v125 = vld [vmem:[#allocation3 + $0x1e8] sm:$0xff]
    %v126 = vld [vmem:[#allocation3 + $0x1f0] sm:$0xff]
    %v127 = vld [vmem:[#allocation3 + $0x1f8] sm:$0xff]
    %v128 = vld [vmem:[#allocation3 + $0x200] sm:$0xff]
    %v129 = vld [vmem:[#allocation3 + $0x208] sm:$0xff]
    %v130 = vld [vmem:[#allocation3 + $0x210] sm:$0xff]
    %v131 = vld [vmem:[#allocation3 + $0x218] sm:$0xff]
    %v132 = vld [vmem:[#allocation3 + $0x220] sm:$0xff]
    %v133 = vld [vmem:[#allocation3 + $0x228] sm:$0xff]
    %v134 = vld [vmem:[#allocation3 + $0x230] sm:$0xff]
    %v135 = vld [vmem:[#allocation3 + $0x238] sm:$0xff]
    %v136 = vld [vmem:[#allocation3 + $0x240] sm:$0xff]
    %v137 = vld [vmem:[#allocation3 + $0x248] sm:$0xff]
    %v138 = vld [vmem:[#allocation3 + $0x250] sm:$0xff]
    %v139 = vld [vmem:[#allocation3 + $0x258] sm:$0xff]
    %v140 = vld [vmem:[#allocation3 + $0x260] sm:$0xff]
    %v141 = vld [vmem:[#allocation3 + $0x268] sm:$0xff]
    %v142 = vld [vmem:[#allocation3 + $0x270] sm:$0xff]
    %v143 = vld [vmem:[#allocation3 + $0x278] sm:$0xff]
    %v144 = vld [vmem:[#allocation3 + $0x280] sm:$0xff]
    %v145 = vld [vmem:[#allocation3 + $0x288] sm:$0xff]
    %v146 = vld [vmem:[#allocation3 + $0x290] sm:$0xff]
    %v147 = vld [vmem:[#allocation3 + $0x298] sm:$0xff]
    %v148 = vld [vmem:[#allocation3 + $0x2a0] sm:$0xff]
    %v149 = vld [vmem:[#allocation3 + $0x2a8] sm:$0xff]
    %v150 = vld [vmem:[#allocation3 + $0x2b0] sm:$0xff]
    %v151 = vld [vmem:[#allocation3 + $0x2b8] sm:$0xff]
    %v152 = vld [vmem:[#allocation3 + $0x2c0] sm:$0xff]
    %v153 = vld [vmem:[#allocation3 + $0x2c8] sm:$0xff]
    %v154 = vld [vmem:[#allocation3 + $0x2d0] sm:$0xff]
    %v155 = vld [vmem:[#allocation3 + $0x2d8] sm:$0xff]
    %v156 = vld [vmem:[#allocation3 + $0x2e0] sm:$0xff]
    %v157 = vld [vmem:[#allocation3 + $0x2e8] sm:$0xff]
    %v158 = vld [vmem:[#allocation3 + $0x2f0] sm:$0xff]
    %v159 = vld [vmem:[#allocation3 + $0x2f8] sm:$0xff]
    %v160 = vld [vmem:[#allocation3 + $0x300] sm:$0xff]
    %v161 = vld [vmem:[#allocation3 + $0x308] sm:$0xff]
    %v162 = vld [vmem:[#allocation3 + $0x310] sm:$0xff]
    %v163 = vld [vmem:[#allocation3 + $0x318] sm:$0xff]
    %v164 = vld [vmem:[#allocation3 + $0x320] sm:$0xff]
    %v165 = vld [vmem:[#allocation3 + $0x328] sm:$0xff]
    %v166 = vld [vmem:[#allocation3 + $0x330] sm:$0xff]
    %v167 = vld [vmem:[#allocation3 + $0x338] sm:$0xff]
    %v168 = vld [vmem:[#allocation3 + $0x340] sm:$0xff]
    %v169 = vld [vmem:[#allocation3 + $0x348] sm:$0xff]
    %v170 = vld [vmem:[#allocation3 + $0x350] sm:$0xff]
    %v171 = vld [vmem:[#allocation3 + $0x358] sm:$0xff]
    %v172 = vld [vmem:[#allocation3 + $0x360] sm:$0xff]
    %v173 = vld [vmem:[#allocation3 + $0x368] sm:$0xff]
    %v174 = vld [vmem:[#allocation3 + $0x370] sm:$0xff]
    %v175 = vld [vmem:[#allocation3 + $0x378] sm:$0xff]
    %v176 = vld [vmem:[#allocation3 + $0x380] sm:$0xff]
    %v177 = vld [vmem:[#allocation3 + $0x388] sm:$0xff]
    %v178 = vld [vmem:[#allocation3 + $0x390] sm:$0xff]
    %v179 = vld [vmem:[#allocation3 + $0x398] sm:$0xff]
    %v180 = vld [vmem:[#allocation3 + $0x3a0] sm:$0xff]
    %v181 = vld [vmem:[#allocation3 + $0x3a8] sm:$0xff]
    %v182 = vld [vmem:[#allocation3 + $0x3b0] sm:$0xff]
    %v183 = vld [vmem:[#allocation3 + $0x3b8] sm:$0xff]
    %v184 = vld [vmem:[#allocation3 + $0x3c0] sm:$0xff]
    %v185 = vld [vmem:[#allocation3 + $0x3c8] sm:$0xff]
    %v186 = vld [vmem:[#allocation3 + $0x3d0] sm:$0xff]
    %v187 = vld [vmem:[#allocation3 + $0x3d8] sm:$0xff]
    %v188 = vld [vmem:[#allocation3 + $0x3e0] sm:$0xff]
    %v189 = vld [vmem:[#allocation3 + $0x3e8] sm:$0xff]
    %v190 = vld [vmem:[#allocation3 + $0x3f0] sm:$0xff]
    %v191 = vld [vmem:[#allocation3 + $0x3f8] sm:$0xff]
    %v192 = vld [vmem:[#allocation3 + $0x400] sm:$0xff]
    %v193 = vld [vmem:[#allocation3 + $0x408] sm:$0xff]
    %v194 = vld [vmem:[#allocation3 + $0x410] sm:$0xff]
    %v195 = vld [vmem:[#allocation3 + $0x418] sm:$0xff]
    %v196 = vld [vmem:[#allocation3 + $0x420] sm:$0xff]
    %v197 = vld [vmem:[#allocation3 + $0x428] sm:$0xff]
    %v198 = vld [vmem:[#allocation3 + $0x430] sm:$0xff]
    %v199 = vld [vmem:[#allocation3 + $0x438] sm:$0xff]
    %v200 = vld [vmem:[#allocation3 + $0x440] sm:$0xff]
    %v201 = vld [vmem:[#allocation3 + $0x448] sm:$0xff]
    %v202 = vld [vmem:[#allocation3 + $0x450] sm:$0xff]
    %v203 = vld [vmem:[#allocation3 + $0x458] sm:$0xff]
    %v204 = vld [vmem:[#allocation3 + $0x460] sm:$0xff]
    %v205 = vld [vmem:[#allocation3 + $0x468] sm:$0xff]
    %v206 = vld [vmem:[#allocation3 + $0x470] sm:$0xff]
    %v207 = vld [vmem:[#allocation3 + $0x478] sm:$0xff]
    %v208 = vld [vmem:[#allocation3 + $0x480] sm:$0xff]
    %v209 = vld [vmem:[#allocation3 + $0x488] sm:$0xff]
    %v210 = vld [vmem:[#allocation3 + $0x490] sm:$0xff]
    %v211 = vld [vmem:[#allocation3 + $0x498] sm:$0xff]
    %v212 = vld [vmem:[#allocation3 + $0x4a0] sm:$0xff]
    %v213 = vld [vmem:[#allocation3 + $0x4a8] sm:$0xff]
    %v214 = vld [vmem:[#allocation3 + $0x4b0] sm:$0xff]
    %v215 = vld [vmem:[#allocation3 + $0x4b8] sm:$0xff]
    %v216 = vld [vmem:[#allocation3 + $0x4c0] sm:$0xff]
    %v217 = vld [vmem:[#allocation3 + $0x4c8] sm:$0xff]
    %v218 = vld [vmem:[#allocation3 + $0x4d0] sm:$0xff]
    %v219 = vld [vmem:[#allocation3 + $0x4d8] sm:$0xff]
    %v220 = vld [vmem:[#allocation3 + $0x4e0] sm:$0xff]
    %v221 = vld [vmem:[#allocation3 + $0x4e8] sm:$0xff]
    %v222 = vld [vmem:[#allocation3 + $0x4f0] sm:$0xff]
    %v223 = vld [vmem:[#allocation3 + $0x4f8] sm:$0xff]
    %v224 = vld [vmem:[#allocation3 + $0x500] sm:$0xff]
    %v225 = vld [vmem:[#allocation3 + $0x508] sm:$0xff]
    %v226 = vld [vmem:[#allocation3 + $0x510] sm:$0xff]
    %v227 = vld [vmem:[#allocation3 + $0x518] sm:$0xff]
    %v228 = vld [vmem:[#allocation3 + $0x520] sm:$0xff]
    %v229 = vld [vmem:[#allocation3 + $0x528] sm:$0xff]
    %v230 = vld [vmem:[#allocation3 + $0x530] sm:$0xff]
    %v231 = vld [vmem:[#allocation3 + $0x538] sm:$0xff]
    %v232 = vld [vmem:[#allocation3 + $0x540] sm:$0xff]
    %v233 = vld [vmem:[#allocation3 + $0x548] sm:$0xff]
    %v234 = vld [vmem:[#allocation3 + $0x550] sm:$0xff]
    %v235 = vld [vmem:[#allocation3 + $0x558] sm:$0xff]
    %v236 = vld [vmem:[#allocation3 + $0x560] sm:$0xff]
    %v237 = vld [vmem:[#allocation3 + $0x568] sm:$0xff]
    %v238 = vld [vmem:[#allocation3 + $0x570] sm:$0xff]
    %v239 = vld [vmem:[#allocation3 + $0x578] sm:$0xff]
    %v240 = vld [vmem:[#allocation3 + $0x580] sm:$0xff]
    %v241 = vld [vmem:[#allocation3 + $0x588] sm:$0xff]
    %v242 = vld [vmem:[#allocation3 + $0x590] sm:$0xff]
    %v243 = vld [vmem:[#allocation3 + $0x598] sm:$0xff]
    %v244 = vld [vmem:[#allocation3 + $0x5a0] sm:$0xff]
    %v245 = vld [vmem:[#allocation3 + $0x5a8] sm:$0xff]
    %v246 = vld [vmem:[#allocation3 + $0x5b0] sm:$0xff]
    %v247 = vld [vmem:[#allocation3 + $0x5b8] sm:$0xff]
    %v248 = vld [vmem:[#allocation3 + $0x5c0] sm:$0xff]
    %v249 = vld [vmem:[#allocation3 + $0x5c8] sm:$0xff]
    %v250 = vld [vmem:[#allocation3 + $0x5d0] sm:$0xff]
    %v251 = vld [vmem:[#allocation3 + $0x5d8] sm:$0xff]
    %v252 = vld [vmem:[#allocation3 + $0x5e0] sm:$0xff]
    %v253 = vld [vmem:[#allocation3 + $0x5e8] sm:$0xff]
    %v254 = vld [vmem:[#allocation3 + $0x5f0] sm:$0xff]
    %v255 = vld [vmem:[#allocation3 + $0x5f8] sm:$0xff]
    %v256 = vld [vmem:[#allocation3 + $0x600] sm:$0xff]
    %v257 = vld [vmem:[#allocation3 + $0x608] sm:$0xff]
    %v258 = vld [vmem:[#allocation3 + $0x610] sm:$0xff]
    %v259 = vld [vmem:[#allocation3 + $0x618] sm:$0xff]
    %v260 = vld [vmem:[#allocation3 + $0x620] sm:$0xff]
    %v261 = vld [vmem:[#allocation3 + $0x628] sm:$0xff]
    %v262 = vld [vmem:[#allocation3 + $0x630] sm:$0xff]
    %v263 = vld [vmem:[#allocation3 + $0x638] sm:$0xff]
    %v264 = vld [vmem:[#allocation3 + $0x640] sm:$0xff]
    %v265 = vld [vmem:[#allocation3 + $0x648] sm:$0xff]
    %v266 = vld [vmem:[#allocation3 + $0x650] sm:$0xff]
    %v267 = vld [vmem:[#allocation3 + $0x658] sm:$0xff]
    %v268 = vld [vmem:[#allocation3 + $0x660] sm:$0xff]
    %v269 = vld [vmem:[#allocation3 + $0x668] sm:$0xff]
    %v270 = vld [vmem:[#allocation3 + $0x670] sm:$0xff]
    %v271 = vld [vmem:[#allocation3 + $0x678] sm:$0xff]
    %v272 = vld [vmem:[#allocation3 + $0x680] sm:$0xff]
    %v273 = vld [vmem:[#allocation3 + $0x688] sm:$0xff]
    %v274 = vld [vmem:[#allocation3 + $0x690] sm:$0xff]
    %v275 = vld [vmem:[#allocation3 + $0x698] sm:$0xff]
    %v276 = vld [vmem:[#allocation3 + $0x6a0] sm:$0xff]
    %v277 = vld [vmem:[#allocation3 + $0x6a8] sm:$0xff]
    %v278 = vld [vmem:[#allocation3 + $0x6b0] sm:$0xff]
    %v279 = vld [vmem:[#allocation3 + $0x6b8] sm:$0xff]
    %v280 = vld [vmem:[#allocation3 + $0x6c0] sm:$0xff]
    %v281 = vld [vmem:[#allocation3 + $0x6c8] sm:$0xff]
    %v282 = vld [vmem:[#allocation3 + $0x6d0] sm:$0xff]
    %v283 = vld [vmem:[#allocation3 + $0x6d8] sm:$0xff]
    %v284 = vld [vmem:[#allocation3 + $0x6e0] sm:$0xff]
    %v285 = vld [vmem:[#allocation3 + $0x6e8] sm:$0xff]
    %v286 = vld [vmem:[#allocation3 + $0x6f0] sm:$0xff]
    %v287 = vld [vmem:[#allocation3 + $0x6f8] sm:$0xff]
    %v288 = vld [vmem:[#allocation3 + $0x700] sm:$0xff]
    %v289 = vld [vmem:[#allocation3 + $0x708] sm:$0xff]
    %v290 = vld [vmem:[#allocation3 + $0x710] sm:$0xff]
    %v291 = vld [vmem:[#allocation3 + $0x718] sm:$0xff]
    %v292 = vld [vmem:[#allocation3 + $0x720] sm:$0xff]
    %v293 = vld [vmem:[#allocation3 + $0x728] sm:$0xff]
    %v294 = vld [vmem:[#allocation3 + $0x730] sm:$0xff]
    %v295 = vld [vmem:[#allocation3 + $0x738] sm:$0xff]
    %v296 = vld [vmem:[#allocation3 + $0x740] sm:$0xff]
    %v297 = vld [vmem:[#allocation3 + $0x748] sm:$0xff]
    %v298 = vld [vmem:[#allocation3 + $0x750] sm:$0xff]
    %v299 = vld [vmem:[#allocation3 + $0x758] sm:$0xff]
    %v300 = vld [vmem:[#allocation3 + $0x760] sm:$0xff]
    %v301 = vld [vmem:[#allocation3 + $0x768] sm:$0xff]
    %v302 = vld [vmem:[#allocation3 + $0x770] sm:$0xff]
    %v303 = vld [vmem:[#allocation3 + $0x778] sm:$0xff]
    %v304 = vld [vmem:[#allocation3 + $0x780] sm:$0xff]
    %v305 = vld [vmem:[#allocation3 + $0x788] sm:$0xff]
    %v306 = vld [vmem:[#allocation3 + $0x790] sm:$0xff]
    %v307 = vld [vmem:[#allocation3 + $0x798] sm:$0xff]
    %v308 = vld [vmem:[#allocation3 + $0x7a0] sm:$0xff]
    %v309 = vld [vmem:[#allocation3 + $0x7a8] sm:$0xff]
    %v310 = vld [vmem:[#allocation3 + $0x7b0] sm:$0xff]
    %v311 = vld [vmem:[#allocation3 + $0x7b8] sm:$0xff]
    %v312 = vld [vmem:[#allocation3 + $0x7c0] sm:$0xff]
    %v313 = vld [vmem:[#allocation3 + $0x7c8] sm:$0xff]
    %v314 = vld [vmem:[#allocation3 + $0x7d0] sm:$0xff]
    %v315 = vld [vmem:[#allocation3 + $0x7d8] sm:$0xff]
    %v316 = vld [vmem:[#allocation3 + $0x7e0] sm:$0xff]
    %v317 = vld [vmem:[#allocation3 + $0x7e8] sm:$0xff]
    %v318 = vld [vmem:[#allocation3 + $0x7f0] sm:$0xff]
    %v319 = vld [vmem:[#allocation3 + $0x7f8] sm:$0xff]
    %v320 = vld [vmem:[#allocation3 + $0x800] sm:$0xff]
    %v321 = vld [vmem:[#allocation3 + $0x808] sm:$0xff]
    %v322 = vld [vmem:[#allocation3 + $0x810] sm:$0xff]
    %v323 = vld [vmem:[#allocation3 + $0x818] sm:$0xff]
    %v324 = vld [vmem:[#allocation3 + $0x820] sm:$0xff]
    %v325 = vld [vmem:[#allocation3 + $0x828] sm:$0xff]
    %v326 = vld [vmem:[#allocation3 + $0x830] sm:$0xff]
    %v327 = vld [vmem:[#allocation3 + $0x838] sm:$0xff]
    %v328 = vld [vmem:[#allocation3 + $0x840] sm:$0xff]
    %v329 = vld [vmem:[#allocation3 + $0x848] sm:$0xff]
    %v330 = vld [vmem:[#allocation3 + $0x850] sm:$0xff]
    %v331 = vld [vmem:[#allocation3 + $0x858] sm:$0xff]
    %v332 = vld [vmem:[#allocation3 + $0x860] sm:$0xff]
    %v333 = vld [vmem:[#allocation3 + $0x868] sm:$0xff]
    %v334 = vld [vmem:[#allocation3 + $0x870] sm:$0xff]
    %v335 = vld [vmem:[#allocation3 + $0x878] sm:$0xff]
    %v336 = vld [vmem:[#allocation3 + $0x880] sm:$0xff]
    %v337 = vld [vmem:[#allocation3 + $0x888] sm:$0xff]
    %v338 = vld [vmem:[#allocation3 + $0x890] sm:$0xff]
    %v339 = vld [vmem:[#allocation3 + $0x898] sm:$0xff]
    %v340 = vld [vmem:[#allocation3 + $0x8a0] sm:$0xff]
    %v341 = vld [vmem:[#allocation3 + $0x8a8] sm:$0xff]
    %v342 = vld [vmem:[#allocation3 + $0x8b0] sm:$0xff]
    %v343 = vld [vmem:[#allocation3 + $0x8b8] sm:$0xff]
    %v344 = vld [vmem:[#allocation3 + $0x8c0] sm:$0xff]
    %v345 = vld [vmem:[#allocation3 + $0x8c8] sm:$0xff]
    %v346 = vld [vmem:[#allocation3 + $0x8d0] sm:$0xff]
    %v347 = vld [vmem:[#allocation3 + $0x8d8] sm:$0xff]
    %v348 = vld [vmem:[#allocation3 + $0x8e0] sm:$0xff]
    %v349 = vld [vmem:[#allocation3 + $0x8e8] sm:$0xff]
    %v350 = vld [vmem:[#allocation3 + $0x8f0] sm:$0xff]
    %v351 = vld [vmem:[#allocation3 + $0x8f8] sm:$0xff]
    %v352 = vld [vmem:[#allocation3 + $0x900] sm:$0xff]
    %v353 = vld [vmem:[#allocation3 + $0x908] sm:$0xff]
    %v354 = vld [vmem:[#allocation3 + $0x910] sm:$0xff]
    %v355 = vld [vmem:[#allocation3 + $0x918] sm:$0xff]
    %v356 = vld [vmem:[#allocation3 + $0x920] sm:$0xff]
    %v357 = vld [vmem:[#allocation3 + $0x928] sm:$0xff]
    %v358 = vld [vmem:[#allocation3 + $0x930] sm:$0xff]
    %v359 = vld [vmem:[#allocation3 + $0x938] sm:$0xff]
    %v360 = vld [vmem:[#allocation3 + $0x940] sm:$0xff]
    %v361 = vld [vmem:[#allocation3 + $0x948] sm:$0xff]
    %v362 = vld [vmem:[#allocation3 + $0x950] sm:$0xff]
    %v363 = vld [vmem:[#allocation3 + $0x958] sm:$0xff]
    %v364 = vld [vmem:[#allocation3 + $0x960] sm:$0xff]
    %v365 = vld [vmem:[#allocation3 + $0x968] sm:$0xff]
    %v366 = vld [vmem:[#allocation3 + $0x970] sm:$0xff]
    %v367 = vld [vmem:[#allocation3 + $0x978] sm:$0xff]
    %v368 = vld [vmem:[#allocation3 + $0x980] sm:$0xff]
    %v369 = vld [vmem:[#allocation3 + $0x988] sm:$0xff]
    %v370 = vld [vmem:[#allocation3 + $0x990] sm:$0xff]
    %v371 = vld [vmem:[#allocation3 + $0x998] sm:$0xff]
    %v372 = vld [vmem:[#allocation3 + $0x9a0] sm:$0xff]
    %v373 = vld [vmem:[#allocation3 + $0x9a8] sm:$0xff]
    %v374 = vld [vmem:[#allocation3 + $0x9b0] sm:$0xff]
    %v375 = vld [vmem:[#allocation3 + $0x9b8] sm:$0xff]
    %v376 = vld [vmem:[#allocation3 + $0x9c0] sm:$0xff]
    %v377 = vld [vmem:[#allocation3 + $0x9c8] sm:$0xff]
    %v378 = vld [vmem:[#allocation3 + $0x9d0] sm:$0xff]
    %v379 = vld [vmem:[#allocation3 + $0x9d8] sm:$0xff]
    %v380 = vld [vmem:[#allocation3 + $0x9e0] sm:$0xff]
    %v381 = vld [vmem:[#allocation3 + $0x9e8] sm:$0xff]
    %v382 = vld [vmem:[#allocation3 + $0x9f0] sm:$0xff]
    %v383 = vld [vmem:[#allocation3 + $0x9f8] sm:$0xff]
    %v384 = vld [vmem:[#allocation3 + $0xa00] sm:$0xff]
    %v385 = vld [vmem:[#allocation3 + $0xa08] sm:$0xff]
    %v386 = vld [vmem:[#allocation3 + $0xa10] sm:$0xff]
    %v387 = vld [vmem:[#allocation3 + $0xa18] sm:$0xff]
    %v388 = vld [vmem:[#allocation3 + $0xa20] sm:$0xff]
    %v389 = vld [vmem:[#allocation3 + $0xa28] sm:$0xff]
    %v390 = vld [vmem:[#allocation3 + $0xa30] sm:$0xff]
    %v391 = vld [vmem:[#allocation3 + $0xa38] sm:$0xff]
    %v392 = vld [vmem:[#allocation3 + $0xa40] sm:$0xff]
    %v393 = vld [vmem:[#allocation3 + $0xa48] sm:$0xff]
    %v394 = vld [vmem:[#allocation3 + $0xa50] sm:$0xff]
    %v395 = vld [vmem:[#allocation3 + $0xa58] sm:$0xff]
    %v396 = vld [vmem:[#allocation3 + $0xa60] sm:$0xff]
    %v397 = vld [vmem:[#allocation3 + $0xa68] sm:$0xff]
    %v398 = vld [vmem:[#allocation3 + $0xa70] sm:$0xff]
    %v399 = vld [vmem:[#allocation3 + $0xa78] sm:$0xff]
    %v400 = vld [vmem:[#allocation3 + $0xa80] sm:$0xff]
    %v401 = vld [vmem:[#allocation3 + $0xa88] sm:$0xff]
    %v402 = vld [vmem:[#allocation3 + $0xa90] sm:$0xff]
    %v403 = vld [vmem:[#allocation3 + $0xa98] sm:$0xff]
    %v404 = vld [vmem:[#allocation3 + $0xaa0] sm:$0xff]
    %v405 = vld [vmem:[#allocation3 + $0xaa8] sm:$0xff]
    %v406 = vld [vmem:[#allocation3 + $0xab0] sm:$0xff]
    %v407 = vld [vmem:[#allocation3 + $0xab8] sm:$0xff]
    %v408 = vld [vmem:[#allocation3 + $0xac0] sm:$0xff]
    %v409 = vld [vmem:[#allocation3 + $0xac8] sm:$0xff]
    %v410 = vld [vmem:[#allocation3 + $0xad0] sm:$0xff]
    %v411 = vld [vmem:[#allocation3 + $0xad8] sm:$0xff]
    %v412 = vld [vmem:[#allocation3 + $0xae0] sm:$0xff]
    %v413 = vld [vmem:[#allocation3 + $0xae8] sm:$0xff]
    %v414 = vld [vmem:[#allocation3 + $0xaf0] sm:$0xff]
    %v415 = vld [vmem:[#allocation3 + $0xaf8] sm:$0xff]
    %v416 = vld [vmem:[#allocation3 + $0xb00] sm:$0xff]
    %v417 = vld [vmem:[#allocation3 + $0xb08] sm:$0xff]
    %v418 = vld [vmem:[#allocation3 + $0xb10] sm:$0xff]
    %v419 = vld [vmem:[#allocation3 + $0xb18] sm:$0xff]
    %v420 = vld [vmem:[#allocation3 + $0xb20] sm:$0xff]
    %v421 = vld [vmem:[#allocation3 + $0xb28] sm:$0xff]
    %v422 = vld [vmem:[#allocation3 + $0xb30] sm:$0xff]
    %v423 = vld [vmem:[#allocation3 + $0xb38] sm:$0xff]
    %v424 = vld [vmem:[#allocation3 + $0xb40] sm:$0xff]
    %v425 = vld [vmem:[#allocation3 + $0xb48] sm:$0xff]
    %v426 = vld [vmem:[#allocation3 + $0xb50] sm:$0xff]
    %v427 = vld [vmem:[#allocation3 + $0xb58] sm:$0xff]
    %v428 = vld [vmem:[#allocation3 + $0xb60] sm:$0xff]
    %v429 = vld [vmem:[#allocation3 + $0xb68] sm:$0xff]
    %v430 = vld [vmem:[#allocation3 + $0xb70] sm:$0xff]
    %v431 = vld [vmem:[#allocation3 + $0xb78] sm:$0xff]
    %v432 = vld [vmem:[#allocation3 + $0xb80] sm:$0xff]
    %v433 = vld [vmem:[#allocation3 + $0xb88] sm:$0xff]
    %v434 = vld [vmem:[#allocation3 + $0xb90] sm:$0xff]
    %v435 = vld [vmem:[#allocation3 + $0xb98] sm:$0xff]
    %v436 = vld [vmem:[#allocation3 + $0xba0] sm:$0xff]
    %v437 = vld [vmem:[#allocation3 + $0xba8] sm:$0xff]
    %v438 = vld [vmem:[#allocation3 + $0xbb0] sm:$0xff]
    %v439 = vld [vmem:[#allocation3 + $0xbb8] sm:$0xff]
    %v440 = vld [vmem:[#allocation3 + $0xbc0] sm:$0xff]
    %v441 = vld [vmem:[#allocation3 + $0xbc8] sm:$0xff]
    %v442 = vld [vmem:[#allocation3 + $0xbd0] sm:$0xff]
    %v443 = vld [vmem:[#allocation3 + $0xbd8] sm:$0xff]
    %v444 = vld [vmem:[#allocation3 + $0xbe0] sm:$0xff]
    %v445 = vld [vmem:[#allocation3 + $0xbe8] sm:$0xff]
    %v446 = vld [vmem:[#allocation3 + $0xbf0] sm:$0xff]
    %v447 = vld [vmem:[#allocation3 + $0xbf8] sm:$0xff]
    %v448 = vld [vmem:[#allocation3 + $0xc00] sm:$0xff]
    %v449 = vld [vmem:[#allocation3 + $0xc08] sm:$0xff]
    %v450 = vld [vmem:[#allocation3 + $0xc10] sm:$0xff]
    %v451 = vld [vmem:[#allocation3 + $0xc18] sm:$0xff]
    %v452 = vld [vmem:[#allocation3 + $0xc20] sm:$0xff]
    %v453 = vld [vmem:[#allocation3 + $0xc28] sm:$0xff]
    %v454 = vld [vmem:[#allocation3 + $0xc30] sm:$0xff]
    %v455 = vld [vmem:[#allocation3 + $0xc38] sm:$0xff]
    %v456 = vld [vmem:[#allocation3 + $0xc40] sm:$0xff]
    %v457 = vld [vmem:[#allocation3 + $0xc48] sm:$0xff]
    %v458 = vld [vmem:[#allocation3 + $0xc50] sm:$0xff]
    %v459 = vld [vmem:[#allocation3 + $0xc58] sm:$0xff]
    %v460 = vld [vmem:[#allocation3 + $0xc60] sm:$0xff]
    %v461 = vld [vmem:[#allocation3 + $0xc68] sm:$0xff]
    %v462 = vld [vmem:[#allocation3 + $0xc70] sm:$0xff]
    %v463 = vld [vmem:[#allocation3 + $0xc78] sm:$0xff]
    %v464 = vld [vmem:[#allocation3 + $0xc80] sm:$0xff]
    %v465 = vld [vmem:[#allocation3 + $0xc88] sm:$0xff]
    %v466 = vld [vmem:[#allocation3 + $0xc90] sm:$0xff]
    %v467 = vld [vmem:[#allocation3 + $0xc98] sm:$0xff]
    %v468 = vld [vmem:[#allocation3 + $0xca0] sm:$0xff]
    %v469 = vld [vmem:[#allocation3 + $0xca8] sm:$0xff]
    %v470 = vld [vmem:[#allocation3 + $0xcb0] sm:$0xff]
    %v471 = vld [vmem:[#allocation3 + $0xcb8] sm:$0xff]
    %v472 = vld [vmem:[#allocation3 + $0xcc0] sm:$0xff]
    %v473 = vld [vmem:[#allocation3 + $0xcc8] sm:$0xff]
    %v474 = vld [vmem:[#allocation3 + $0xcd0] sm:$0xff]
    %v475 = vld [vmem:[#allocation3 + $0xcd8] sm:$0xff]
    %v476 = vld [vmem:[#allocation3 + $0xce0] sm:$0xff]
    %v477 = vld [vmem:[#allocation3 + $0xce8] sm:$0xff]
    %v478 = vld [vmem:[#allocation3 + $0xcf0] sm:$0xff]
    %v479 = vld [vmem:[#allocation3 + $0xcf8] sm:$0xff]
    %v480 = vld [vmem:[#allocation3 + $0xd00] sm:$0xff]
    %v481 = vld [vmem:[#allocation3 + $0xd08] sm:$0xff]
    %v482 = vld [vmem:[#allocation3 + $0xd10] sm:$0xff]
    %v483 = vld [vmem:[#allocation3 + $0xd18] sm:$0xff]
    %v484 = vld [vmem:[#allocation3 + $0xd20] sm:$0xff]
    %v485 = vld [vmem:[#allocation3 + $0xd28] sm:$0xff]
    %v486 = vld [vmem:[#allocation3 + $0xd30] sm:$0xff]
    %v487 = vld [vmem:[#allocation3 + $0xd38] sm:$0xff]
    %v488 = vld [vmem:[#allocation3 + $0xd40] sm:$0xff]
    %v489 = vld [vmem:[#allocation3 + $0xd48] sm:$0xff]
    %v490 = vld [vmem:[#allocation3 + $0xd50] sm:$0xff]
    %v491 = vld [vmem:[#allocation3 + $0xd58] sm:$0xff]
    %v492 = vld [vmem:[#allocation3 + $0xd60] sm:$0xff]
    %v493 = vld [vmem:[#allocation3 + $0xd68] sm:$0xff]
    %v494 = vld [vmem:[#allocation3 + $0xd70] sm:$0xff]
    %v495 = vld [vmem:[#allocation3 + $0xd78] sm:$0xff]
    %v496 = vld [vmem:[#allocation3 + $0xd80] sm:$0xff]
    %v497 = vld [vmem:[#allocation3 + $0xd88] sm:$0xff]
    %v498 = vld [vmem:[#allocation3 + $0xd90] sm:$0xff]
    %v499 = vld [vmem:[#allocation3 + $0xd98] sm:$0xff]
    %v500 = vld [vmem:[#allocation3 + $0xda0] sm:$0xff]
    %v501 = vld [vmem:[#allocation3 + $0xda8] sm:$0xff]
    %v502 = vld [vmem:[#allocation3 + $0xdb0] sm:$0xff]
    %v503 = vld [vmem:[#allocation3 + $0xdb8] sm:$0xff]
    %v504 = vld [vmem:[#allocation3 + $0xdc0] sm:$0xff]
    %v505 = vld [vmem:[#allocation3 + $0xdc8] sm:$0xff]
    %v506 = vld [vmem:[#allocation3 + $0xdd0] sm:$0xff]
    %v507 = vld [vmem:[#allocation3 + $0xdd8] sm:$0xff]
    %v508 = vld [vmem:[#allocation3 + $0xde0] sm:$0xff]
    %v509 = vld [vmem:[#allocation3 + $0xde8] sm:$0xff]
    %v510 = vld [vmem:[#allocation3 + $0xdf0] sm:$0xff]
    %v511 = vld [vmem:[#allocation3 + $0xdf8] sm:$0xff]
    %v512 = vld [vmem:[#allocation3 + $0xe00] sm:$0xff]
    %v513 = vld [vmem:[#allocation3 + $0xe08] sm:$0xff]
    %v514 = vld [vmem:[#allocation3 + $0xe10] sm:$0xff]
    %v515 = vld [vmem:[#allocation3 + $0xe18] sm:$0xff]
    %v516 = vld [vmem:[#allocation3 + $0xe20] sm:$0xff]
    %v517 = vld [vmem:[#allocation3 + $0xe28] sm:$0xff]
    %v518 = vld [vmem:[#allocation3 + $0xe30] sm:$0xff]
    %v519 = vld [vmem:[#allocation3 + $0xe38] sm:$0xff]
    %v520 = vld [vmem:[#allocation3 + $0xe40] sm:$0xff]
    %v521 = vld [vmem:[#allocation3 + $0xe48] sm:$0xff]
    %v522 = vld [vmem:[#allocation3 + $0xe50] sm:$0xff]
    %v523 = vld [vmem:[#allocation3 + $0xe58] sm:$0xff]
    %v524 = vld [vmem:[#allocation3 + $0xe60] sm:$0xff]
    %v525 = vld [vmem:[#allocation3 + $0xe68] sm:$0xff]
    %v526 = vld [vmem:[#allocation3 + $0xe70] sm:$0xff]
    %v527 = vld [vmem:[#allocation3 + $0xe78] sm:$0xff]
    %v528 = vld [vmem:[#allocation3 + $0xe80] sm:$0xff]
    %v529 = vld [vmem:[#allocation3 + $0xe88] sm:$0xff]
    %v530 = vld [vmem:[#allocation3 + $0xe90] sm:$0xff]
    %v531 = vld [vmem:[#allocation3 + $0xe98] sm:$0xff]
    %v532 = vld [vmem:[#allocation3 + $0xea0] sm:$0xff]
    %v533 = vld [vmem:[#allocation3 + $0xea8] sm:$0xff]
    %v534 = vld [vmem:[#allocation3 + $0xeb0] sm:$0xff]
    %v535 = vld [vmem:[#allocation3 + $0xeb8] sm:$0xff]
    %v536 = vld [vmem:[#allocation3 + $0xec0] sm:$0xff]
    %v537 = vld [vmem:[#allocation3 + $0xec8] sm:$0xff]
    %v538 = vld [vmem:[#allocation3 + $0xed0] sm:$0xff]
    %v539 = vld [vmem:[#allocation3 + $0xed8] sm:$0xff]
    %v540 = vld [vmem:[#allocation3 + $0xee0] sm:$0xff]
    %v541 = vld [vmem:[#allocation3 + $0xee8] sm:$0xff]
    %v542 = vld [vmem:[#allocation3 + $0xef0] sm:$0xff]
    %v543 = vld [vmem:[#allocation3 + $0xef8] sm:$0xff]
    %v544 = vld [vmem:[#allocation3 + $0xf00] sm:$0xff]
    %v545 = vld [vmem:[#allocation3 + $0xf08] sm:$0xff]
    %v546 = vld [vmem:[#allocation3 + $0xf10] sm:$0xff]
    %v547 = vld [vmem:[#allocation3 + $0xf18] sm:$0xff]
    %v548 = vld [vmem:[#allocation3 + $0xf20] sm:$0xff]
    %v549 = vld [vmem:[#allocation3 + $0xf28] sm:$0xff]
    %v550 = vld [vmem:[#allocation3 + $0xf30] sm:$0xff]
    %v551 = vld [vmem:[#allocation3 + $0xf38] sm:$0xff]
    %v552 = vld [vmem:[#allocation3 + $0xf40] sm:$0xff]
    %v553 = vld [vmem:[#allocation3 + $0xf48] sm:$0xff]
    %v554 = vld [vmem:[#allocation3 + $0xf50] sm:$0xff]
    %v555 = vld [vmem:[#allocation3 + $0xf58] sm:$0xff]
    %v556 = vld [vmem:[#allocation3 + $0xf60] sm:$0xff]
    %v557 = vld [vmem:[#allocation3 + $0xf68] sm:$0xff]
    %v558 = vld [vmem:[#allocation3 + $0xf70] sm:$0xff]
    %v559 = vld [vmem:[#allocation3 + $0xf78] sm:$0xff]
    %v560 = vld [vmem:[#allocation3 + $0xf80] sm:$0xff]
    %v561 = vld [vmem:[#allocation3 + $0xf88] sm:$0xff]
    %v562 = vld [vmem:[#allocation3 + $0xf90] sm:$0xff]
    %v563 = vld [vmem:[#allocation3 + $0xf98] sm:$0xff]
    %v564 = vld [vmem:[#allocation3 + $0xfa0] sm:$0xff]
    %v565 = vld [vmem:[#allocation3 + $0xfa8] sm:$0xff]
    %v566 = vld [vmem:[#allocation3 + $0xfb0] sm:$0xff]
    %v567 = vld [vmem:[#allocation3 + $0xfb8] sm:$0xff]
    %v568 = vld [vmem:[#allocation3 + $0xfc0] sm:$0xff]
    %v569 = vld [vmem:[#allocation3 + $0xfc8] sm:$0xff]
    %v570 = vld [vmem:[#allocation3 + $0xfd0] sm:$0xff]
    %v571 = vld [vmem:[#allocation3 + $0xfd8] sm:$0xff]
    %v572 = vld [vmem:[#allocation3 + $0xfe0] sm:$0xff]
    %v573 = vld [vmem:[#allocation3 + $0xfe8] sm:$0xff]
    %v574 = vld [vmem:[#allocation3 + $0xff0] sm:$0xff]
    %v575 = vld [vmem:[#allocation3 + $0xff8] sm:$0xff]
    %v576 = vld [vmem:[#allocation3 + $0x1000] sm:$0xff]
    %v577 = vld [vmem:[#allocation3 + $0x1008] sm:$0xff]
    %v578 = vld [vmem:[#allocation3 + $0x1010] sm:$0xff]
    %v579 = vld [vmem:[#allocation3 + $0x1018] sm:$0xff]
    %v580 = vld [vmem:[#allocation3 + $0x1020] sm:$0xff]
    %v581 = vld [vmem:[#allocation3 + $0x1028] sm:$0xff]
    %v582 = vld [vmem:[#allocation3 + $0x1030] sm:$0xff]
    %v583 = vld [vmem:[#allocation3 + $0x1038] sm:$0xff]
    %v584 = vld [vmem:[#allocation3 + $0x1040] sm:$0xff]
    %v585 = vld [vmem:[#allocation3 + $0x1048] sm:$0xff]
    %v586 = vld [vmem:[#allocation3 + $0x1050] sm:$0xff]
    %v587 = vld [vmem:[#allocation3 + $0x1058] sm:$0xff]
    %v588 = vld [vmem:[#allocation3 + $0x1060] sm:$0xff]
    %v589 = vld [vmem:[#allocation3 + $0x1068] sm:$0xff]
    %v590 = vld [vmem:[#allocation3 + $0x1070] sm:$0xff]
    %v591 = vld [vmem:[#allocation3 + $0x1078] sm:$0xff]
    %v592 = vld [vmem:[#allocation3 + $0x1080] sm:$0xff]
    %v593 = vld [vmem:[#allocation3 + $0x1088] sm:$0xff]
    %v594 = vld [vmem:[#allocation3 + $0x1090] sm:$0xff]
    %v595 = vld [vmem:[#allocation3 + $0x1098] sm:$0xff]
    %v596 = vld [vmem:[#allocation3 + $0x10a0] sm:$0xff]
    %v597 = vld [vmem:[#allocation3 + $0x10a8] sm:$0xff]
    %v598 = vld [vmem:[#allocation3 + $0x10b0] sm:$0xff]
    %v599 = vld [vmem:[#allocation3 + $0x10b8] sm:$0xff]
    %v600 = vld [vmem:[#allocation3 + $0x10c0] sm:$0xff]
    %v601 = vld [vmem:[#allocation3 + $0x10c8] sm:$0xff]
    %v602 = vld [vmem:[#allocation3 + $0x10d0] sm:$0xff]
    %v603 = vld [vmem:[#allocation3 + $0x10d8] sm:$0xff]
    %v604 = vld [vmem:[#allocation3 + $0x10e0] sm:$0xff]
    %v605 = vld [vmem:[#allocation3 + $0x10e8] sm:$0xff]
    %v606 = vld [vmem:[#allocation3 + $0x10f0] sm:$0xff]
    %v607 = vld [vmem:[#allocation3 + $0x10f8] sm:$0xff]
    %v608 = vld [vmem:[#allocation3 + $0x1100] sm:$0xff]
    %v609 = vld [vmem:[#allocation3 + $0x1108] sm:$0xff]
    %v610 = vld [vmem:[#allocation3 + $0x1110] sm:$0xff]
    %v611 = vld [vmem:[#allocation3 + $0x1118] sm:$0xff]
    %v612 = vld [vmem:[#allocation3 + $0x1120] sm:$0xff]
    %v613 = vld [vmem:[#allocation3 + $0x1128] sm:$0xff]
    %v614 = vld [vmem:[#allocation3 + $0x1130] sm:$0xff]
    %v615 = vld [vmem:[#allocation3 + $0x1138] sm:$0xff]
    %v616 = vld [vmem:[#allocation3 + $0x1140] sm:$0xff]
    %v617 = vld [vmem:[#allocation3 + $0x1148] sm:$0xff]
    %v618 = vld [vmem:[#allocation3 + $0x1150] sm:$0xff]
    %v619 = vld [vmem:[#allocation3 + $0x1158] sm:$0xff]
    %v620 = vld [vmem:[#allocation3 + $0x1160] sm:$0xff]
    %v621 = vld [vmem:[#allocation3 + $0x1168] sm:$0xff]
    %v622 = vld [vmem:[#allocation3 + $0x1170] sm:$0xff]
    %v623 = vld [vmem:[#allocation3 + $0x1178] sm:$0xff]
    %v624 = vld [vmem:[#allocation3 + $0x1180] sm:$0xff]
    %v625 = vld [vmem:[#allocation3 + $0x1188] sm:$0xff]
    %v626 = vld [vmem:[#allocation3 + $0x1190] sm:$0xff]
    %v627 = vld [vmem:[#allocation3 + $0x1198] sm:$0xff]
    %v628 = vld [vmem:[#allocation3 + $0x11a0] sm:$0xff]
    %v629 = vld [vmem:[#allocation3 + $0x11a8] sm:$0xff]
    %v630 = vld [vmem:[#allocation3 + $0x11b0] sm:$0xff]
    %v631 = vld [vmem:[#allocation3 + $0x11b8] sm:$0xff]
    %v632 = vld [vmem:[#allocation3 + $0x11c0] sm:$0xff]
    %v633 = vld [vmem:[#allocation3 + $0x11c8] sm:$0xff]
    %v634 = vld [vmem:[#allocation3 + $0x11d0] sm:$0xff]
    %v635 = vld [vmem:[#allocation3 + $0x11d8] sm:$0xff]
    %v636 = vld [vmem:[#allocation3 + $0x11e0] sm:$0xff]
    %v637 = vld [vmem:[#allocation3 + $0x11e8] sm:$0xff]
    %v638 = vld [vmem:[#allocation3 + $0x11f0] sm:$0xff]
    %v639 = vld [vmem:[#allocation3 + $0x11f8] sm:$0xff]
    %v640 = vld [vmem:[#allocation3 + $0x1200] sm:$0xff]
    %v641 = vld [vmem:[#allocation3 + $0x1208] sm:$0xff]
    %v642 = vld [vmem:[#allocation3 + $0x1210] sm:$0xff]
    %v643 = vld [vmem:[#allocation3 + $0x1218] sm:$0xff]
    %v644 = vld [vmem:[#allocation3 + $0x1220] sm:$0xff]
    %v645 = vld [vmem:[#allocation3 + $0x1228] sm:$0xff]
    %v646 = vld [vmem:[#allocation3 + $0x1230] sm:$0xff]
    %v647 = vld [vmem:[#allocation3 + $0x1238] sm:$0xff]
    %v648 = vld [vmem:[#allocation3 + $0x1240] sm:$0xff]
    %v649 = vld [vmem:[#allocation3 + $0x1248] sm:$0xff]
    %v650 = vld [vmem:[#allocation3 + $0x1250] sm:$0xff]
    %v651 = vld [vmem:[#allocation3 + $0x1258] sm:$0xff]
    %v652 = vld [vmem:[#allocation3 + $0x1260] sm:$0xff]
    %v653 = vld [vmem:[#allocation3 + $0x1268] sm:$0xff]
    %v654 = vld [vmem:[#allocation3 + $0x1270] sm:$0xff]
    %v655 = vld [vmem:[#allocation3 + $0x1278] sm:$0xff]
    %v656 = vld [vmem:[#allocation3 + $0x1280] sm:$0xff]
    %v657 = vld [vmem:[#allocation3 + $0x1288] sm:$0xff]
    %v658 = vld [vmem:[#allocation3 + $0x1290] sm:$0xff]
    %v659 = vld [vmem:[#allocation3 + $0x1298] sm:$0xff]
    %v660 = vld [vmem:[#allocation3 + $0x12a0] sm:$0xff]
    %v661 = vld [vmem:[#allocation3 + $0x12a8] sm:$0xff]
    %v662 = vld [vmem:[#allocation3 + $0x12b0] sm:$0xff]
    %v663 = vld [vmem:[#allocation3 + $0x12b8] sm:$0xff]
    %v664 = vld [vmem:[#allocation3 + $0x12c0] sm:$0xff]
    %v665 = vld [vmem:[#allocation3 + $0x12c8] sm:$0xff]
    %v666 = vld [vmem:[#allocation3 + $0x12d0] sm:$0xff]
    %v667 = vld [vmem:[#allocation3 + $0x12d8] sm:$0xff]
    %v668 = vld [vmem:[#allocation3 + $0x12e0] sm:$0xff]
    %v669 = vld [vmem:[#allocation3 + $0x12e8] sm:$0xff]
    %v670 = vld [vmem:[#allocation3 + $0x12f0] sm:$0xff]
    %v671 = vld [vmem:[#allocation3 + $0x12f8] sm:$0xff]
    %v672 = vld [vmem:[#allocation3 + $0x1300] sm:$0xff]
    %v673 = vld [vmem:[#allocation3 + $0x1308] sm:$0xff]
    %v674 = vld [vmem:[#allocation3 + $0x1310] sm:$0xff]
    %v675 = vld [vmem:[#allocation3 + $0x1318] sm:$0xff]
    %v676 = vld [vmem:[#allocation3 + $0x1320] sm:$0xff]
    %v677 = vld [vmem:[#allocation3 + $0x1328] sm:$0xff]
    %v678 = vld [vmem:[#allocation3 + $0x1330] sm:$0xff]
    %v679 = vld [vmem:[#allocation3 + $0x1338] sm:$0xff]
    %v680 = vld [vmem:[#allocation3 + $0x1340] sm:$0xff]
    %v681 = vld [vmem:[#allocation3 + $0x1348] sm:$0xff]
    %v682 = vpack.c.bf16 %v70, %v64
    %v683 = vpack.c.bf16 %v71, %v65
    %v684 = vpack.c.bf16 %v72, %v66
    %v685 = vpack.c.bf16 %v73, %v67
    %v686 = vpack.c.bf16 %v74, %v68
    %v687 = vpack.c.bf16 %v75, %v69
    %v688 = vpack.c.bf16 %v82, %v76
    %v689 = vpack.c.bf16 %v83, %v77
    %v690 = vpack.c.bf16 %v84, %v78
    %v691 = vpack.c.bf16 %v85, %v79
    %v692 = vpack.c.bf16 %v86, %v80
    %v693 = vpack.c.bf16 %v87, %v81
    %v694 = vpack.c.bf16 %v94, %v88
    %v695 = vpack.c.bf16 %v95, %v89
    %v696 = vpack.c.bf16 %v96, %v90
    %v697 = vpack.c.bf16 %v97, %v91
    %v698 = vpack.c.bf16 %v98, %v92
    %v699 = vpack.c.bf16 %v99, %v93
    %v700 = vpack.c.bf16 %v106, %v100
    %v701 = vpack.c.bf16 %v107, %v101
    %v702 = vpack.c.bf16 %v108, %v102
    %v703 = vpack.c.bf16 %v109, %v103
    %v704 = vpack.c.bf16 %v110, %v104
    %v705 = vpack.c.bf16 %v111, %v105
    %v706 = vpack.c.bf16 %v118, %v112
    %v707 = vpack.c.bf16 %v119, %v113
    %v708 = vpack.c.bf16 %v120, %v114
    %v709 = vpack.c.bf16 %v121, %v115
    %v710 = vpack.c.bf16 %v122, %v116
    %v711 = vpack.c.bf16 %v123, %v117
    %v712 = vpack.c.bf16 %v130, %v124
    %v713 = vpack.c.bf16 %v131, %v125
    %v714 = vpack.c.bf16 %v132, %v126
    %v715 = vpack.c.bf16 %v133, %v127
    %v716 = vpack.c.bf16 %v134, %v128
    %v717 = vpack.c.bf16 %v135, %v129
    %v718 = vpack.c.bf16 %v142, %v136
    %v719 = vpack.c.bf16 %v143, %v137
    %v720 = vpack.c.bf16 %v144, %v138
    %v721 = vpack.c.bf16 %v145, %v139
    %v722 = vpack.c.bf16 %v146, %v140
    %v723 = vpack.c.bf16 %v147, %v141
    %v724 = vpack.c.bf16 %v154, %v148
    %v725 = vpack.c.bf16 %v155, %v149
    %v726 = vpack.c.bf16 %v156, %v150
    %v727 = vpack.c.bf16 %v157, %v151
    %v728 = vpack.c.bf16 %v158, %v152
    %v729 = vpack.c.bf16 %v159, %v153
    %v730 = vpack.c.bf16 %v166, %v160
    %v731 = vpack.c.bf16 %v167, %v161
    %v732 = vpack.c.bf16 %v168, %v162
    %v733 = vpack.c.bf16 %v169, %v163
    %v734 = vpack.c.bf16 %v170, %v164
    %v735 = vpack.c.bf16 %v171, %v165
    %v736 = vpack.c.bf16 %v178, %v172
    %v737 = vpack.c.bf16 %v179, %v173
    %v738 = vpack.c.bf16 %v180, %v174
    %v739 = vpack.c.bf16 %v181, %v175
    %v740 = vpack.c.bf16 %v182, %v176
    %v741 = vpack.c.bf16 %v183, %v177
    %v742 = vpack.c.bf16 %v190, %v184
    %v743 = vpack.c.bf16 %v191, %v185
    %v744 = vpack.c.bf16 %v192, %v186
    %v745 = vpack.c.bf16 %v193, %v187
    %v746 = vpack.c.bf16 %v194, %v188
    %v747 = vpack.c.bf16 %v195, %v189
    %v748 = vpack.c.bf16 %v202, %v196
    %v749 = vpack.c.bf16 %v203, %v197
    %v750 = vpack.c.bf16 %v204, %v198
    %v751 = vpack.c.bf16 %v205, %v199
    %v752 = vpack.c.bf16 %v206, %v200
    %v753 = vpack.c.bf16 %v207, %v201
    %v754 = vpack.c.bf16 %v214, %v208
    %v755 = vpack.c.bf16 %v215, %v209
    %v756 = vpack.c.bf16 %v216, %v210
    %v757 = vpack.c.bf16 %v217, %v211
    %v758 = vpack.c.bf16 %v218, %v212
    %v759 = vpack.c.bf16 %v219, %v213
    %v760 = vpack.c.bf16 %v226, %v220
    %v761 = vpack.c.bf16 %v227, %v221
    %v762 = vpack.c.bf16 %v228, %v222
    %v763 = vpack.c.bf16 %v229, %v223
    %v764 = vpack.c.bf16 %v230, %v224
    %v765 = vpack.c.bf16 %v231, %v225
    %v766 = vpack.c.bf16 %v238, %v232
    %v767 = vpack.c.bf16 %v239, %v233
    %v768 = vpack.c.bf16 %v240, %v234
    %v769 = vpack.c.bf16 %v241, %v235
    %v770 = vpack.c.bf16 %v242, %v236
    %v771 = vpack.c.bf16 %v243, %v237
    %v772 = vpack.c.bf16 %v250, %v244
    %v773 = vpack.c.bf16 %v251, %v245
    %v774 = vpack.c.bf16 %v252, %v246
    %v775 = vpack.c.bf16 %v253, %v247
    %v776 = vpack.c.bf16 %v254, %v248
    %v777 = vpack.c.bf16 %v255, %v249
    %v778 = vpack.c.bf16 %v262, %v256
    %v779 = vpack.c.bf16 %v263, %v257
    %v780 = vpack.c.bf16 %v264, %v258
    %v781 = vpack.c.bf16 %v265, %v259
    %v782 = vpack.c.bf16 %v266, %v260
    %v783 = vpack.c.bf16 %v267, %v261
    %v784 = vpack.c.bf16 %v274, %v268
    %v785 = vpack.c.bf16 %v275, %v269
    %v786 = vpack.c.bf16 %v276, %v270
    %v787 = vpack.c.bf16 %v277, %v271
    %v788 = vpack.c.bf16 %v278, %v272
    %v789 = vpack.c.bf16 %v279, %v273
    %v790 = vpack.c.bf16 %v286, %v280
    %v791 = vpack.c.bf16 %v287, %v281
    %v792 = vpack.c.bf16 %v288, %v282
    %v793 = vpack.c.bf16 %v289, %v283
    %v794 = vpack.c.bf16 %v290, %v284
    %v795 = vpack.c.bf16 %v291, %v285
    %v796 = vpack.c.bf16 %v298, %v292
    %v797 = vpack.c.bf16 %v299, %v293
    %v798 = vpack.c.bf16 %v300, %v294
    %v799 = vpack.c.bf16 %v301, %v295
    %v800 = vpack.c.bf16 %v302, %v296
    %v801 = vpack.c.bf16 %v303, %v297
    %v802 = vpack.c.bf16 %v310, %v304
    %v803 = vpack.c.bf16 %v311, %v305
    %v804 = vpack.c.bf16 %v312, %v306
    %v805 = vpack.c.bf16 %v313, %v307
    %v806 = vpack.c.bf16 %v314, %v308
    %v807 = vpack.c.bf16 %v315, %v309
    %v808 = vpack.c.bf16 %v322, %v316
    %v809 = vpack.c.bf16 %v323, %v317
    %v810 = vpack.c.bf16 %v324, %v318
    %v811 = vpack.c.bf16 %v325, %v319
    %v812 = vpack.c.bf16 %v326, %v320
    %v813 = vpack.c.bf16 %v327, %v321
    %v814 = vpack.c.bf16 %v334, %v328
    %v815 = vpack.c.bf16 %v335, %v329
    %v816 = vpack.c.bf16 %v336, %v330
    %v817 = vpack.c.bf16 %v337, %v331
    %v818 = vpack.c.bf16 %v338, %v332
    %v819 = vpack.c.bf16 %v339, %v333
    %v820 = vpack.c.bf16 %v346, %v340
    %v821 = vpack.c.bf16 %v347, %v341
    %v822 = vpack.c.bf16 %v348, %v342
    %v823 = vpack.c.bf16 %v349, %v343
    %v824 = vpack.c.bf16 %v350, %v344
    %v825 = vpack.c.bf16 %v351, %v345
    %v826 = vpack.c.bf16 %v358, %v352
    %v827 = vpack.c.bf16 %v359, %v353
    %v828 = vpack.c.bf16 %v360, %v354
    %v829 = vpack.c.bf16 %v361, %v355
    %v830 = vpack.c.bf16 %v362, %v356
    %v831 = vpack.c.bf16 %v363, %v357
    %v832 = vpack.c.bf16 %v370, %v364
    %v833 = vpack.c.bf16 %v371, %v365
    %v834 = vpack.c.bf16 %v372, %v366
    %v835 = vpack.c.bf16 %v373, %v367
    %v836 = vpack.c.bf16 %v374, %v368
    %v837 = vpack.c.bf16 %v375, %v369
    %v838 = vpack.c.bf16 %v382, %v376
    %v839 = vpack.c.bf16 %v383, %v377
    %v840 = vpack.c.bf16 %v384, %v378
    %v841 = vpack.c.bf16 %v385, %v379
    %v842 = vpack.c.bf16 %v386, %v380
    %v843 = vpack.c.bf16 %v387, %v381
    %v844 = vpack.c.bf16 %v394, %v388
    %v845 = vpack.c.bf16 %v395, %v389
    %v846 = vpack.c.bf16 %v396, %v390
    %v847 = vpack.c.bf16 %v397, %v391
    %v848 = vpack.c.bf16 %v398, %v392
    %v849 = vpack.c.bf16 %v399, %v393
    %v850 = vpack.c.bf16 %v406, %v400
    %v851 = vpack.c.bf16 %v407, %v401
    %v852 = vpack.c.bf16 %v408, %v402
    %v853 = vpack.c.bf16 %v409, %v403
    %v854 = vpack.c.bf16 %v410, %v404
    %v855 = vpack.c.bf16 %v411, %v405
    %v856 = vpack.c.bf16 %v418, %v412
    %v857 = vpack.c.bf16 %v419, %v413
    %v858 = vpack.c.bf16 %v420, %v414
    %v859 = vpack.c.bf16 %v421, %v415
    %v860 = vpack.c.bf16 %v422, %v416
    %v861 = vpack.c.bf16 %v423, %v417
    %v862 = vpack.c.bf16 %v430, %v424
    %v863 = vpack.c.bf16 %v431, %v425
    %v864 = vpack.c.bf16 %v432, %v426
    %v865 = vpack.c.bf16 %v433, %v427
    %v866 = vpack.c.bf16 %v434, %v428
    %v867 = vpack.c.bf16 %v435, %v429
    %v868 = vpack.c.bf16 %v442, %v436
    %v869 = vpack.c.bf16 %v443, %v437
    %v870 = vpack.c.bf16 %v444, %v438
    %v871 = vpack.c.bf16 %v445, %v439
    %v872 = vpack.c.bf16 %v446, %v440
    %v873 = vpack.c.bf16 %v447, %v441
    %v874 = vpack.c.bf16 %v454, %v448
    %v875 = vpack.c.bf16 %v455, %v449
    %v876 = vpack.c.bf16 %v456, %v450
    %v877 = vpack.c.bf16 %v457, %v451
    %v878 = vpack.c.bf16 %v458, %v452
    %v879 = vpack.c.bf16 %v459, %v453
    %v880 = vpack.c.bf16 %v466, %v460
    %v881 = vpack.c.bf16 %v467, %v461
    %v882 = vpack.c.bf16 %v468, %v462
    %v883 = vpack.c.bf16 %v469, %v463
    %v884 = vpack.c.bf16 %v470, %v464
    %v885 = vpack.c.bf16 %v471, %v465
    %v886 = vpack.c.bf16 %v478, %v472
    %v887 = vpack.c.bf16 %v479, %v473
    %v888 = vpack.c.bf16 %v480, %v474
    %v889 = vpack.c.bf16 %v481, %v475
    %v890 = vpack.c.bf16 %v482, %v476
    %v891 = vpack.c.bf16 %v483, %v477
    %v892 = vpack.c.bf16 %v490, %v484
    %v893 = vpack.c.bf16 %v491, %v485
    %v894 = vpack.c.bf16 %v492, %v486
    %v895 = vpack.c.bf16 %v493, %v487
    %v896 = vpack.c.bf16 %v494, %v488
    %v897 = vpack.c.bf16 %v495, %v489
    %v898 = vpack.c.bf16 %v502, %v496
    %v899 = vpack.c.bf16 %v503, %v497
    %v900 = vpack.c.bf16 %v504, %v498
    %v901 = vpack.c.bf16 %v505, %v499
    %v902 = vpack.c.bf16 %v506, %v500
    %v903 = vpack.c.bf16 %v507, %v501
    %v904 = vpack.c.bf16 %v514, %v508
    %v905 = vpack.c.bf16 %v515, %v509
    %v906 = vpack.c.bf16 %v516, %v510
    %v907 = vpack.c.bf16 %v517, %v511
    %v908 = vpack.c.bf16 %v518, %v512
    %v909 = vpack.c.bf16 %v519, %v513
    %v910 = vpack.c.bf16 %v526, %v520
    %v911 = vpack.c.bf16 %v527, %v521
    %v912 = vpack.c.bf16 %v528, %v522
    %v913 = vpack.c.bf16 %v529, %v523
    %v914 = vpack.c.bf16 %v530, %v524
    %v915 = vpack.c.bf16 %v531, %v525
    %v916 = vpack.c.bf16 %v538, %v532
    %v917 = vpack.c.bf16 %v539, %v533
    %v918 = vpack.c.bf16 %v540, %v534
    %v919 = vpack.c.bf16 %v541, %v535
    %v920 = vpack.c.bf16 %v542, %v536
    %v921 = vpack.c.bf16 %v543, %v537
    %v922 = vpack.c.bf16 %v550, %v544
    %v923 = vpack.c.bf16 %v551, %v545
    %v924 = vpack.c.bf16 %v552, %v546
    %v925 = vpack.c.bf16 %v553, %v547
    %v926 = vpack.c.bf16 %v554, %v548
    %v927 = vpack.c.bf16 %v555, %v549
    %v928 = vpack.c.bf16 %v562, %v556
    %v929 = vpack.c.bf16 %v563, %v557
    %v930 = vpack.c.bf16 %v564, %v558
    %v931 = vpack.c.bf16 %v565, %v559
    %v932 = vpack.c.bf16 %v566, %v560
    %v933 = vpack.c.bf16 %v567, %v561
    %v934 = vpack.c.bf16 %v574, %v568
    %v935 = vpack.c.bf16 %v575, %v569
    %v936 = vpack.c.bf16 %v576, %v570
    %v937 = vpack.c.bf16 %v577, %v571
    %v938 = vpack.c.bf16 %v578, %v572
    %v939 = vpack.c.bf16 %v579, %v573
    %v940 = vpack.c.bf16 %v586, %v580
    %v941 = vpack.c.bf16 %v587, %v581
    %v942 = vpack.c.bf16 %v588, %v582
    %v943 = vpack.c.bf16 %v589, %v583
    %v944 = vpack.c.bf16 %v590, %v584
    %v945 = vpack.c.bf16 %v591, %v585
    %v946 = vpack.c.bf16 %v598, %v592
    %v947 = vpack.c.bf16 %v599, %v593
    %v948 = vpack.c.bf16 %v600, %v594
    %v949 = vpack.c.bf16 %v601, %v595
    %v950 = vpack.c.bf16 %v602, %v596
    %v951 = vpack.c.bf16 %v603, %v597
    %v952 = vpack.c.bf16 %v610, %v604
    %v953 = vpack.c.bf16 %v611, %v605
    %v954 = vpack.c.bf16 %v612, %v606
    %v955 = vpack.c.bf16 %v613, %v607
    %v956 = vpack.c.bf16 %v614, %v608
    %v957 = vpack.c.bf16 %v615, %v609
    %v958 = vpack.c.bf16 %v622, %v616
    %v959 = vpack.c.bf16 %v623, %v617
    %v960 = vpack.c.bf16 %v624, %v618
    %v961 = vpack.c.bf16 %v625, %v619
    %v962 = vpack.c.bf16 %v626, %v620
    %v963 = vpack.c.bf16 %v627, %v621
    %v964 = vpack.c.bf16 %v634, %v628
    %v965 = vpack.c.bf16 %v635, %v629
    %v966 = vpack.c.bf16 %v636, %v630
    %v967 = vpack.c.bf16 %v637, %v631
    %v968 = vpack.c.bf16 %v638, %v632
    %v969 = vpack.c.bf16 %v639, %v633
    %v970 = vpack.c.bf16 %v646, %v640
    %v971 = vpack.c.bf16 %v647, %v641
    %v972 = vpack.c.bf16 %v648, %v642
    %v973 = vpack.c.bf16 %v649, %v643
    %v974 = vpack.c.bf16 %v650, %v644
    %v975 = vpack.c.bf16 %v651, %v645
    %v976 = vpack.c.bf16 %v658, %v652
    %v977 = vpack.c.bf16 %v659, %v653
    %v978 = vpack.c.bf16 %v660, %v654
    %v979 = vpack.c.bf16 %v661, %v655
    %v980 = vpack.c.bf16 %v662, %v656
    %v981 = vpack.c.bf16 %v663, %v657
    %v982 = vpack.c.bf16 %v670, %v664
    %v983 = vpack.c.bf16 %v671, %v665
    %v984 = vpack.c.bf16 %v672, %v666
    %v985 = vpack.c.bf16 %v673, %v667
    %v986 = vpack.c.bf16 %v674, %v668
    %v987 = vpack.c.bf16 %v675, %v669
    %v988 = vpack.c.bf16 %v676, %v676
    %v989 = vpack.c.bf16 %v677, %v677
    %v990 = vpack.c.bf16 %v678, %v678
    %v991 = vpack.c.bf16 %v679, %v679
    %v992 = vpack.c.bf16 %v680, %v680
    %v993 = vpack.c.bf16 %v681, %v681
    %s994 = smul.u32 0, 824
    %s995 = ssub.s32 206, %s994
    %v996 = vlaneseq
    %v997 = vshrl.u32 %v996, 7
    %v998 = vadd.s32 %v997, 8
    %v999 = vadd.s32 %v997, 16
    %v1000 = vadd.s32 %v997, 24
    %v1001 = vadd.s32 %v997, 32
    %v1002 = vadd.s32 %v997, 40
    %v1003 = vadd.s32 %v997, 48
    %v1004 = vadd.s32 %v997, 56
    %v1005 = vadd.s32 %v997, 64
    %v1006 = vadd.s32 %v997, 72
    %v1007 = vadd.s32 %v997, 80
    %v1008 = vadd.s32 %v997, 88
    %v1009 = vadd.s32 %v997, 96
    %v1010 = vadd.s32 %v997, 104
    %v1011 = vadd.s32 %v997, 112
    %v1012 = vadd.s32 %v997, 120
    %v1013 = vadd.s32 %v997, 128
    %v1014 = vadd.s32 %v997, 136
    %v1015 = vadd.s32 %v997, 144
    %v1016 = vadd.s32 %v997, 152
    %v1017 = vadd.s32 %v997, 160
    %v1018 = vadd.s32 %v997, 168
    %v1019 = vadd.s32 %v997, 176
    %v1020 = vadd.s32 %v997, 184
    %v1021 = vadd.s32 %v997, 192
    %v1022 = vadd.s32 %v997, 200
    %v1023 = vadd.s32 %v997, 208
    %v1024 = vadd.s32 %v997, 216
    %v1025 = vadd.s32 %v997, 224
    %v1026 = vadd.s32 %v997, 232
    %v1027 = vadd.s32 %v997, 240
    %v1028 = vadd.s32 %v997, 248
    %v1029 = vadd.s32 %v997, 256
    %v1030 = vadd.s32 %v997, 264
    %v1031 = vadd.s32 %v997, 272
    %v1032 = vadd.s32 %v997, 280
    %v1033 = vadd.s32 %v997, 288
    %v1034 = vadd.s32 %v997, 296
    %v1035 = vadd.s32 %v997, 304
    %v1036 = vadd.s32 %v997, 312
    %v1037 = vadd.s32 %v997, 320
    %v1038 = vadd.s32 %v997, 328
    %v1039 = vadd.s32 %v997, 336
    %v1040 = vadd.s32 %v997, 344
    %v1041 = vadd.s32 %v997, 352
    %v1042 = vadd.s32 %v997, 360
    %v1043 = vadd.s32 %v997, 368
    %v1044 = vadd.s32 %v997, 376
    %v1045 = vadd.s32 %v997, 384
    %v1046 = vadd.s32 %v997, 392
    %v1047 = vadd.s32 %v997, 400
    %v1048 = vadd.s32 %v997, 408
    %v1049 = vadd.s32 %v997, 416
    %v1050 = vadd.s32 %v997, 424
    %v1051 = vadd.s32 %v997, 432
    %v1052 = vadd.s32 %v997, 440
    %v1053 = vadd.s32 %v997, 448
    %v1054 = vadd.s32 %v997, 456
    %v1055 = vadd.s32 %v997, 464
    %v1056 = vadd.s32 %v997, 472
    %v1057 = vadd.s32 %v997, 480
    %v1058 = vadd.s32 %v997, 488
    %v1059 = vadd.s32 %v997, 496
    %v1060 = vadd.s32 %v997, 504
    %v1061 = vadd.s32 %v997, 512
    %v1062 = vadd.s32 %v997, 520
    %v1063 = vadd.s32 %v997, 528
    %v1064 = vadd.s32 %v997, 536
    %v1065 = vadd.s32 %v997, 544
    %v1066 = vadd.s32 %v997, 552
    %v1067 = vadd.s32 %v997, 560
    %v1068 = vadd.s32 %v997, 568
    %v1069 = vadd.s32 %v997, 576
    %v1070 = vadd.s32 %v997, 584
    %v1071 = vadd.s32 %v997, 592
    %v1072 = vadd.s32 %v997, 600
    %v1073 = vadd.s32 %v997, 608
    %v1074 = vadd.s32 %v997, 616
    %v1075 = vadd.s32 %v997, 624
    %v1076 = vadd.s32 %v997, 632
    %v1077 = vadd.s32 %v997, 640
    %v1078 = vadd.s32 %v997, 648
    %v1079 = vadd.s32 %v997, 656
    %v1080 = vadd.s32 %v997, 664
    %v1081 = vadd.s32 %v997, 672
    %v1082 = vadd.s32 %v997, 680
    %v1083 = vadd.s32 %v997, 688
    %v1084 = vadd.s32 %v997, 696
    %v1085 = vadd.s32 %v997, 704
    %v1086 = vadd.s32 %v997, 712
    %v1087 = vadd.s32 %v997, 720
    %v1088 = vadd.s32 %v997, 728
    %v1089 = vadd.s32 %v997, 736
    %v1090 = vadd.s32 %v997, 744
    %v1091 = vadd.s32 %v997, 752
    %v1092 = vadd.s32 %v997, 760
    %v1093 = vadd.s32 %v997, 768
    %v1094 = vadd.s32 %v997, 776
    %v1095 = vadd.s32 %v997, 784
    %v1096 = vadd.s32 %v997, 792
    %v1097 = vadd.s32 %v997, 800
    %v1098 = vadd.s32 %v997, 808
    %v1099 = vadd.s32 %v997, 816
    %v1100 = vstv %s995
    %vm1101 = vcmp.lt.s32.totalorder %v997, %v1100
    %vm1102 = vcmp.lt.s32.totalorder %v998, %v1100
    %vm1103 = vcmp.lt.s32.totalorder %v999, %v1100
    %vm1104 = vcmp.lt.s32.totalorder %v1000, %v1100
    %vm1105 = vcmp.lt.s32.totalorder %v1001, %v1100
    %vm1106 = vcmp.lt.s32.totalorder %v1002, %v1100
    %vm1107 = vcmp.lt.s32.totalorder %v1003, %v1100
    %vm1108 = vcmp.lt.s32.totalorder %v1004, %v1100
    %vm1109 = vcmp.lt.s32.totalorder %v1005, %v1100
    %vm1110 = vcmp.lt.s32.totalorder %v1006, %v1100
    %vm1111 = vcmp.lt.s32.totalorder %v1007, %v1100
    %vm1112 = vcmp.lt.s32.totalorder %v1008, %v1100
    %vm1113 = vcmp.lt.s32.totalorder %v1009, %v1100
    %vm1114 = vcmp.lt.s32.totalorder %v1010, %v1100
    %vm1115 = vcmp.lt.s32.totalorder %v1011, %v1100
    %vm1116 = vcmp.lt.s32.totalorder %v1012, %v1100
    %vm1117 = vcmp.lt.s32.totalorder %v1013, %v1100
    %vm1118 = vcmp.lt.s32.totalorder %v1014, %v1100
    %vm1119 = vcmp.lt.s32.totalorder %v1015, %v1100
    %vm1120 = vcmp.lt.s32.totalorder %v1016, %v1100
    %vm1121 = vcmp.lt.s32.totalorder %v1017, %v1100
    %vm1122 = vcmp.lt.s32.totalorder %v1018, %v1100
    %vm1123 = vcmp.lt.s32.totalorder %v1019, %v1100
    %vm1124 = vcmp.lt.s32.totalorder %v1020, %v1100
    %vm1125 = vcmp.lt.s32.totalorder %v1021, %v1100
    %vm1126 = vcmp.lt.s32.totalorder %v1022, %v1100
    %vm1127 = vcmp.lt.s32.totalorder %v1023, %v1100
    %vm1128 = vcmp.lt.s32.totalorder %v1024, %v1100
    %vm1129 = vcmp.lt.s32.totalorder %v1025, %v1100
    %vm1130 = vcmp.lt.s32.totalorder %v1026, %v1100
    %vm1131 = vcmp.lt.s32.totalorder %v1027, %v1100
    %vm1132 = vcmp.lt.s32.totalorder %v1028, %v1100
    %vm1133 = vcmp.lt.s32.totalorder %v1029, %v1100
    %vm1134 = vcmp.lt.s32.totalorder %v1030, %v1100
    %vm1135 = vcmp.lt.s32.totalorder %v1031, %v1100
    %vm1136 = vcmp.lt.s32.totalorder %v1032, %v1100
    %vm1137 = vcmp.lt.s32.totalorder %v1033, %v1100
    %vm1138 = vcmp.lt.s32.totalorder %v1034, %v1100
    %vm1139 = vcmp.lt.s32.totalorder %v1035, %v1100
    %vm1140 = vcmp.lt.s32.totalorder %v1036, %v1100
    %vm1141 = vcmp.lt.s32.totalorder %v1037, %v1100
    %vm1142 = vcmp.lt.s32.totalorder %v1038, %v1100
    %vm1143 = vcmp.lt.s32.totalorder %v1039, %v1100
    %vm1144 = vcmp.lt.s32.totalorder %v1040, %v1100
    %vm1145 = vcmp.lt.s32.totalorder %v1041, %v1100
    %vm1146 = vcmp.lt.s32.totalorder %v1042, %v1100
    %vm1147 = vcmp.lt.s32.totalorder %v1043, %v1100
    %vm1148 = vcmp.lt.s32.totalorder %v1044, %v1100
    %vm1149 = vcmp.lt.s32.totalorder %v1045, %v1100
    %vm1150 = vcmp.lt.s32.totalorder %v1046, %v1100
    %vm1151 = vcmp.lt.s32.totalorder %v1047, %v1100
    %vm1152 = vcmp.lt.s32.totalorder %v1048, %v1100
    %vm1153 = vcmp.lt.s32.totalorder %v1049, %v1100
    %vm1154 = vcmp.lt.s32.totalorder %v1050, %v1100
    %vm1155 = vcmp.lt.s32.totalorder %v1051, %v1100
    %vm1156 = vcmp.lt.s32.totalorder %v1052, %v1100
    %vm1157 = vcmp.lt.s32.totalorder %v1053, %v1100
    %vm1158 = vcmp.lt.s32.totalorder %v1054, %v1100
    %vm1159 = vcmp.lt.s32.totalorder %v1055, %v1100
    %vm1160 = vcmp.lt.s32.totalorder %v1056, %v1100
    %vm1161 = vcmp.lt.s32.totalorder %v1057, %v1100
    %vm1162 = vcmp.lt.s32.totalorder %v1058, %v1100
    %vm1163 = vcmp.lt.s32.totalorder %v1059, %v1100
    %vm1164 = vcmp.lt.s32.totalorder %v1060, %v1100
    %vm1165 = vcmp.lt.s32.totalorder %v1061, %v1100
    %vm1166 = vcmp.lt.s32.totalorder %v1062, %v1100
    %vm1167 = vcmp.lt.s32.totalorder %v1063, %v1100
    %vm1168 = vcmp.lt.s32.totalorder %v1064, %v1100
    %vm1169 = vcmp.lt.s32.totalorder %v1065, %v1100
    %vm1170 = vcmp.lt.s32.totalorder %v1066, %v1100
    %vm1171 = vcmp.lt.s32.totalorder %v1067, %v1100
    %vm1172 = vcmp.lt.s32.totalorder %v1068, %v1100
    %vm1173 = vcmp.lt.s32.totalorder %v1069, %v1100
    %vm1174 = vcmp.lt.s32.totalorder %v1070, %v1100
    %vm1175 = vcmp.lt.s32.totalorder %v1071, %v1100
    %vm1176 = vcmp.lt.s32.totalorder %v1072, %v1100
    %vm1177 = vcmp.lt.s32.totalorder %v1073, %v1100
    %vm1178 = vcmp.lt.s32.totalorder %v1074, %v1100
    %vm1179 = vcmp.lt.s32.totalorder %v1075, %v1100
    %vm1180 = vcmp.lt.s32.totalorder %v1076, %v1100
    %vm1181 = vcmp.lt.s32.totalorder %v1077, %v1100
    %vm1182 = vcmp.lt.s32.totalorder %v1078, %v1100
    %vm1183 = vcmp.lt.s32.totalorder %v1079, %v1100
    %vm1184 = vcmp.lt.s32.totalorder %v1080, %v1100
    %vm1185 = vcmp.lt.s32.totalorder %v1081, %v1100
    %vm1186 = vcmp.lt.s32.totalorder %v1082, %v1100
    %vm1187 = vcmp.lt.s32.totalorder %v1083, %v1100
    %vm1188 = vcmp.lt.s32.totalorder %v1084, %v1100
    %vm1189 = vcmp.lt.s32.totalorder %v1085, %v1100
    %vm1190 = vcmp.lt.s32.totalorder %v1086, %v1100
    %vm1191 = vcmp.lt.s32.totalorder %v1087, %v1100
    %vm1192 = vcmp.lt.s32.totalorder %v1088, %v1100
    %vm1193 = vcmp.lt.s32.totalorder %v1089, %v1100
    %vm1194 = vcmp.lt.s32.totalorder %v1090, %v1100
    %vm1195 = vcmp.lt.s32.totalorder %v1091, %v1100
    %vm1196 = vcmp.lt.s32.totalorder %v1092, %v1100
    %vm1197 = vcmp.lt.s32.totalorder %v1093, %v1100
    %vm1198 = vcmp.lt.s32.totalorder %v1094, %v1100
    %vm1199 = vcmp.lt.s32.totalorder %v1095, %v1100
    %vm1200 = vcmp.lt.s32.totalorder %v1096, %v1100
    %vm1201 = vcmp.lt.s32.totalorder %v1097, %v1100
    %vm1202 = vcmp.lt.s32.totalorder %v1098, %v1100
    %vm1203 = vcmp.lt.s32.totalorder %v1099, %v1100
    %v1204 = vsel %vm1101, 1, 0
    %v1205 = vsel %vm1102, 1, 0
    %v1206 = vsel %vm1103, 1, 0
    %v1207 = vsel %vm1104, 1, 0
    %v1208 = vsel %vm1105, 1, 0
    %v1209 = vsel %vm1106, 1, 0
    %v1210 = vsel %vm1107, 1, 0
    %v1211 = vsel %vm1108, 1, 0
    %v1212 = vsel %vm1109, 1, 0
    %v1213 = vsel %vm1110, 1, 0
    %v1214 = vsel %vm1111, 1, 0
    %v1215 = vsel %vm1112, 1, 0
    %v1216 = vsel %vm1113, 1, 0
    %v1217 = vsel %vm1114, 1, 0
    %v1218 = vsel %vm1115, 1, 0
    %v1219 = vsel %vm1116, 1, 0
    %v1220 = vsel %vm1117, 1, 0
    %v1221 = vsel %vm1118, 1, 0
    %v1222 = vsel %vm1119, 1, 0
    %v1223 = vsel %vm1120, 1, 0
    %v1224 = vsel %vm1121, 1, 0
    %v1225 = vsel %vm1122, 1, 0
    %v1226 = vsel %vm1123, 1, 0
    %v1227 = vsel %vm1124, 1, 0
    %v1228 = vsel %vm1125, 1, 0
    %v1229 = vsel %vm1126, 1, 0
    %v1230 = vsel %vm1127, 1, 0
    %v1231 = vsel %vm1128, 1, 0
    %v1232 = vsel %vm1129, 1, 0
    %v1233 = vsel %vm1130, 1, 0
    %v1234 = vsel %vm1131, 1, 0
    %v1235 = vsel %vm1132, 1, 0
    %v1236 = vsel %vm1133, 1, 0
    %v1237 = vsel %vm1134, 1, 0
    %v1238 = vsel %vm1135, 1, 0
    %v1239 = vsel %vm1136, 1, 0
    %v1240 = vsel %vm1137, 1, 0
    %v1241 = vsel %vm1138, 1, 0
    %v1242 = vsel %vm1139, 1, 0
    %v1243 = vsel %vm1140, 1, 0
    %v1244 = vsel %vm1141, 1, 0
    %v1245 = vsel %vm1142, 1, 0
    %v1246 = vsel %vm1143, 1, 0
    %v1247 = vsel %vm1144, 1, 0
    %v1248 = vsel %vm1145, 1, 0
    %v1249 = vsel %vm1146, 1, 0
    %v1250 = vsel %vm1147, 1, 0
    %v1251 = vsel %vm1148, 1, 0
    %v1252 = vsel %vm1149, 1, 0
    %v1253 = vsel %vm1150, 1, 0
    %v1254 = vsel %vm1151, 1, 0
    %v1255 = vsel %vm1152, 1, 0
    %v1256 = vsel %vm1153, 1, 0
    %v1257 = vsel %vm1154, 1, 0
    %v1258 = vsel %vm1155, 1, 0
    %v1259 = vsel %vm1156, 1, 0
    %v1260 = vsel %vm1157, 1, 0
    %v1261 = vsel %vm1158, 1, 0
    %v1262 = vsel %vm1159, 1, 0
    %v1263 = vsel %vm1160, 1, 0
    %v1264 = vsel %vm1161, 1, 0
    %v1265 = vsel %vm1162, 1, 0
    %v1266 = vsel %vm1163, 1, 0
    %v1267 = vsel %vm1164, 1, 0
    %v1268 = vsel %vm1165, 1, 0
    %v1269 = vsel %vm1166, 1, 0
    %v1270 = vsel %vm1167, 1, 0
    %v1271 = vsel %vm1168, 1, 0
    %v1272 = vsel %vm1169, 1, 0
    %v1273 = vsel %vm1170, 1, 0
    %v1274 = vsel %vm1171, 1, 0
    %v1275 = vsel %vm1172, 1, 0
    %v1276 = vsel %vm1173, 1, 0
    %v1277 = vsel %vm1174, 1, 0
    %v1278 = vsel %vm1175, 1, 0
    %v1279 = vsel %vm1176, 1, 0
    %v1280 = vsel %vm1177, 1, 0
    %v1281 = vsel %vm1178, 1, 0
    %v1282 = vsel %vm1179, 1, 0
    %v1283 = vsel %vm1180, 1, 0
    %v1284 = vsel %vm1181, 1, 0
    %v1285 = vsel %vm1182, 1, 0
    %v1286 = vsel %vm1183, 1, 0
    %v1287 = vsel %vm1184, 1, 0
    %v1288 = vsel %vm1185, 1, 0
    %v1289 = vsel %vm1186, 1, 0
    %v1290 = vsel %vm1187, 1, 0
    %v1291 = vsel %vm1188, 1, 0
    %v1292 = vsel %vm1189, 1, 0
    %v1293 = vsel %vm1190, 1, 0
    %v1294 = vsel %vm1191, 1, 0
    %v1295 = vsel %vm1192, 1, 0
    %v1296 = vsel %vm1193, 1, 0
    %v1297 = vsel %vm1194, 1, 0
    %v1298 = vsel %vm1195, 1, 0
    %v1299 = vsel %vm1196, 1, 0
    %v1300 = vsel %vm1197, 1, 0
    %v1301 = vsel %vm1198, 1, 0
    %v1302 = vsel %vm1199, 1, 0
    %v1303 = vsel %vm1200, 1, 0
    %v1304 = vsel %vm1201, 1, 0
    %v1305 = vsel %vm1202, 1, 0
    %v1306 = vsel %vm1203, 1, 0
    %vm1307 = vcmp.eq.s32.totalorder %v1204, 1
    %vm1308 = vcmp.eq.s32.totalorder %v1205, 1
    %vm1309 = vcmp.eq.s32.totalorder %v1206, 1
    %vm1310 = vcmp.eq.s32.totalorder %v1207, 1
    %vm1311 = vcmp.eq.s32.totalorder %v1208, 1
    %vm1312 = vcmp.eq.s32.totalorder %v1209, 1
    %vm1313 = vcmp.eq.s32.totalorder %v1210, 1
    %vm1314 = vcmp.eq.s32.totalorder %v1211, 1
    %vm1315 = vcmp.eq.s32.totalorder %v1212, 1
    %vm1316 = vcmp.eq.s32.totalorder %v1213, 1
    %vm1317 = vcmp.eq.s32.totalorder %v1214, 1
    %vm1318 = vcmp.eq.s32.totalorder %v1215, 1
    %vm1319 = vcmp.eq.s32.totalorder %v1216, 1
    %vm1320 = vcmp.eq.s32.totalorder %v1217, 1
    %vm1321 = vcmp.eq.s32.totalorder %v1218, 1
    %vm1322 = vcmp.eq.s32.totalorder %v1219, 1
    %vm1323 = vcmp.eq.s32.totalorder %v1220, 1
    %vm1324 = vcmp.eq.s32.totalorder %v1221, 1
    %vm1325 = vcmp.eq.s32.totalorder %v1222, 1
    %vm1326 = vcmp.eq.s32.totalorder %v1223, 1
    %vm1327 = vcmp.eq.s32.totalorder %v1224, 1
    %vm1328 = vcmp.eq.s32.totalorder %v1225, 1
    %vm1329 = vcmp.eq.s32.totalorder %v1226, 1
    %vm1330 = vcmp.eq.s32.totalorder %v1227, 1
    %vm1331 = vcmp.eq.s32.totalorder %v1228, 1
    %vm1332 = vcmp.eq.s32.totalorder %v1229, 1
    %vm1333 = vcmp.eq.s32.totalorder %v1230, 1
    %vm1334 = vcmp.eq.s32.totalorder %v1231, 1
    %vm1335 = vcmp.eq.s32.totalorder %v1232, 1
    %vm1336 = vcmp.eq.s32.totalorder %v1233, 1
    %vm1337 = vcmp.eq.s32.totalorder %v1234, 1
    %vm1338 = vcmp.eq.s32.totalorder %v1235, 1
    %vm1339 = vcmp.eq.s32.totalorder %v1236, 1
    %vm1340 = vcmp.eq.s32.totalorder %v1237, 1
    %vm1341 = vcmp.eq.s32.totalorder %v1238, 1
    %vm1342 = vcmp.eq.s32.totalorder %v1239, 1
    %vm1343 = vcmp.eq.s32.totalorder %v1240, 1
    %vm1344 = vcmp.eq.s32.totalorder %v1241, 1
    %vm1345 = vcmp.eq.s32.totalorder %v1242, 1
    %vm1346 = vcmp.eq.s32.totalorder %v1243, 1
    %vm1347 = vcmp.eq.s32.totalorder %v1244, 1
    %vm1348 = vcmp.eq.s32.totalorder %v1245, 1
    %vm1349 = vcmp.eq.s32.totalorder %v1246, 1
    %vm1350 = vcmp.eq.s32.totalorder %v1247, 1
    %vm1351 = vcmp.eq.s32.totalorder %v1248, 1
    %vm1352 = vcmp.eq.s32.totalorder %v1249, 1
    %vm1353 = vcmp.eq.s32.totalorder %v1250, 1
    %vm1354 = vcmp.eq.s32.totalorder %v1251, 1
    %vm1355 = vcmp.eq.s32.totalorder %v1252, 1
    %vm1356 = vcmp.eq.s32.totalorder %v1253, 1
    %vm1357 = vcmp.eq.s32.totalorder %v1254, 1
    %vm1358 = vcmp.eq.s32.totalorder %v1255, 1
    %vm1359 = vcmp.eq.s32.totalorder %v1256, 1
    %vm1360 = vcmp.eq.s32.totalorder %v1257, 1
    %vm1361 = vcmp.eq.s32.totalorder %v1258, 1
    %vm1362 = vcmp.eq.s32.totalorder %v1259, 1
    %vm1363 = vcmp.eq.s32.totalorder %v1260, 1
    %vm1364 = vcmp.eq.s32.totalorder %v1261, 1
    %vm1365 = vcmp.eq.s32.totalorder %v1262, 1
    %vm1366 = vcmp.eq.s32.totalorder %v1263, 1
    %vm1367 = vcmp.eq.s32.totalorder %v1264, 1
    %vm1368 = vcmp.eq.s32.totalorder %v1265, 1
    %vm1369 = vcmp.eq.s32.totalorder %v1266, 1
    %vm1370 = vcmp.eq.s32.totalorder %v1267, 1
    %vm1371 = vcmp.eq.s32.totalorder %v1268, 1
    %vm1372 = vcmp.eq.s32.totalorder %v1269, 1
    %vm1373 = vcmp.eq.s32.totalorder %v1270, 1
    %vm1374 = vcmp.eq.s32.totalorder %v1271, 1
    %vm1375 = vcmp.eq.s32.totalorder %v1272, 1
    %vm1376 = vcmp.eq.s32.totalorder %v1273, 1
    %vm1377 = vcmp.eq.s32.totalorder %v1274, 1
    %vm1378 = vcmp.eq.s32.totalorder %v1275, 1
    %vm1379 = vcmp.eq.s32.totalorder %v1276, 1
    %vm1380 = vcmp.eq.s32.totalorder %v1277, 1
    %vm1381 = vcmp.eq.s32.totalorder %v1278, 1
    %vm1382 = vcmp.eq.s32.totalorder %v1279, 1
    %vm1383 = vcmp.eq.s32.totalorder %v1280, 1
    %vm1384 = vcmp.eq.s32.totalorder %v1281, 1
    %vm1385 = vcmp.eq.s32.totalorder %v1282, 1
    %vm1386 = vcmp.eq.s32.totalorder %v1283, 1
    %vm1387 = vcmp.eq.s32.totalorder %v1284, 1
    %vm1388 = vcmp.eq.s32.totalorder %v1285, 1
    %vm1389 = vcmp.eq.s32.totalorder %v1286, 1
    %vm1390 = vcmp.eq.s32.totalorder %v1287, 1
    %vm1391 = vcmp.eq.s32.totalorder %v1288, 1
    %vm1392 = vcmp.eq.s32.totalorder %v1289, 1
    %vm1393 = vcmp.eq.s32.totalorder %v1290, 1
    %vm1394 = vcmp.eq.s32.totalorder %v1291, 1
    %vm1395 = vcmp.eq.s32.totalorder %v1292, 1
    %vm1396 = vcmp.eq.s32.totalorder %v1293, 1
    %vm1397 = vcmp.eq.s32.totalorder %v1294, 1
    %vm1398 = vcmp.eq.s32.totalorder %v1295, 1
    %vm1399 = vcmp.eq.s32.totalorder %v1296, 1
    %vm1400 = vcmp.eq.s32.totalorder %v1297, 1
    %vm1401 = vcmp.eq.s32.totalorder %v1298, 1
    %vm1402 = vcmp.eq.s32.totalorder %v1299, 1
    %vm1403 = vcmp.eq.s32.totalorder %v1300, 1
    %vm1404 = vcmp.eq.s32.totalorder %v1301, 1
    %vm1405 = vcmp.eq.s32.totalorder %v1302, 1
    %vm1406 = vcmp.eq.s32.totalorder %v1303, 1
    %vm1407 = vcmp.eq.s32.totalorder %v1304, 1
    %vm1408 = vcmp.eq.s32.totalorder %v1305, 1
    %vm1409 = vcmp.eq.s32.totalorder %v1306, 1
    %vm1410 = vmpackc.low %vm1307, %vm1307
    %vm1411 = vmpackc.low %vm1308, %vm1308
    %vm1412 = vmpackc.low %vm1309, %vm1309
    %vm1413 = vmpackc.low %vm1310, %vm1310
    %vm1414 = vmpackc.low %vm1311, %vm1311
    %vm1415 = vmpackc.low %vm1312, %vm1312
    %vm1416 = vmpackc.low %vm1313, %vm1313
    %vm1417 = vmpackc.low %vm1314, %vm1314
    %vm1418 = vmpackc.low %vm1315, %vm1315
    %vm1419 = vmpackc.low %vm1316, %vm1316
    %vm1420 = vmpackc.low %vm1317, %vm1317
    %vm1421 = vmpackc.low %vm1318, %vm1318
    %vm1422 = vmpackc.low %vm1319, %vm1319
    %vm1423 = vmpackc.low %vm1320, %vm1320
    %vm1424 = vmpackc.low %vm1321, %vm1321
    %vm1425 = vmpackc.low %vm1322, %vm1322
    %vm1426 = vmpackc.low %vm1323, %vm1323
    %vm1427 = vmpackc.low %vm1324, %vm1324
    %vm1428 = vmpackc.low %vm1325, %vm1325
    %vm1429 = vmpackc.low %vm1326, %vm1326
    %vm1430 = vmpackc.low %vm1327, %vm1327
    %vm1431 = vmpackc.low %vm1328, %vm1328
    %vm1432 = vmpackc.low %vm1329, %vm1329
    %vm1433 = vmpackc.low %vm1330, %vm1330
    %vm1434 = vmpackc.low %vm1331, %vm1331
    %vm1435 = vmpackc.low %vm1332, %vm1332
    %vm1436 = vmpackc.low %vm1333, %vm1333
    %vm1437 = vmpackc.low %vm1334, %vm1334
    %vm1438 = vmpackc.low %vm1335, %vm1335
    %vm1439 = vmpackc.low %vm1336, %vm1336
    %vm1440 = vmpackc.low %vm1337, %vm1337
    %vm1441 = vmpackc.low %vm1338, %vm1338
    %vm1442 = vmpackc.low %vm1339, %vm1339
    %vm1443 = vmpackc.low %vm1340, %vm1340
    %vm1444 = vmpackc.low %vm1341, %vm1341
    %vm1445 = vmpackc.low %vm1342, %vm1342
    %vm1446 = vmpackc.low %vm1343, %vm1343
    %vm1447 = vmpackc.low %vm1344, %vm1344
    %vm1448 = vmpackc.low %vm1345, %vm1345
    %vm1449 = vmpackc.low %vm1346, %vm1346
    %vm1450 = vmpackc.low %vm1347, %vm1347
    %vm1451 = vmpackc.low %vm1348, %vm1348
    %vm1452 = vmpackc.low %vm1349, %vm1349
    %vm1453 = vmpackc.low %vm1350, %vm1350
    %vm1454 = vmpackc.low %vm1351, %vm1351
    %vm1455 = vmpackc.low %vm1352, %vm1352
    %vm1456 = vmpackc.low %vm1353, %vm1353
    %vm1457 = vmpackc.low %vm1354, %vm1354
    %vm1458 = vmpackc.low %vm1355, %vm1355
    %vm1459 = vmpackc.low %vm1356, %vm1356
    %vm1460 = vmpackc.low %vm1357, %vm1357
    %vm1461 = vmpackc.low %vm1358, %vm1358
    %vm1462 = vmpackc.low %vm1359, %vm1359
    %vm1463 = vmpackc.low %vm1360, %vm1360
    %vm1464 = vmpackc.low %vm1361, %vm1361
    %vm1465 = vmpackc.low %vm1362, %vm1362
    %vm1466 = vmpackc.low %vm1363, %vm1363
    %vm1467 = vmpackc.low %vm1364, %vm1364
    %vm1468 = vmpackc.low %vm1365, %vm1365
    %vm1469 = vmpackc.low %vm1366, %vm1366
    %vm1470 = vmpackc.low %vm1367, %vm1367
    %vm1471 = vmpackc.low %vm1368, %vm1368
    %vm1472 = vmpackc.low %vm1369, %vm1369
    %vm1473 = vmpackc.low %vm1370, %vm1370
    %vm1474 = vmpackc.low %vm1371, %vm1371
    %vm1475 = vmpackc.low %vm1372, %vm1372
    %vm1476 = vmpackc.low %vm1373, %vm1373
    %vm1477 = vmpackc.low %vm1374, %vm1374
    %vm1478 = vmpackc.low %vm1375, %vm1375
    %vm1479 = vmpackc.low %vm1376, %vm1376
    %vm1480 = vmpackc.low %vm1377, %vm1377
    %vm1481 = vmpackc.low %vm1378, %vm1378
    %vm1482 = vmpackc.low %vm1379, %vm1379
    %vm1483 = vmpackc.low %vm1380, %vm1380
    %vm1484 = vmpackc.low %vm1381, %vm1381
    %vm1485 = vmpackc.low %vm1382, %vm1382
    %vm1486 = vmpackc.low %vm1383, %vm1383
    %vm1487 = vmpackc.low %vm1384, %vm1384
    %vm1488 = vmpackc.low %vm1385, %vm1385
    %vm1489 = vmpackc.low %vm1386, %vm1386
    %vm1490 = vmpackc.low %vm1387, %vm1387
    %vm1491 = vmpackc.low %vm1388, %vm1388
    %vm1492 = vmpackc.low %vm1389, %vm1389
    %vm1493 = vmpackc.low %vm1390, %vm1390
    %vm1494 = vmpackc.low %vm1391, %vm1391
    %vm1495 = vmpackc.low %vm1392, %vm1392
    %vm1496 = vmpackc.low %vm1393, %vm1393
    %vm1497 = vmpackc.low %vm1394, %vm1394
    %vm1498 = vmpackc.low %vm1395, %vm1395
    %vm1499 = vmpackc.low %vm1396, %vm1396
    %vm1500 = vmpackc.low %vm1397, %vm1397
    %vm1501 = vmpackc.low %vm1398, %vm1398
    %vm1502 = vmpackc.low %vm1399, %vm1399
    %vm1503 = vmpackc.low %vm1400, %vm1400
    %vm1504 = vmpackc.low %vm1401, %vm1401
    %vm1505 = vmpackc.low %vm1402, %vm1402
    %vm1506 = vmpackc.low %vm1403, %vm1403
    %vm1507 = vmpackc.low %vm1404, %vm1404
    %vm1508 = vmpackc.low %vm1405, %vm1405
    %vm1509 = vmpackc.low %vm1406, %vm1406
    %vm1510 = vmpackc.low %vm1407, %vm1407
    %vm1511 = vmpackc.low %vm1408, %vm1408
    %vm1512 = vmpackc.low %vm1409, %vm1409
    %v1513 = vsel %vm1410, 65537, 0
    %v1514 = vsel %vm1411, 65537, 0
    %v1515 = vsel %vm1412, 65537, 0
    %v1516 = vsel %vm1413, 65537, 0
    %v1517 = vsel %vm1414, 65537, 0
    %v1518 = vsel %vm1415, 65537, 0
    %v1519 = vsel %vm1416, 65537, 0
    %v1520 = vsel %vm1417, 65537, 0
    %v1521 = vsel %vm1418, 65537, 0
    %v1522 = vsel %vm1419, 65537, 0
    %v1523 = vsel %vm1420, 65537, 0
    %v1524 = vsel %vm1421, 65537, 0
    %v1525 = vsel %vm1422, 65537, 0
    %v1526 = vsel %vm1423, 65537, 0
    %v1527 = vsel %vm1424, 65537, 0
    %v1528 = vsel %vm1425, 65537, 0
    %v1529 = vsel %vm1426, 65537, 0
    %v1530 = vsel %vm1427, 65537, 0
    %v1531 = vsel %vm1428, 65537, 0
    %v1532 = vsel %vm1429, 65537, 0
    %v1533 = vsel %vm1430, 65537, 0
    %v1534 = vsel %vm1431, 65537, 0
    %v1535 = vsel %vm1432, 65537, 0
    %v1536 = vsel %vm1433, 65537, 0
    %v1537 = vsel %vm1434, 65537, 0
    %v1538 = vsel %vm1435, 65537, 0
    %v1539 = vsel %vm1436, 65537, 0
    %v1540 = vsel %vm1437, 65537, 0
    %v1541 = vsel %vm1438, 65537, 0
    %v1542 = vsel %vm1439, 65537, 0
    %v1543 = vsel %vm1440, 65537, 0
    %v1544 = vsel %vm1441, 65537, 0
    %v1545 = vsel %vm1442, 65537, 0
    %v1546 = vsel %vm1443, 65537, 0
    %v1547 = vsel %vm1444, 65537, 0
    %v1548 = vsel %vm1445, 65537, 0
    %v1549 = vsel %vm1446, 65537, 0
    %v1550 = vsel %vm1447, 65537, 0
    %v1551 = vsel %vm1448, 65537, 0
    %v1552 = vsel %vm1449, 65537, 0
    %v1553 = vsel %vm1450, 65537, 0
    %v1554 = vsel %vm1451, 65537, 0
    %v1555 = vsel %vm1452, 65537, 0
    %v1556 = vsel %vm1453, 65537, 0
    %v1557 = vsel %vm1454, 65537, 0
    %v1558 = vsel %vm1455, 65537, 0
    %v1559 = vsel %vm1456, 65537, 0
    %v1560 = vsel %vm1457, 65537, 0
    %v1561 = vsel %vm1458, 65537, 0
    %v1562 = vsel %vm1459, 65537, 0
    %v1563 = vsel %vm1460, 65537, 0
    %v1564 = vsel %vm1461, 65537, 0
    %v1565 = vsel %vm1462, 65537, 0
    %v1566 = vsel %vm1463, 65537, 0
    %v1567 = vsel %vm1464, 65537, 0
    %v1568 = vsel %vm1465, 65537, 0
    %v1569 = vsel %vm1466, 65537, 0
    %v1570 = vsel %vm1467, 65537, 0
    %v1571 = vsel %vm1468, 65537, 0
    %v1572 = vsel %vm1469, 65537, 0
    %v1573 = vsel %vm1470, 65537, 0
    %v1574 = vsel %vm1471, 65537, 0
    %v1575 = vsel %vm1472, 65537, 0
    %v1576 = vsel %vm1473, 65537, 0
    %v1577 = vsel %vm1474, 65537, 0
    %v1578 = vsel %vm1475, 65537, 0
    %v1579 = vsel %vm1476, 65537, 0
    %v1580 = vsel %vm1477, 65537, 0
    %v1581 = vsel %vm1478, 65537, 0
    %v1582 = vsel %vm1479, 65537, 0
    %v1583 = vsel %vm1480, 65537, 0
    %v1584 = vsel %vm1481, 65537, 0
    %v1585 = vsel %vm1482, 65537, 0
    %v1586 = vsel %vm1483, 65537, 0
    %v1587 = vsel %vm1484, 65537, 0
    %v1588 = vsel %vm1485, 65537, 0
    %v1589 = vsel %vm1486, 65537, 0
    %v1590 = vsel %vm1487, 65537, 0
    %v1591 = vsel %vm1488, 65537, 0
    %v1592 = vsel %vm1489, 65537, 0
    %v1593 = vsel %vm1490, 65537, 0
    %v1594 = vsel %vm1491, 65537, 0
    %v1595 = vsel %vm1492, 65537, 0
    %v1596 = vsel %vm1493, 65537, 0
    %v1597 = vsel %vm1494, 65537, 0
    %v1598 = vsel %vm1495, 65537, 0
    %v1599 = vsel %vm1496, 65537, 0
    %v1600 = vsel %vm1497, 65537, 0
    %v1601 = vsel %vm1498, 65537, 0
    %v1602 = vsel %vm1499, 65537, 0
    %v1603 = vsel %vm1500, 65537, 0
    %v1604 = vsel %vm1501, 65537, 0
    %v1605 = vsel %vm1502, 65537, 0
    %v1606 = vsel %vm1503, 65537, 0
    %v1607 = vsel %vm1504, 65537, 0
    %v1608 = vsel %vm1505, 65537, 0
    %v1609 = vsel %vm1506, 65537, 0
    %v1610 = vsel %vm1507, 65537, 0
    %v1611 = vsel %vm1508, 65537, 0
    %v1612 = vsel %vm1509, 65537, 0
    %v1613 = vsel %vm1510, 65537, 0
    %v1614 = vsel %vm1511, 65537, 0
    %v1615 = vsel %vm1512, 65537, 0
    %v1616 = vunpack.c.l.b16 %v1513
    %v1617 = vunpack.c.l.b16 %v1514
    %v1618 = vunpack.c.l.b16 %v1515
    %v1619 = vunpack.c.l.b16 %v1516
    %v1620 = vunpack.c.l.b16 %v1517
    %v1621 = vunpack.c.l.b16 %v1518
    %v1622 = vunpack.c.l.b16 %v1519
    %v1623 = vunpack.c.l.b16 %v1520
    %v1624 = vunpack.c.l.b16 %v1521
    %v1625 = vunpack.c.l.b16 %v1522
    %v1626 = vunpack.c.l.b16 %v1523
    %v1627 = vunpack.c.l.b16 %v1524
    %v1628 = vunpack.c.l.b16 %v1525
    %v1629 = vunpack.c.l.b16 %v1526
    %v1630 = vunpack.c.l.b16 %v1527
    %v1631 = vunpack.c.l.b16 %v1528
    %v1632 = vunpack.c.l.b16 %v1529
    %v1633 = vunpack.c.l.b16 %v1530
    %v1634 = vunpack.c.l.b16 %v1531
    %v1635 = vunpack.c.l.b16 %v1532
    %v1636 = vunpack.c.l.b16 %v1533
    %v1637 = vunpack.c.l.b16 %v1534
    %v1638 = vunpack.c.l.b16 %v1535
    %v1639 = vunpack.c.l.b16 %v1536
    %v1640 = vunpack.c.l.b16 %v1537
    %v1641 = vunpack.c.l.b16 %v1538
    %v1642 = vunpack.c.l.b16 %v1539
    %v1643 = vunpack.c.l.b16 %v1540
    %v1644 = vunpack.c.l.b16 %v1541
    %v1645 = vunpack.c.l.b16 %v1542
    %v1646 = vunpack.c.l.b16 %v1543
    %v1647 = vunpack.c.l.b16 %v1544
    %v1648 = vunpack.c.l.b16 %v1545
    %v1649 = vunpack.c.l.b16 %v1546
    %v1650 = vunpack.c.l.b16 %v1547
    %v1651 = vunpack.c.l.b16 %v1548
    %v1652 = vunpack.c.l.b16 %v1549
    %v1653 = vunpack.c.l.b16 %v1550
    %v1654 = vunpack.c.l.b16 %v1551
    %v1655 = vunpack.c.l.b16 %v1552
    %v1656 = vunpack.c.l.b16 %v1553
    %v1657 = vunpack.c.l.b16 %v1554
    %v1658 = vunpack.c.l.b16 %v1555
    %v1659 = vunpack.c.l.b16 %v1556
    %v1660 = vunpack.c.l.b16 %v1557
    %v1661 = vunpack.c.l.b16 %v1558
    %v1662 = vunpack.c.l.b16 %v1559
    %v1663 = vunpack.c.l.b16 %v1560
    %v1664 = vunpack.c.l.b16 %v1561
    %v1665 = vunpack.c.l.b16 %v1562
    %v1666 = vunpack.c.l.b16 %v1563
    %v1667 = vunpack.c.l.b16 %v1564
    %v1668 = vunpack.c.l.b16 %v1565
    %v1669 = vunpack.c.l.b16 %v1566
    %v1670 = vunpack.c.l.b16 %v1567
    %v1671 = vunpack.c.l.b16 %v1568
    %v1672 = vunpack.c.l.b16 %v1569
    %v1673 = vunpack.c.l.b16 %v1570
    %v1674 = vunpack.c.l.b16 %v1571
    %v1675 = vunpack.c.l.b16 %v1572
    %v1676 = vunpack.c.l.b16 %v1573
    %v1677 = vunpack.c.l.b16 %v1574
    %v1678 = vunpack.c.l.b16 %v1575
    %v1679 = vunpack.c.l.b16 %v1576
    %v1680 = vunpack.c.l.b16 %v1577
    %v1681 = vunpack.c.l.b16 %v1578
    %v1682 = vunpack.c.l.b16 %v1579
    %v1683 = vunpack.c.l.b16 %v1580
    %v1684 = vunpack.c.l.b16 %v1581
    %v1685 = vunpack.c.l.b16 %v1582
    %v1686 = vunpack.c.l.b16 %v1583
    %v1687 = vunpack.c.l.b16 %v1584
    %v1688 = vunpack.c.l.b16 %v1585
    %v1689 = vunpack.c.l.b16 %v1586
    %v1690 = vunpack.c.l.b16 %v1587
    %v1691 = vunpack.c.l.b16 %v1588
    %v1692 = vunpack.c.l.b16 %v1589
    %v1693 = vunpack.c.l.b16 %v1590
    %v1694 = vunpack.c.l.b16 %v1591
    %v1695 = vunpack.c.l.b16 %v1592
    %v1696 = vunpack.c.l.b16 %v1593
    %v1697 = vunpack.c.l.b16 %v1594
    %v1698 = vunpack.c.l.b16 %v1595
    %v1699 = vunpack.c.l.b16 %v1596
    %v1700 = vunpack.c.l.b16 %v1597
    %v1701 = vunpack.c.l.b16 %v1598
    %v1702 = vunpack.c.l.b16 %v1599
    %v1703 = vunpack.c.l.b16 %v1600
    %v1704 = vunpack.c.l.b16 %v1601
    %v1705 = vunpack.c.l.b16 %v1602
    %v1706 = vunpack.c.l.b16 %v1603
    %v1707 = vunpack.c.l.b16 %v1604
    %v1708 = vunpack.c.l.b16 %v1605
    %v1709 = vunpack.c.l.b16 %v1606
    %v1710 = vunpack.c.l.b16 %v1607
    %v1711 = vunpack.c.l.b16 %v1608
    %v1712 = vunpack.c.l.b16 %v1609
    %v1713 = vunpack.c.l.b16 %v1610
    %v1714 = vunpack.c.l.b16 %v1611
    %v1715 = vunpack.c.l.b16 %v1612
    %v1716 = vunpack.c.l.b16 %v1613
    %v1717 = vunpack.c.l.b16 %v1614
    %v1718 = vunpack.c.l.b16 %v1615
    %v1719 = vpack.c.b16 %v1617, %v1616
    %v1720 = vpack.c.b16 %v1619, %v1618
    %v1721 = vpack.c.b16 %v1621, %v1620
    %v1722 = vpack.c.b16 %v1623, %v1622
    %v1723 = vpack.c.b16 %v1625, %v1624
    %v1724 = vpack.c.b16 %v1627, %v1626
    %v1725 = vpack.c.b16 %v1629, %v1628
    %v1726 = vpack.c.b16 %v1631, %v1630
    %v1727 = vpack.c.b16 %v1633, %v1632
    %v1728 = vpack.c.b16 %v1635, %v1634
    %v1729 = vpack.c.b16 %v1637, %v1636
    %v1730 = vpack.c.b16 %v1639, %v1638
    %v1731 = vpack.c.b16 %v1641, %v1640
    %v1732 = vpack.c.b16 %v1643, %v1642
    %v1733 = vpack.c.b16 %v1645, %v1644
    %v1734 = vpack.c.b16 %v1647, %v1646
    %v1735 = vpack.c.b16 %v1649, %v1648
    %v1736 = vpack.c.b16 %v1651, %v1650
    %v1737 = vpack.c.b16 %v1653, %v1652
    %v1738 = vpack.c.b16 %v1655, %v1654
    %v1739 = vpack.c.b16 %v1657, %v1656
    %v1740 = vpack.c.b16 %v1659, %v1658
    %v1741 = vpack.c.b16 %v1661, %v1660
    %v1742 = vpack.c.b16 %v1663, %v1662
    %v1743 = vpack.c.b16 %v1665, %v1664
    %v1744 = vpack.c.b16 %v1667, %v1666
    %v1745 = vpack.c.b16 %v1669, %v1668
    %v1746 = vpack.c.b16 %v1671, %v1670
    %v1747 = vpack.c.b16 %v1673, %v1672
    %v1748 = vpack.c.b16 %v1675, %v1674
    %v1749 = vpack.c.b16 %v1677, %v1676
    %v1750 = vpack.c.b16 %v1679, %v1678
    %v1751 = vpack.c.b16 %v1681, %v1680
    %v1752 = vpack.c.b16 %v1683, %v1682
    %v1753 = vpack.c.b16 %v1685, %v1684
    %v1754 = vpack.c.b16 %v1687, %v1686
    %v1755 = vpack.c.b16 %v1689, %v1688
    %v1756 = vpack.c.b16 %v1691, %v1690
    %v1757 = vpack.c.b16 %v1693, %v1692
    %v1758 = vpack.c.b16 %v1695, %v1694
    %v1759 = vpack.c.b16 %v1697, %v1696
    %v1760 = vpack.c.b16 %v1699, %v1698
    %v1761 = vpack.c.b16 %v1701, %v1700
    %v1762 = vpack.c.b16 %v1703, %v1702
    %v1763 = vpack.c.b16 %v1705, %v1704
    %v1764 = vpack.c.b16 %v1707, %v1706
    %v1765 = vpack.c.b16 %v1709, %v1708
    %v1766 = vpack.c.b16 %v1711, %v1710
    %v1767 = vpack.c.b16 %v1713, %v1712
    %v1768 = vpack.c.b16 %v1715, %v1714
    %v1769 = vpack.c.b16 %v1717, %v1716
    %v1770 = vpack.c.b16 %v1718, %v1718
    %vm1771 = vcmp.ne.s16.totalorder %v1719, 0
    %vm1772 = vcmp.ne.s16.totalorder %v1720, 0
    %vm1773 = vcmp.ne.s16.totalorder %v1721, 0
    %vm1774 = vcmp.ne.s16.totalorder %v1722, 0
    %vm1775 = vcmp.ne.s16.totalorder %v1723, 0
    %vm1776 = vcmp.ne.s16.totalorder %v1724, 0
    %vm1777 = vcmp.ne.s16.totalorder %v1725, 0
    %vm1778 = vcmp.ne.s16.totalorder %v1726, 0
    %vm1779 = vcmp.ne.s16.totalorder %v1727, 0
    %vm1780 = vcmp.ne.s16.totalorder %v1728, 0
    %vm1781 = vcmp.ne.s16.totalorder %v1729, 0
    %vm1782 = vcmp.ne.s16.totalorder %v1730, 0
    %vm1783 = vcmp.ne.s16.totalorder %v1731, 0
    %vm1784 = vcmp.ne.s16.totalorder %v1732, 0
    %vm1785 = vcmp.ne.s16.totalorder %v1733, 0
    %vm1786 = vcmp.ne.s16.totalorder %v1734, 0
    %vm1787 = vcmp.ne.s16.totalorder %v1735, 0
    %vm1788 = vcmp.ne.s16.totalorder %v1736, 0
    %vm1789 = vcmp.ne.s16.totalorder %v1737, 0
    %vm1790 = vcmp.ne.s16.totalorder %v1738, 0
    %vm1791 = vcmp.ne.s16.totalorder %v1739, 0
    %vm1792 = vcmp.ne.s16.totalorder %v1740, 0
    %vm1793 = vcmp.ne.s16.totalorder %v1741, 0
    %vm1794 = vcmp.ne.s16.totalorder %v1742, 0
    %vm1795 = vcmp.ne.s16.totalorder %v1743, 0
    %vm1796 = vcmp.ne.s16.totalorder %v1744, 0
    %vm1797 = vcmp.ne.s16.totalorder %v1745, 0
    %vm1798 = vcmp.ne.s16.totalorder %v1746, 0
    %vm1799 = vcmp.ne.s16.totalorder %v1747, 0
    %vm1800 = vcmp.ne.s16.totalorder %v1748, 0
    %vm1801 = vcmp.ne.s16.totalorder %v1749, 0
    %vm1802 = vcmp.ne.s16.totalorder %v1750, 0
    %vm1803 = vcmp.ne.s16.totalorder %v1751, 0
    %vm1804 = vcmp.ne.s16.totalorder %v1752, 0
    %vm1805 = vcmp.ne.s16.totalorder %v1753, 0
    %vm1806 = vcmp.ne.s16.totalorder %v1754, 0
    %vm1807 = vcmp.ne.s16.totalorder %v1755, 0
    %vm1808 = vcmp.ne.s16.totalorder %v1756, 0
    %vm1809 = vcmp.ne.s16.totalorder %v1757, 0
    %vm1810 = vcmp.ne.s16.totalorder %v1758, 0
    %vm1811 = vcmp.ne.s16.totalorder %v1759, 0
    %vm1812 = vcmp.ne.s16.totalorder %v1760, 0
    %vm1813 = vcmp.ne.s16.totalorder %v1761, 0
    %vm1814 = vcmp.ne.s16.totalorder %v1762, 0
    %vm1815 = vcmp.ne.s16.totalorder %v1763, 0
    %vm1816 = vcmp.ne.s16.totalorder %v1764, 0
    %vm1817 = vcmp.ne.s16.totalorder %v1765, 0
    %vm1818 = vcmp.ne.s16.totalorder %v1766, 0
    %vm1819 = vcmp.ne.s16.totalorder %v1767, 0
    %vm1820 = vcmp.ne.s16.totalorder %v1768, 0
    %vm1821 = vcmp.ne.s16.totalorder %v1769, 0
    %vm1822 = vcmp.ne.s16.totalorder %v1770, 0
    %v1823 = vsel %vm1771, %v682, 0
    %v1824 = vsel %vm1771, %v683, 0
    %v1825 = vsel %vm1771, %v684, 0
    %v1826 = vsel %vm1771, %v685, 0
    %v1827 = vsel %vm1771, %v686, 0
    %v1828 = vsel %vm1771, %v687, 0
    %v1829 = vsel %vm1772, %v688, 0
    %v1830 = vsel %vm1772, %v689, 0
    %v1831 = vsel %vm1772, %v690, 0
    %v1832 = vsel %vm1772, %v691, 0
    %v1833 = vsel %vm1772, %v692, 0
    %v1834 = vsel %vm1772, %v693, 0
    %v1835 = vsel %vm1773, %v694, 0
    %v1836 = vsel %vm1773, %v695, 0
    %v1837 = vsel %vm1773, %v696, 0
    %v1838 = vsel %vm1773, %v697, 0
    %v1839 = vsel %vm1773, %v698, 0
    %v1840 = vsel %vm1773, %v699, 0
    %v1841 = vsel %vm1774, %v700, 0
    %v1842 = vsel %vm1774, %v701, 0
    %v1843 = vsel %vm1774, %v702, 0
    %v1844 = vsel %vm1774, %v703, 0
    %v1845 = vsel %vm1774, %v704, 0
    %v1846 = vsel %vm1774, %v705, 0
    %v1847 = vsel %vm1775, %v706, 0
    %v1848 = vsel %vm1775, %v707, 0
    %v1849 = vsel %vm1775, %v708, 0
    %v1850 = vsel %vm1775, %v709, 0
    %v1851 = vsel %vm1775, %v710, 0
    %v1852 = vsel %vm1775, %v711, 0
    %v1853 = vsel %vm1776, %v712, 0
    %v1854 = vsel %vm1776, %v713, 0
    %v1855 = vsel %vm1776, %v714, 0
    %v1856 = vsel %vm1776, %v715, 0
    %v1857 = vsel %vm1776, %v716, 0
    %v1858 = vsel %vm1776, %v717, 0
    %v1859 = vsel %vm1777, %v718, 0
    %v1860 = vsel %vm1777, %v719, 0
    %v1861 = vsel %vm1777, %v720, 0
    %v1862 = vsel %vm1777, %v721, 0
    %v1863 = vsel %vm1777, %v722, 0
    %v1864 = vsel %vm1777, %v723, 0
    %v1865 = vsel %vm1778, %v724, 0
    %v1866 = vsel %vm1778, %v725, 0
    %v1867 = vsel %vm1778, %v726, 0
    %v1868 = vsel %vm1778, %v727, 0
    %v1869 = vsel %vm1778, %v728, 0
    %v1870 = vsel %vm1778, %v729, 0
    %v1871 = vsel %vm1779, %v730, 0
    %v1872 = vsel %vm1779, %v731, 0
    %v1873 = vsel %vm1779, %v732, 0
    %v1874 = vsel %vm1779, %v733, 0
    %v1875 = vsel %vm1779, %v734, 0
    %v1876 = vsel %vm1779, %v735, 0
    %v1877 = vsel %vm1780, %v736, 0
    %v1878 = vsel %vm1780, %v737, 0
    %v1879 = vsel %vm1780, %v738, 0
    %v1880 = vsel %vm1780, %v739, 0
    %v1881 = vsel %vm1780, %v740, 0
    %v1882 = vsel %vm1780, %v741, 0
    %v1883 = vsel %vm1781, %v742, 0
    %v1884 = vsel %vm1781, %v743, 0
    %v1885 = vsel %vm1781, %v744, 0
    %v1886 = vsel %vm1781, %v745, 0
    %v1887 = vsel %vm1781, %v746, 0
    %v1888 = vsel %vm1781, %v747, 0
    %v1889 = vsel %vm1782, %v748, 0
    %v1890 = vsel %vm1782, %v749, 0
    %v1891 = vsel %vm1782, %v750, 0
    %v1892 = vsel %vm1782, %v751, 0
    %v1893 = vsel %vm1782, %v752, 0
    %v1894 = vsel %vm1782, %v753, 0
    %v1895 = vsel %vm1783, %v754, 0
    %v1896 = vsel %vm1783, %v755, 0
    %v1897 = vsel %vm1783, %v756, 0
    %v1898 = vsel %vm1783, %v757, 0
    %v1899 = vsel %vm1783, %v758, 0
    %v1900 = vsel %vm1783, %v759, 0
    %v1901 = vsel %vm1784, %v760, 0
    %v1902 = vsel %vm1784, %v761, 0
    %v1903 = vsel %vm1784, %v762, 0
    %v1904 = vsel %vm1784, %v763, 0
    %v1905 = vsel %vm1784, %v764, 0
    %v1906 = vsel %vm1784, %v765, 0
    %v1907 = vsel %vm1785, %v766, 0
    %v1908 = vsel %vm1785, %v767, 0
    %v1909 = vsel %vm1785, %v768, 0
    %v1910 = vsel %vm1785, %v769, 0
    %v1911 = vsel %vm1785, %v770, 0
    %v1912 = vsel %vm1785, %v771, 0
    %v1913 = vsel %vm1786, %v772, 0
    %v1914 = vsel %vm1786, %v773, 0
    %v1915 = vsel %vm1786, %v774, 0
    %v1916 = vsel %vm1786, %v775, 0
    %v1917 = vsel %vm1786, %v776, 0
    %v1918 = vsel %vm1786, %v777, 0
    %v1919 = vsel %vm1787, %v778, 0
    %v1920 = vsel %vm1787, %v779, 0
    %v1921 = vsel %vm1787, %v780, 0
    %v1922 = vsel %vm1787, %v781, 0
    %v1923 = vsel %vm1787, %v782, 0
    %v1924 = vsel %vm1787, %v783, 0
    %v1925 = vsel %vm1788, %v784, 0
    %v1926 = vsel %vm1788, %v785, 0
    %v1927 = vsel %vm1788, %v786, 0
    %v1928 = vsel %vm1788, %v787, 0
    %v1929 = vsel %vm1788, %v788, 0
    %v1930 = vsel %vm1788, %v789, 0
    %v1931 = vsel %vm1789, %v790, 0
    %v1932 = vsel %vm1789, %v791, 0
    %v1933 = vsel %vm1789, %v792, 0
    %v1934 = vsel %vm1789, %v793, 0
    %v1935 = vsel %vm1789, %v794, 0
    %v1936 = vsel %vm1789, %v795, 0
    %v1937 = vsel %vm1790, %v796, 0
    %v1938 = vsel %vm1790, %v797, 0
    %v1939 = vsel %vm1790, %v798, 0
    %v1940 = vsel %vm1790, %v799, 0
    %v1941 = vsel %vm1790, %v800, 0
    %v1942 = vsel %vm1790, %v801, 0
    %v1943 = vsel %vm1791, %v802, 0
    %v1944 = vsel %vm1791, %v803, 0
    %v1945 = vsel %vm1791, %v804, 0
    %v1946 = vsel %vm1791, %v805, 0
    %v1947 = vsel %vm1791, %v806, 0
    %v1948 = vsel %vm1791, %v807, 0
    %v1949 = vsel %vm1792, %v808, 0
    %v1950 = vsel %vm1792, %v809, 0
    %v1951 = vsel %vm1792, %v810, 0
    %v1952 = vsel %vm1792, %v811, 0
    %v1953 = vsel %vm1792, %v812, 0
    %v1954 = vsel %vm1792, %v813, 0
    %v1955 = vsel %vm1793, %v814, 0
    %v1956 = vsel %vm1793, %v815, 0
    %v1957 = vsel %vm1793, %v816, 0
    %v1958 = vsel %vm1793, %v817, 0
    %v1959 = vsel %vm1793, %v818, 0
    %v1960 = vsel %vm1793, %v819, 0
    %v1961 = vsel %vm1794, %v820, 0
    %v1962 = vsel %vm1794, %v821, 0
    %v1963 = vsel %vm1794, %v822, 0
    %v1964 = vsel %vm1794, %v823, 0
    %v1965 = vsel %vm1794, %v824, 0
    %v1966 = vsel %vm1794, %v825, 0
    %v1967 = vsel %vm1795, %v826, 0
    %v1968 = vsel %vm1795, %v827, 0
    %v1969 = vsel %vm1795, %v828, 0
    %v1970 = vsel %vm1795, %v829, 0
    %v1971 = vsel %vm1795, %v830, 0
    %v1972 = vsel %vm1795, %v831, 0
    %v1973 = vsel %vm1796, %v832, 0
    %v1974 = vsel %vm1796, %v833, 0
    %v1975 = vsel %vm1796, %v834, 0
    %v1976 = vsel %vm1796, %v835, 0
    %v1977 = vsel %vm1796, %v836, 0
    %v1978 = vsel %vm1796, %v837, 0
    %v1979 = vsel %vm1797, %v838, 0
    %v1980 = vsel %vm1797, %v839, 0
    %v1981 = vsel %vm1797, %v840, 0
    %v1982 = vsel %vm1797, %v841, 0
    %v1983 = vsel %vm1797, %v842, 0
    %v1984 = vsel %vm1797, %v843, 0
    %v1985 = vsel %vm1798, %v844, 0
    %v1986 = vsel %vm1798, %v845, 0
    %v1987 = vsel %vm1798, %v846, 0
    %v1988 = vsel %vm1798, %v847, 0
    %v1989 = vsel %vm1798, %v848, 0
    %v1990 = vsel %vm1798, %v849, 0
    %v1991 = vsel %vm1799, %v850, 0
    %v1992 = vsel %vm1799, %v851, 0
    %v1993 = vsel %vm1799, %v852, 0
    %v1994 = vsel %vm1799, %v853, 0
    %v1995 = vsel %vm1799, %v854, 0
    %v1996 = vsel %vm1799, %v855, 0
    %v1997 = vsel %vm1800, %v856, 0
    %v1998 = vsel %vm1800, %v857, 0
    %v1999 = vsel %vm1800, %v858, 0
    %v2000 = vsel %vm1800, %v859, 0
    %v2001 = vsel %vm1800, %v860, 0
    %v2002 = vsel %vm1800, %v861, 0
    %v2003 = vsel %vm1801, %v862, 0
    %v2004 = vsel %vm1801, %v863, 0
    %v2005 = vsel %vm1801, %v864, 0
    %v2006 = vsel %vm1801, %v865, 0
    %v2007 = vsel %vm1801, %v866, 0
    %v2008 = vsel %vm1801, %v867, 0
    %v2009 = vsel %vm1802, %v868, 0
    %v2010 = vsel %vm1802, %v869, 0
    %v2011 = vsel %vm1802, %v870, 0
    %v2012 = vsel %vm1802, %v871, 0
    %v2013 = vsel %vm1802, %v872, 0
    %v2014 = vsel %vm1802, %v873, 0
    %v2015 = vsel %vm1803, %v874, 0
    %v2016 = vsel %vm1803, %v875, 0
    %v2017 = vsel %vm1803, %v876, 0
    %v2018 = vsel %vm1803, %v877, 0
    %v2019 = vsel %vm1803, %v878, 0
    %v2020 = vsel %vm1803, %v879, 0
    %v2021 = vsel %vm1804, %v880, 0
    %v2022 = vsel %vm1804, %v881, 0
    %v2023 = vsel %vm1804, %v882, 0
    %v2024 = vsel %vm1804, %v883, 0
    %v2025 = vsel %vm1804, %v884, 0
    %v2026 = vsel %vm1804, %v885, 0
    %v2027 = vsel %vm1805, %v886, 0
    %v2028 = vsel %vm1805, %v887, 0
    %v2029 = vsel %vm1805, %v888, 0
    %v2030 = vsel %vm1805, %v889, 0
    %v2031 = vsel %vm1805, %v890, 0
    %v2032 = vsel %vm1805, %v891, 0
    %v2033 = vsel %vm1806, %v892, 0
    %v2034 = vsel %vm1806, %v893, 0
    %v2035 = vsel %vm1806, %v894, 0
    %v2036 = vsel %vm1806, %v895, 0
    %v2037 = vsel %vm1806, %v896, 0
    %v2038 = vsel %vm1806, %v897, 0
    %v2039 = vsel %vm1807, %v898, 0
    %v2040 = vsel %vm1807, %v899, 0
    %v2041 = vsel %vm1807, %v900, 0
    %v2042 = vsel %vm1807, %v901, 0
    %v2043 = vsel %vm1807, %v902, 0
    %v2044 = vsel %vm1807, %v903, 0
    %v2045 = vsel %vm1808, %v904, 0
    %v2046 = vsel %vm1808, %v905, 0
    %v2047 = vsel %vm1808, %v906, 0
    %v2048 = vsel %vm1808, %v907, 0
    %v2049 = vsel %vm1808, %v908, 0
    %v2050 = vsel %vm1808, %v909, 0
    %v2051 = vsel %vm1809, %v910, 0
    %v2052 = vsel %vm1809, %v911, 0
    %v2053 = vsel %vm1809, %v912, 0
    %v2054 = vsel %vm1809, %v913, 0
    %v2055 = vsel %vm1809, %v914, 0
    %v2056 = vsel %vm1809, %v915, 0
    %v2057 = vsel %vm1810, %v916, 0
    %v2058 = vsel %vm1810, %v917, 0
    %v2059 = vsel %vm1810, %v918, 0
    %v2060 = vsel %vm1810, %v919, 0
    %v2061 = vsel %vm1810, %v920, 0
    %v2062 = vsel %vm1810, %v921, 0
    %v2063 = vsel %vm1811, %v922, 0
    %v2064 = vsel %vm1811, %v923, 0
    %v2065 = vsel %vm1811, %v924, 0
    %v2066 = vsel %vm1811, %v925, 0
    %v2067 = vsel %vm1811, %v926, 0
    %v2068 = vsel %vm1811, %v927, 0
    %v2069 = vsel %vm1812, %v928, 0
    %v2070 = vsel %vm1812, %v929, 0
    %v2071 = vsel %vm1812, %v930, 0
    %v2072 = vsel %vm1812, %v931, 0
    %v2073 = vsel %vm1812, %v932, 0
    %v2074 = vsel %vm1812, %v933, 0
    %v2075 = vsel %vm1813, %v934, 0
    %v2076 = vsel %vm1813, %v935, 0
    %v2077 = vsel %vm1813, %v936, 0
    %v2078 = vsel %vm1813, %v937, 0
    %v2079 = vsel %vm1813, %v938, 0
    %v2080 = vsel %vm1813, %v939, 0
    %v2081 = vsel %vm1814, %v940, 0
    %v2082 = vsel %vm1814, %v941, 0
    %v2083 = vsel %vm1814, %v942, 0
    %v2084 = vsel %vm1814, %v943, 0
    %v2085 = vsel %vm1814, %v944, 0
    %v2086 = vsel %vm1814, %v945, 0
    %v2087 = vsel %vm1815, %v946, 0
    %v2088 = vsel %vm1815, %v947, 0
    %v2089 = vsel %vm1815, %v948, 0
    %v2090 = vsel %vm1815, %v949, 0
    %v2091 = vsel %vm1815, %v950, 0
    %v2092 = vsel %vm1815, %v951, 0
    %v2093 = vsel %vm1816, %v952, 0
    %v2094 = vsel %vm1816, %v953, 0
    %v2095 = vsel %vm1816, %v954, 0
    %v2096 = vsel %vm1816, %v955, 0
    %v2097 = vsel %vm1816, %v956, 0
    %v2098 = vsel %vm1816, %v957, 0
    %v2099 = vsel %vm1817, %v958, 0
    %v2100 = vsel %vm1817, %v959, 0
    %v2101 = vsel %vm1817, %v960, 0
    %v2102 = vsel %vm1817, %v961, 0
    %v2103 = vsel %vm1817, %v962, 0
    %v2104 = vsel %vm1817, %v963, 0
    %v2105 = vsel %vm1818, %v964, 0
    %v2106 = vsel %vm1818, %v965, 0
    %v2107 = vsel %vm1818, %v966, 0
    %v2108 = vsel %vm1818, %v967, 0
    %v2109 = vsel %vm1818, %v968, 0
    %v2110 = vsel %vm1818, %v969, 0
    %v2111 = vsel %vm1819, %v970, 0
    %v2112 = vsel %vm1819, %v971, 0
    %v2113 = vsel %vm1819, %v972, 0
    %v2114 = vsel %vm1819, %v973, 0
    %v2115 = vsel %vm1819, %v974, 0
    %v2116 = vsel %vm1819, %v975, 0
    %v2117 = vsel %vm1820, %v976, 0
    %v2118 = vsel %vm1820, %v977, 0
    %v2119 = vsel %vm1820, %v978, 0
    %v2120 = vsel %vm1820, %v979, 0
    %v2121 = vsel %vm1820, %v980, 0
    %v2122 = vsel %vm1820, %v981, 0
    %v2123 = vsel %vm1821, %v982, 0
    %v2124 = vsel %vm1821, %v983, 0
    %v2125 = vsel %vm1821, %v984, 0
    %v2126 = vsel %vm1821, %v985, 0
    %v2127 = vsel %vm1821, %v986, 0
    %v2128 = vsel %vm1821, %v987, 0
    %v2129 = vsel %vm1822, %v988, 0
    %v2130 = vsel %vm1822, %v989, 0
    %v2131 = vsel %vm1822, %v990, 0
    %v2132 = vsel %vm1822, %v991, 0
    %v2133 = vsel %vm1822, %v992, 0
    %v2134 = vsel %vm1822, %v993, 0
    %v2135 = vld [vmem:[#allocation6] sm:$0xff]
    %v2136 = vld [vmem:[#allocation6 + $0x8] sm:$0xff]
    %v2137 = vld [vmem:[#allocation6 + $0x10] sm:$0xff]
    %v2138 = vld [vmem:[#allocation6 + $0x18] sm:$0xf]
    %s2139 = sld [smem:[#allocation2]]
    %v2140 = vstv %s2139
    %v2145 = vunpack.c.l.b16 %v2135
    %v2146 = vunpack.c.h.b16 %v2135
    %v2147 = vunpack.c.l.b16 %v2136
    %v2148 = vunpack.c.h.b16 %v2136
    %v2149 = vunpack.c.l.b16 %v2137
    %v2150 = vunpack.c.h.b16 %v2137
    %v2151 = vunpack.c.l.b16 %v2138
    %v2152 = vpack.c.b16 %v2145, %v2145
    %v2153 = vpack.c.b16 %v2146, %v2146
    %v2154 = vpack.c.b16 %v2147, %v2147
    %v2155 = vpack.c.b16 %v2148, %v2148
    %v2156 = vpack.c.b16 %v2149, %v2149
    %v2157 = vpack.c.b16 %v2150, %v2150
    %v2158 = vpack.c.b16 %v2151, %v2151
    %vm2165 = vcmask 457728
    %v2167 = vsel %vm2165, %v2158, 0
    %vm2169 = vcmask 1043456
    %v2171 = vsel %vm2169, %v2129, 0
    %v2174 = vsel %vm2169, %v2130, 0
    %v2177 = vsel %vm2169, %v2131, 0
    %v2180 = vsel %vm2169, %v2132, 0
    %v2183 = vsel %vm2169, %v2133, 0
    %v2186 = vsel %vm2169, %v2134, 0
    %2188 = vmatprep.subr.bf16.mxu0 %v1866
    %2189 = vmatpush1.bf16.msra.mxu0 %v1865
    %2190 = vmatprep.subr.bf16.mxu0 %v1860
    %2191 = vmatpush1.bf16.msra.mxu0 %v1859
    %2192 = vmatprep.subr.bf16.mxu0 %v1854
    %2193 = vmatpush1.bf16.msra.mxu0 %v1853
    %2194 = vmatprep.subr.bf16.mxu0 %v1848
    %2195 = vmatpush1.bf16.msra.mxu0 %v1847
    %2196 = vmatprep.subr.bf16.mxu0 %v1842
    %2197 = vmatpush1.bf16.msra.mxu0 %v1841
    %2198 = vmatprep.subr.bf16.mxu0 %v1836
    %2199 = vmatpush1.bf16.msra.mxu0 %v1835
    %2200 = vmatprep.subr.bf16.mxu0 %v1830
    %2201 = vmatpush1.bf16.msra.mxu0 %v1829
    %2202 = vmatprep.subr.bf16.mxu0 %v1824
    %2203 = vmatpush1.bf16.msra.mxu0 %v1823
    %2204 = vmatprep.subr.bf16.mxu0 %v1914
    %2205 = vmatpush2.bf16.msra.mxu0 %v1913
    %2206 = vmatprep.subr.bf16.mxu0 %v1908
    %2207 = vmatpush2.bf16.msra.mxu0 %v1907
    %2208 = vmatprep.subr.bf16.mxu0 %v1902
    %2209 = vmatpush2.bf16.msra.mxu0 %v1901
    %2210 = vmatprep.subr.bf16.mxu0 %v1896
    %2211 = vmatpush2.bf16.msra.mxu0 %v1895
    %2212 = vmatprep.subr.bf16.mxu0 %v1890
    %2213 = vmatpush2.bf16.msra.mxu0 %v1889
    %2214 = vmatprep.subr.bf16.mxu0 %v1884
    %2215 = vmatpush2.bf16.msra.mxu0 %v1883
    %2216 = vmatprep.subr.bf16.mxu0 %v1878
    %2217 = vmatpush2.bf16.msra.mxu0 %v1877
    %2218 = vmatprep.subr.bf16.mxu0 %v1872
    %2219 = vmatpush2.bf16.msra.mxu0 %v1871
    %2220 = vmatprep.mubr.bf16.mxu0 %v2153
    %2221 = vmatmul.mubr.bf16.gmra.mxu0 %v2152
    %v2222 = vpop.f32.mrf.mxu0
    %v2223 = vadd.f32 %v2140, %v2222
    %v2224 = vpop.f32.mrf.mxu0
    %v2225 = vadd.f32 %v2140, %v2224
    %v2226 = vpop.f32.mrf.mxu0
    %v2227 = vpop.f32.mrf.mxu0
    %2228 = vdwg.mxu0
    %2229 = vmatprep.subr.bf16.mxu0 %v1962
    %2230 = vmatpush1.bf16.msra.mxu0 %v1961
    %2231 = vmatprep.subr.bf16.mxu0 %v1956
    %2232 = vmatpush1.bf16.msra.mxu0 %v1955
    %2233 = vmatprep.subr.bf16.mxu0 %v1950
    %2234 = vmatpush1.bf16.msra.mxu0 %v1949
    %2235 = vmatprep.subr.bf16.mxu0 %v1944
    %2236 = vmatpush1.bf16.msra.mxu0 %v1943
    %2237 = vmatprep.subr.bf16.mxu0 %v1938
    %2238 = vmatpush1.bf16.msra.mxu0 %v1937
    %2239 = vmatprep.subr.bf16.mxu0 %v1932
    %2240 = vmatpush1.bf16.msra.mxu0 %v1931
    %2241 = vmatprep.subr.bf16.mxu0 %v1926
    %2242 = vmatpush1.bf16.msra.mxu0 %v1925
    %2243 = vmatprep.subr.bf16.mxu0 %v1920
    %2244 = vmatpush1.bf16.msra.mxu0 %v1919
    %2245 = vmatprep.subr.bf16.mxu0 %v2010
    %2246 = vmatpush2.bf16.msra.mxu0 %v2009
    %2247 = vmatprep.subr.bf16.mxu0 %v2004
    %2248 = vmatpush2.bf16.msra.mxu0 %v2003
    %2249 = vmatprep.subr.bf16.mxu0 %v1998
    %2250 = vmatpush2.bf16.msra.mxu0 %v1997
    %2251 = vmatprep.subr.bf16.mxu0 %v1992
    %2252 = vmatpush2.bf16.msra.mxu0 %v1991
    %2253 = vmatprep.subr.bf16.mxu0 %v1986
    %2254 = vmatpush2.bf16.msra.mxu0 %v1985
    %2255 = vmatprep.subr.bf16.mxu0 %v1980
    %2256 = vmatpush2.bf16.msra.mxu0 %v1979
    %2257 = vmatprep.subr.bf16.mxu0 %v1974
    %2258 = vmatpush2.bf16.msra.mxu0 %v1973
    %2259 = vmatprep.subr.bf16.mxu0 %v1968
    %2260 = vmatpush2.bf16.msra.mxu0 %v1967
    %2261 = vmatprep.mubr.bf16.mxu0 %v2155
    %2262 = vmatmul.mubr.bf16.gmra.mxu0 %v2154
    %v2263 = vpop.f32.mrf.mxu0
    %v2264 = vadd.f32 %v2223, %v2263
    %v2265 = vpop.f32.mrf.mxu0
    %v2266 = vadd.f32 %v2225, %v2265
    %v2267 = vpop.f32.mrf.mxu0
    %v2268 = vpop.f32.mrf.mxu0
    %2269 = vdwg.mxu0
    %2270 = vmatprep.subr.bf16.mxu0 %v2058
    %2271 = vmatpush1.bf16.msra.mxu0 %v2057
    %2272 = vmatprep.subr.bf16.mxu0 %v2052
    %2273 = vmatpush1.bf16.msra.mxu0 %v2051
    %2274 = vmatprep.subr.bf16.mxu0 %v2046
    %2275 = vmatpush1.bf16.msra.mxu0 %v2045
    %2276 = vmatprep.subr.bf16.mxu0 %v2040
    %2277 = vmatpush1.bf16.msra.mxu0 %v2039
    %2278 = vmatprep.subr.bf16.mxu0 %v2034
    %2279 = vmatpush1.bf16.msra.mxu0 %v2033
    %2280 = vmatprep.subr.bf16.mxu0 %v2028
    %2281 = vmatpush1.bf16.msra.mxu0 %v2027
    %2282 = vmatprep.subr.bf16.mxu0 %v2022
    %2283 = vmatpush1.bf16.msra.mxu0 %v2021
    %2284 = vmatprep.subr.bf16.mxu0 %v2016
    %2285 = vmatpush1.bf16.msra.mxu0 %v2015
    %2286 = vmatprep.subr.bf16.mxu0 %v2106
    %2287 = vmatpush2.bf16.msra.mxu0 %v2105
    %2288 = vmatprep.subr.bf16.mxu0 %v2100
    %2289 = vmatpush2.bf16.msra.mxu0 %v2099
    %2290 = vmatprep.subr.bf16.mxu0 %v2094
    %2291 = vmatpush2.bf16.msra.mxu0 %v2093
    %2292 = vmatprep.subr.bf16.mxu0 %v2088
    %2293 = vmatpush2.bf16.msra.mxu0 %v2087
    %2294 = vmatprep.subr.bf16.mxu0 %v2082
    %2295 = vmatpush2.bf16.msra.mxu0 %v2081
    %2296 = vmatprep.subr.bf16.mxu0 %v2076
    %2297 = vmatpush2.bf16.msra.mxu0 %v2075
    %2298 = vmatprep.subr.bf16.mxu0 %v2070
    %2299 = vmatpush2.bf16.msra.mxu0 %v2069
    %2300 = vmatprep.subr.bf16.mxu0 %v2064
    %2301 = vmatpush2.bf16.msra.mxu0 %v2063
    %2302 = vmatprep.mubr.bf16.mxu0 %v2157
    %2303 = vmatmul.mubr.bf16.gmra.mxu0 %v2156
    %v2304 = vpop.f32.mrf.mxu0
    %v2305 = vadd.f32 %v2264, %v2304
    %v2306 = vpop.f32.mrf.mxu0
    %v2307 = vadd.f32 %v2266, %v2306
    %v2308 = vpop.f32.mrf.mxu0
    %v2309 = vpop.f32.mrf.mxu0
    %2310 = vdwg.mxu0
    %2311 = vmatprep.subr.bf16.mxu0 0
    %2312 = vmatpush1.bf16.msra.mxu0 0
    %2313 = vmatprep.subr.bf16.mxu0 0
    %2314 = vmatpush1.bf16.msra.mxu0 0
    %2315 = vmatprep.subr.bf16.mxu0 0
    %2316 = vmatpush1.bf16.msra.mxu0 0
    %2317 = vmatprep.subr.bf16.mxu0 0
    %2318 = vmatpush1.bf16.msra.mxu0 0
    %2319 = vmatprep.subr.bf16.mxu0 %v2174
    %2320 = vmatpush1.bf16.msra.mxu0 %v2171
    %2321 = vmatprep.subr.bf16.mxu0 %v2124
    %2322 = vmatpush1.bf16.msra.mxu0 %v2123
    %2323 = vmatprep.subr.bf16.mxu0 %v2118
    %2324 = vmatpush1.bf16.msra.mxu0 %v2117
    %2325 = vmatprep.subr.bf16.mxu0 %v2112
    %2326 = vmatpush1.bf16.msra.mxu0 %v2111
    %2327 = vmatprep.subr.bf16.mxu0 0
    %2328 = vmatpush2.bf16.msra.mxu0 0
    %2329 = vmatprep.subr.bf16.mxu0 0
    %2330 = vmatpush2.bf16.msra.mxu0 0
    %2331 = vmatprep.subr.bf16.mxu0 0
    %2332 = vmatpush2.bf16.msra.mxu0 0
    %2333 = vmatprep.subr.bf16.mxu0 0
    %2334 = vmatpush2.bf16.msra.mxu0 0
    %2335 = vmatprep.subr.bf16.mxu0 0
    %2336 = vmatpush2.bf16.msra.mxu0 0
    %2337 = vmatprep.subr.bf16.mxu0 0
    %2338 = vmatpush2.bf16.msra.mxu0 0
    %2339 = vmatprep.subr.bf16.mxu0 0
    %2340 = vmatpush2.bf16.msra.mxu0 0
    %2341 = vmatprep.subr.bf16.mxu0 0
    %2342 = vmatpush2.bf16.msra.mxu0 0
    %2343 = vmatprep.mubr.bf16.mxu0 0
    %2344 = vmatmul.mubr.bf16.gmra.mxu0 %v2167
    %v2345 = vpop.f32.mrf.mxu0
    %v2346 = vadd.f32 %v2305, %v2345
    %v2347 = vpop.f32.mrf.mxu0
    %v2348 = vadd.f32 %v2307, %v2347
    %v2349 = vpop.f32.mrf.mxu0
    %v2350 = vpop.f32.mrf.mxu0
    %2351 = vdwg.mxu0
    %2352 = vmatprep.subr.bf16.mxu0 %v1868
    %2353 = vmatpush1.bf16.msra.mxu0 %v1867
    %2354 = vmatprep.subr.bf16.mxu0 %v1862
    %2355 = vmatpush1.bf16.msra.mxu0 %v1861
    %2356 = vmatprep.subr.bf16.mxu0 %v1856
    %2357 = vmatpush1.bf16.msra.mxu0 %v1855
    %2358 = vmatprep.subr.bf16.mxu0 %v1850
    %2359 = vmatpush1.bf16.msra.mxu0 %v1849
    %2360 = vmatprep.subr.bf16.mxu0 %v1844
    %2361 = vmatpush1.bf16.msra.mxu0 %v1843
    %2362 = vmatprep.subr.bf16.mxu0 %v1838
    %2363 = vmatpush1.bf16.msra.mxu0 %v1837
    %2364 = vmatprep.subr.bf16.mxu0 %v1832
    %2365 = vmatpush1.bf16.msra.mxu0 %v1831
    %2366 = vmatprep.subr.bf16.mxu0 %v1826
    %2367 = vmatpush1.bf16.msra.mxu0 %v1825
    %2368 = vmatprep.subr.bf16.mxu0 %v1916
    %2369 = vmatpush2.bf16.msra.mxu0 %v1915
    %2370 = vmatprep.subr.bf16.mxu0 %v1910
    %2371 = vmatpush2.bf16.msra.mxu0 %v1909
    %2372 = vmatprep.subr.bf16.mxu0 %v1904
    %2373 = vmatpush2.bf16.msra.mxu0 %v1903
    %2374 = vmatprep.subr.bf16.mxu0 %v1898
    %2375 = vmatpush2.bf16.msra.mxu0 %v1897
    %2376 = vmatprep.subr.bf16.mxu0 %v1892
    %2377 = vmatpush2.bf16.msra.mxu0 %v1891
    %2378 = vmatprep.subr.bf16.mxu0 %v1886
    %2379 = vmatpush2.bf16.msra.mxu0 %v1885
    %2380 = vmatprep.subr.bf16.mxu0 %v1880
    %2381 = vmatpush2.bf16.msra.mxu0 %v1879
    %2382 = vmatprep.subr.bf16.mxu0 %v1874
    %2383 = vmatpush2.bf16.msra.mxu0 %v1873
    %2384 = vmatprep.mubr.bf16.mxu0 %v2153
    %2385 = vmatmul.mubr.bf16.gmra.mxu0 %v2152
    %v2386 = vpop.f32.mrf.mxu0
    %v2387 = vadd.f32 %v2140, %v2386
    %v2388 = vpop.f32.mrf.mxu0
    %v2389 = vadd.f32 %v2140, %v2388
    %v2390 = vpop.f32.mrf.mxu0
    %v2391 = vpop.f32.mrf.mxu0
    %2392 = vdwg.mxu0
    %2393 = vmatprep.subr.bf16.mxu0 %v1964
    %2394 = vmatpush1.bf16.msra.mxu0 %v1963
    %2395 = vmatprep.subr.bf16.mxu0 %v1958
    %2396 = vmatpush1.bf16.msra.mxu0 %v1957
    %2397 = vmatprep.subr.bf16.mxu0 %v1952
    %2398 = vmatpush1.bf16.msra.mxu0 %v1951
    %2399 = vmatprep.subr.bf16.mxu0 %v1946
    %2400 = vmatpush1.bf16.msra.mxu0 %v1945
    %2401 = vmatprep.subr.bf16.mxu0 %v1940
    %2402 = vmatpush1.bf16.msra.mxu0 %v1939
    %2403 = vmatprep.subr.bf16.mxu0 %v1934
    %2404 = vmatpush1.bf16.msra.mxu0 %v1933
    %2405 = vmatprep.subr.bf16.mxu0 %v1928
    %2406 = vmatpush1.bf16.msra.mxu0 %v1927
    %2407 = vmatprep.subr.bf16.mxu0 %v1922
    %2408 = vmatpush1.bf16.msra.mxu0 %v1921
    %2409 = vmatprep.subr.bf16.mxu0 %v2012
    %2410 = vmatpush2.bf16.msra.mxu0 %v2011
    %2411 = vmatprep.subr.bf16.mxu0 %v2006
    %2412 = vmatpush2.bf16.msra.mxu0 %v2005
    %2413 = vmatprep.subr.bf16.mxu0 %v2000
    %2414 = vmatpush2.bf16.msra.mxu0 %v1999
    %2415 = vmatprep.subr.bf16.mxu0 %v1994
    %2416 = vmatpush2.bf16.msra.mxu0 %v1993
    %2417 = vmatprep.subr.bf16.mxu0 %v1988
    %2418 = vmatpush2.bf16.msra.mxu0 %v1987
    %2419 = vmatprep.subr.bf16.mxu0 %v1982
    %2420 = vmatpush2.bf16.msra.mxu0 %v1981
    %2421 = vmatprep.subr.bf16.mxu0 %v1976
    %2422 = vmatpush2.bf16.msra.mxu0 %v1975
    %2423 = vmatprep.subr.bf16.mxu0 %v1970
    %2424 = vmatpush2.bf16.msra.mxu0 %v1969
    %2425 = vmatprep.mubr.bf16.mxu0 %v2155
    %2426 = vmatmul.mubr.bf16.gmra.mxu0 %v2154
    %v2427 = vpop.f32.mrf.mxu0
    %v2428 = vadd.f32 %v2387, %v2427
    %v2429 = vpop.f32.mrf.mxu0
    %v2430 = vadd.f32 %v2389, %v2429
    %v2431 = vpop.f32.mrf.mxu0
    %v2432 = vpop.f32.mrf.mxu0
    %2433 = vdwg.mxu0
    %2434 = vmatprep.subr.bf16.mxu0 %v2060
    %2435 = vmatpush1.bf16.msra.mxu0 %v2059
    %2436 = vmatprep.subr.bf16.mxu0 %v2054
    %2437 = vmatpush1.bf16.msra.mxu0 %v2053
    %2438 = vmatprep.subr.bf16.mxu0 %v2048
    %2439 = vmatpush1.bf16.msra.mxu0 %v2047
    %2440 = vmatprep.subr.bf16.mxu0 %v2042
    %2441 = vmatpush1.bf16.msra.mxu0 %v2041
    %2442 = vmatprep.subr.bf16.mxu0 %v2036
    %2443 = vmatpush1.bf16.msra.mxu0 %v2035
    %2444 = vmatprep.subr.bf16.mxu0 %v2030
    %2445 = vmatpush1.bf16.msra.mxu0 %v2029
    %2446 = vmatprep.subr.bf16.mxu0 %v2024
    %2447 = vmatpush1.bf16.msra.mxu0 %v2023
    %2448 = vmatprep.subr.bf16.mxu0 %v2018
    %2449 = vmatpush1.bf16.msra.mxu0 %v2017
    %2450 = vmatprep.subr.bf16.mxu0 %v2108
    %2451 = vmatpush2.bf16.msra.mxu0 %v2107
    %2452 = vmatprep.subr.bf16.mxu0 %v2102
    %2453 = vmatpush2.bf16.msra.mxu0 %v2101
    %2454 = vmatprep.subr.bf16.mxu0 %v2096
    %2455 = vmatpush2.bf16.msra.mxu0 %v2095
    %2456 = vmatprep.subr.bf16.mxu0 %v2090
    %2457 = vmatpush2.bf16.msra.mxu0 %v2089
    %2458 = vmatprep.subr.bf16.mxu0 %v2084
    %2459 = vmatpush2.bf16.msra.mxu0 %v2083
    %2460 = vmatprep.subr.bf16.mxu0 %v2078
    %2461 = vmatpush2.bf16.msra.mxu0 %v2077
    %2462 = vmatprep.subr.bf16.mxu0 %v2072
    %2463 = vmatpush2.bf16.msra.mxu0 %v2071
    %2464 = vmatprep.subr.bf16.mxu0 %v2066
    %2465 = vmatpush2.bf16.msra.mxu0 %v2065
    %2466 = vmatprep.mubr.bf16.mxu0 %v2157
    %2467 = vmatmul.mubr.bf16.gmra.mxu0 %v2156
    %v2468 = vpop.f32.mrf.mxu0
    %v2469 = vadd.f32 %v2428, %v2468
    %v2470 = vpop.f32.mrf.mxu0
    %v2471 = vadd.f32 %v2430, %v2470
    %v2472 = vpop.f32.mrf.mxu0
    %v2473 = vpop.f32.mrf.mxu0
    %2474 = vdwg.mxu0
    %2475 = vmatprep.subr.bf16.mxu0 0
    %2476 = vmatpush1.bf16.msra.mxu0 0
    %2477 = vmatprep.subr.bf16.mxu0 0
    %2478 = vmatpush1.bf16.msra.mxu0 0
    %2479 = vmatprep.subr.bf16.mxu0 0
    %2480 = vmatpush1.bf16.msra.mxu0 0
    %2481 = vmatprep.subr.bf16.mxu0 0
    %2482 = vmatpush1.bf16.msra.mxu0 0
    %2483 = vmatprep.subr.bf16.mxu0 %v2180
    %2484 = vmatpush1.bf16.msra.mxu0 %v2177
    %2485 = vmatprep.subr.bf16.mxu0 %v2126
    %2486 = vmatpush1.bf16.msra.mxu0 %v2125
    %2487 = vmatprep.subr.bf16.mxu0 %v2120
    %2488 = vmatpush1.bf16.msra.mxu0 %v2119
    %2489 = vmatprep.subr.bf16.mxu0 %v2114
    %2490 = vmatpush1.bf16.msra.mxu0 %v2113
    %2491 = vmatprep.subr.bf16.mxu0 0
    %2492 = vmatpush2.bf16.msra.mxu0 0
    %2493 = vmatprep.subr.bf16.mxu0 0
    %2494 = vmatpush2.bf16.msra.mxu0 0
    %2495 = vmatprep.subr.bf16.mxu0 0
    %2496 = vmatpush2.bf16.msra.mxu0 0
    %2497 = vmatprep.subr.bf16.mxu0 0
    %2498 = vmatpush2.bf16.msra.mxu0 0
    %2499 = vmatprep.subr.bf16.mxu0 0
    %2500 = vmatpush2.bf16.msra.mxu0 0
    %2501 = vmatprep.subr.bf16.mxu0 0
    %2502 = vmatpush2.bf16.msra.mxu0 0
    %2503 = vmatprep.subr.bf16.mxu0 0
    %2504 = vmatpush2.bf16.msra.mxu0 0
    %2505 = vmatprep.subr.bf16.mxu0 0
    %2506 = vmatpush2.bf16.msra.mxu0 0
    %2507 = vmatprep.mubr.bf16.mxu0 0
    %2508 = vmatmul.mubr.bf16.gmra.mxu0 %v2167
    %v2509 = vpop.f32.mrf.mxu0
    %v2510 = vadd.f32 %v2469, %v2509
    %v2511 = vpop.f32.mrf.mxu0
    %v2512 = vadd.f32 %v2471, %v2511
    %v2513 = vpop.f32.mrf.mxu0
    %v2514 = vpop.f32.mrf.mxu0
    %2515 = vdwg.mxu0
    %2516 = vmatprep.subr.bf16.mxu0 %v1870
    %2517 = vmatpush1.bf16.msra.mxu0 %v1869
    %2518 = vmatprep.subr.bf16.mxu0 %v1864
    %2519 = vmatpush1.bf16.msra.mxu0 %v1863
    %2520 = vmatprep.subr.bf16.mxu0 %v1858
    %2521 = vmatpush1.bf16.msra.mxu0 %v1857
    %2522 = vmatprep.subr.bf16.mxu0 %v1852
    %2523 = vmatpush1.bf16.msra.mxu0 %v1851
    %2524 = vmatprep.subr.bf16.mxu0 %v1846
    %2525 = vmatpush1.bf16.msra.mxu0 %v1845
    %2526 = vmatprep.subr.bf16.mxu0 %v1840
    %2527 = vmatpush1.bf16.msra.mxu0 %v1839
    %2528 = vmatprep.subr.bf16.mxu0 %v1834
    %2529 = vmatpush1.bf16.msra.mxu0 %v1833
    %2530 = vmatprep.subr.bf16.mxu0 %v1828
    %2531 = vmatpush1.bf16.msra.mxu0 %v1827
    %2532 = vmatprep.subr.bf16.mxu0 %v1918
    %2533 = vmatpush2.bf16.msra.mxu0 %v1917
    %2534 = vmatprep.subr.bf16.mxu0 %v1912
    %2535 = vmatpush2.bf16.msra.mxu0 %v1911
    %2536 = vmatprep.subr.bf16.mxu0 %v1906
    %2537 = vmatpush2.bf16.msra.mxu0 %v1905
    %2538 = vmatprep.subr.bf16.mxu0 %v1900
    %2539 = vmatpush2.bf16.msra.mxu0 %v1899
    %2540 = vmatprep.subr.bf16.mxu0 %v1894
    %2541 = vmatpush2.bf16.msra.mxu0 %v1893
    %2542 = vmatprep.subr.bf16.mxu0 %v1888
    %2543 = vmatpush2.bf16.msra.mxu0 %v1887
    %2544 = vmatprep.subr.bf16.mxu0 %v1882
    %2545 = vmatpush2.bf16.msra.mxu0 %v1881
    %2546 = vmatprep.subr.bf16.mxu0 %v1876
    %2547 = vmatpush2.bf16.msra.mxu0 %v1875
    %2548 = vmatprep.mubr.bf16.mxu0 %v2153
    %2549 = vmatmul.mubr.bf16.gmra.mxu0 %v2152
    %v2550 = vpop.f32.mrf.mxu0
    %v2551 = vadd.f32 %v2140, %v2550
    %v2552 = vpop.f32.mrf.mxu0
    %v2553 = vadd.f32 %v2140, %v2552
    %v2554 = vpop.f32.mrf.mxu0
    %v2555 = vpop.f32.mrf.mxu0
    %2556 = vdwg.mxu0
    %2557 = vmatprep.subr.bf16.mxu0 %v1966
    %2558 = vmatpush1.bf16.msra.mxu0 %v1965
    %2559 = vmatprep.subr.bf16.mxu0 %v1960
    %2560 = vmatpush1.bf16.msra.mxu0 %v1959
    %2561 = vmatprep.subr.bf16.mxu0 %v1954
    %2562 = vmatpush1.bf16.msra.mxu0 %v1953
    %2563 = vmatprep.subr.bf16.mxu0 %v1948
    %2564 = vmatpush1.bf16.msra.mxu0 %v1947
    %2565 = vmatprep.subr.bf16.mxu0 %v1942
    %2566 = vmatpush1.bf16.msra.mxu0 %v1941
    %2567 = vmatprep.subr.bf16.mxu0 %v1936
    %2568 = vmatpush1.bf16.msra.mxu0 %v1935
    %2569 = vmatprep.subr.bf16.mxu0 %v1930
    %2570 = vmatpush1.bf16.msra.mxu0 %v1929
    %2571 = vmatprep.subr.bf16.mxu0 %v1924
    %2572 = vmatpush1.bf16.msra.mxu0 %v1923
    %2573 = vmatprep.subr.bf16.mxu0 %v2014
    %2574 = vmatpush2.bf16.msra.mxu0 %v2013
    %2575 = vmatprep.subr.bf16.mxu0 %v2008
    %2576 = vmatpush2.bf16.msra.mxu0 %v2007
    %2577 = vmatprep.subr.bf16.mxu0 %v2002
    %2578 = vmatpush2.bf16.msra.mxu0 %v2001
    %2579 = vmatprep.subr.bf16.mxu0 %v1996
    %2580 = vmatpush2.bf16.msra.mxu0 %v1995
    %2581 = vmatprep.subr.bf16.mxu0 %v1990
    %2582 = vmatpush2.bf16.msra.mxu0 %v1989
    %2583 = vmatprep.subr.bf16.mxu0 %v1984
    %2584 = vmatpush2.bf16.msra.mxu0 %v1983
    %2585 = vmatprep.subr.bf16.mxu0 %v1978
    %2586 = vmatpush2.bf16.msra.mxu0 %v1977
    %2587 = vmatprep.subr.bf16.mxu0 %v1972
    %2588 = vmatpush2.bf16.msra.mxu0 %v1971
    %2589 = vmatprep.mubr.bf16.mxu0 %v2155
    %2590 = vmatmul.mubr.bf16.gmra.mxu0 %v2154
    %v2591 = vpop.f32.mrf.mxu0
    %v2592 = vadd.f32 %v2551, %v2591
    %v2593 = vpop.f32.mrf.mxu0
    %v2594 = vadd.f32 %v2553, %v2593
    %v2595 = vpop.f32.mrf.mxu0
    %v2596 = vpop.f32.mrf.mxu0
    %2597 = vdwg.mxu0
    %2598 = vmatprep.subr.bf16.mxu0 %v2062
    %2599 = vmatpush1.bf16.msra.mxu0 %v2061
    %2600 = vmatprep.subr.bf16.mxu0 %v2056
    %2601 = vmatpush1.bf16.msra.mxu0 %v2055
    %2602 = vmatprep.subr.bf16.mxu0 %v2050
    %2603 = vmatpush1.bf16.msra.mxu0 %v2049
    %2604 = vmatprep.subr.bf16.mxu0 %v2044
    %2605 = vmatpush1.bf16.msra.mxu0 %v2043
    %2606 = vmatprep.subr.bf16.mxu0 %v2038
    %2607 = vmatpush1.bf16.msra.mxu0 %v2037
    %2608 = vmatprep.subr.bf16.mxu0 %v2032
    %2609 = vmatpush1.bf16.msra.mxu0 %v2031
    %2610 = vmatprep.subr.bf16.mxu0 %v2026
    %2611 = vmatpush1.bf16.msra.mxu0 %v2025
    %2612 = vmatprep.subr.bf16.mxu0 %v2020
    %2613 = vmatpush1.bf16.msra.mxu0 %v2019
    %2614 = vmatprep.subr.bf16.mxu0 %v2110
    %2615 = vmatpush2.bf16.msra.mxu0 %v2109
    %2616 = vmatprep.subr.bf16.mxu0 %v2104
    %2617 = vmatpush2.bf16.msra.mxu0 %v2103
    %2618 = vmatprep.subr.bf16.mxu0 %v2098
    %2619 = vmatpush2.bf16.msra.mxu0 %v2097
    %2620 = vmatprep.subr.bf16.mxu0 %v2092
    %2621 = vmatpush2.bf16.msra.mxu0 %v2091
    %2622 = vmatprep.subr.bf16.mxu0 %v2086
    %2623 = vmatpush2.bf16.msra.mxu0 %v2085
    %2624 = vmatprep.subr.bf16.mxu0 %v2080
    %2625 = vmatpush2.bf16.msra.mxu0 %v2079
    %2626 = vmatprep.subr.bf16.mxu0 %v2074
    %2627 = vmatpush2.bf16.msra.mxu0 %v2073
    %2628 = vmatprep.subr.bf16.mxu0 %v2068
    %2629 = vmatpush2.bf16.msra.mxu0 %v2067
    %2630 = vmatprep.mubr.bf16.mxu0 %v2157
    %2631 = vmatmul.mubr.bf16.gmra.mxu0 %v2156
    %v2632 = vpop.f32.mrf.mxu0
    %v2633 = vadd.f32 %v2592, %v2632
    %v2634 = vpop.f32.mrf.mxu0
    %v2635 = vadd.f32 %v2594, %v2634
    %v2636 = vpop.f32.mrf.mxu0
    %v2637 = vpop.f32.mrf.mxu0
    %2638 = vdwg.mxu0
    %2639 = vmatprep.subr.bf16.mxu0 0
    %2640 = vmatpush1.bf16.msra.mxu0 0
    %2641 = vmatprep.subr.bf16.mxu0 0
    %2642 = vmatpush1.bf16.msra.mxu0 0
    %2643 = vmatprep.subr.bf16.mxu0 0
    %2644 = vmatpush1.bf16.msra.mxu0 0
    %2645 = vmatprep.subr.bf16.mxu0 0
    %2646 = vmatpush1.bf16.msra.mxu0 0
    %2647 = vmatprep.subr.bf16.mxu0 %v2186
    %2648 = vmatpush1.bf16.msra.mxu0 %v2183
    %2649 = vmatprep.subr.bf16.mxu0 %v2128
    %2650 = vmatpush1.bf16.msra.mxu0 %v2127
    %2651 = vmatprep.subr.bf16.mxu0 %v2122
    %2652 = vmatpush1.bf16.msra.mxu0 %v2121
    %2653 = vmatprep.subr.bf16.mxu0 %v2116
    %2654 = vmatpush1.bf16.msra.mxu0 %v2115
    %2655 = vmatprep.subr.bf16.mxu0 0
    %2656 = vmatpush2.bf16.msra.mxu0 0
    %2657 = vmatprep.subr.bf16.mxu0 0
    %2658 = vmatpush2.bf16.msra.mxu0 0
    %2659 = vmatprep.subr.bf16.mxu0 0
    %2660 = vmatpush2.bf16.msra.mxu0 0
    %2661 = vmatprep.subr.bf16.mxu0 0
    %2662 = vmatpush2.bf16.msra.mxu0 0
    %2663 = vmatprep.subr.bf16.mxu0 0
    %2664 = vmatpush2.bf16.msra.mxu0 0
    %2665 = vmatprep.subr.bf16.mxu0 0
    %2666 = vmatpush2.bf16.msra.mxu0 0
    %2667 = vmatprep.subr.bf16.mxu0 0
    %2668 = vmatpush2.bf16.msra.mxu0 0
    %2669 = vmatprep.subr.bf16.mxu0 0
    %2670 = vmatpush2.bf16.msra.mxu0 0
    %2671 = vmatprep.mubr.bf16.mxu0 0
    %2672 = vmatmul.mubr.bf16.gmra.mxu0 %v2167
    %v2673 = vpop.f32.mrf.mxu0
    %v2674 = vadd.f32 %v2633, %v2673
    %v2675 = vpop.f32.mrf.mxu0
    %v2676 = vadd.f32 %v2635, %v2675
    %v2677 = vpop.f32.mrf.mxu0
    %v2678 = vpop.f32.mrf.mxu0
    %2679 = vdwg.mxu0
    %v2680 = vmul.f32 %v2346, 0.01
    %v2681 = vmul.f32 %v2348, 0.01
    %v2682 = vmul.f32 %v2510, 0.01
    %v2683 = vmul.f32 %v2512, 0.01
    %v2684 = vmul.f32 %v2674, 0.01
    %v2685 = vmul.f32 %v2676, 0.01
    %v2686 = vmax.f32 %v2346, %v2680
    %v2687 = vmax.f32 %v2348, %v2681
    %v2688 = vmax.f32 %v2510, %v2682
    %v2689 = vmax.f32 %v2512, %v2683
    %v2690 = vmax.f32 %v2674, %v2684
    %v2691 = vmax.f32 %v2676, %v2685
    %v2692 = vpack.c.bf16 %v2686, %v2686
    %v2693 = vpack.c.bf16 %v2687, %v2687
    %v2694 = vpack.c.bf16 %v2688, %v2688
    %v2695 = vpack.c.bf16 %v2689, %v2689
    %v2696 = vpack.c.bf16 %v2690, %v2690
    %v2697 = vpack.c.bf16 %v2691, %v2691
    %v2698 = vld [vmem:[#allocation8] sm:$0xf]
    %v2699 = vld [vmem:[#allocation8 + $0x4] sm:$0xf]
    %v2700 = vld [vmem:[#allocation8 + $0x8] sm:$0xf]
    %v2701 = vld [vmem:[#allocation8 + $0xc] sm:$0xf]
    %v2702 = vld [vmem:[#allocation8 + $0x10] sm:$0xf]
    %v2703 = vld [vmem:[#allocation8 + $0x14] sm:$0xf]
    %v2704 = vld [vmem:[#allocation8 + $0x18] sm:$0xf]
    %v2705 = vld [vmem:[#allocation8 + $0x1c] sm:$0xf]
    %v2706 = vld [vmem:[#allocation8 + $0x20] sm:$0xf]
    %v2707 = vld [vmem:[#allocation8 + $0x24] sm:$0xf]
    %v2708 = vld [vmem:[#allocation8 + $0x28] sm:$0xf]
    %v2709 = vld [vmem:[#allocation8 + $0x2c] sm:$0xf]
    %v2710 = vld [vmem:[#allocation8 + $0x30] sm:$0xf]
    %v2711 = vld [vmem:[#allocation8 + $0x34] sm:$0xf]
    %v2712 = vld [vmem:[#allocation8 + $0x38] sm:$0xf]
    %v2713 = vld [vmem:[#allocation8 + $0x3c] sm:$0xf]
    %v2714 = vld [vmem:[#allocation8 + $0x40] sm:$0xf]
    %v2715 = vld [vmem:[#allocation8 + $0x44] sm:$0xf]
    %v2716 = vld [vmem:[#allocation8 + $0x48] sm:$0xf]
    %v2717 = vld [vmem:[#allocation8 + $0x4c] sm:$0xf]
    %v2718 = vld [vmem:[#allocation8 + $0x50] sm:$0xf]
    %v2719 = vld [vmem:[#allocation8 + $0x54] sm:$0xf]
    %v2720 = vld [vmem:[#allocation8 + $0x58] sm:$0xf]
    %v2721 = vld [vmem:[#allocation8 + $0x5c] sm:$0xf]
    %v2722 = vld [vmem:[#allocation8 + $0x60] sm:$0xf]
    %v2723 = vld [vmem:[#allocation8 + $0x64] sm:$0xf]
    %v2724 = vld [vmem:[#allocation8 + $0x68] sm:$0xf]
    %v2725 = vld [vmem:[#allocation8 + $0x6c] sm:$0xf]
    %v2726 = vld [vmem:[#allocation8 + $0x70] sm:$0xf]
    %v2727 = vld [vmem:[#allocation8 + $0x74] sm:$0xf]
    %v2728 = vld [vmem:[#allocation8 + $0x78] sm:$0xf]
    %v2729 = vld [vmem:[#allocation8 + $0x7c] sm:$0xf]
    %v2730 = vld [vmem:[#allocation8 + $0x80] sm:$0xf]
    %v2731 = vld [vmem:[#allocation8 + $0x84] sm:$0xf]
    %v2732 = vld [vmem:[#allocation8 + $0x88] sm:$0xf]
    %v2733 = vld [vmem:[#allocation8 + $0x8c] sm:$0xf]
    %v2734 = vld [vmem:[#allocation8 + $0x90] sm:$0xf]
    %v2735 = vld [vmem:[#allocation8 + $0x94] sm:$0xf]
    %v2736 = vld [vmem:[#allocation8 + $0x98] sm:$0xf]
    %v2737 = vld [vmem:[#allocation8 + $0x9c] sm:$0xf]
    %v2738 = vld [vmem:[#allocation8 + $0xa0] sm:$0xf]
    %v2739 = vld [vmem:[#allocation8 + $0xa4] sm:$0xf]
    %v2740 = vld [vmem:[#allocation8 + $0xa8] sm:$0xf]
    %v2741 = vld [vmem:[#allocation8 + $0xac] sm:$0xf]
    %v2742 = vld [vmem:[#allocation8 + $0xb0] sm:$0xf]
    %v2743 = vld [vmem:[#allocation8 + $0xb4] sm:$0xf]
    %v2744 = vld [vmem:[#allocation8 + $0xb8] sm:$0xf]
    %v2745 = vld [vmem:[#allocation8 + $0xbc] sm:$0xf]
    %v2746 = vld [vmem:[#allocation8 + $0xc0] sm:$0xf]
    %v2747 = vld [vmem:[#allocation8 + $0xc4] sm:$0xf]
    %v2748 = vld [vmem:[#allocation8 + $0xc8] sm:$0xf]
    %v2749 = vld [vmem:[#allocation8 + $0xcc] sm:$0xf]
    %v2750 = vld [vmem:[#allocation8 + $0xd0] sm:$0xf]
    %v2751 = vld [vmem:[#allocation8 + $0xd4] sm:$0xf]
    %v2752 = vld [vmem:[#allocation8 + $0xd8] sm:$0xf]
    %v2753 = vld [vmem:[#allocation8 + $0xdc] sm:$0xf]
    %v2754 = vld [vmem:[#allocation8 + $0xe0] sm:$0xf]
    %v2755 = vld [vmem:[#allocation8 + $0xe4] sm:$0xf]
    %v2756 = vld [vmem:[#allocation8 + $0xe8] sm:$0xf]
    %v2757 = vld [vmem:[#allocation8 + $0xec] sm:$0xf]
    %v2758 = vld [vmem:[#allocation8 + $0xf0] sm:$0xf]
    %v2759 = vld [vmem:[#allocation8 + $0xf4] sm:$0xf]
    %v2760 = vld [vmem:[#allocation8 + $0xf8] sm:$0xf]
    %v2761 = vld [vmem:[#allocation8 + $0xfc] sm:$0xf]
    %v2762 = vld [vmem:[#allocation8 + $0x100] sm:$0xf]
    %v2763 = vld [vmem:[#allocation8 + $0x104] sm:$0xf]
    %v2764 = vld [vmem:[#allocation8 + $0x108] sm:$0xf]
    %v2765 = vld [vmem:[#allocation8 + $0x10c] sm:$0xf]
    %v2766 = vld [vmem:[#allocation8 + $0x110] sm:$0xf]
    %v2767 = vld [vmem:[#allocation8 + $0x114] sm:$0xf]
    %v2768 = vld [vmem:[#allocation8 + $0x118] sm:$0xf]
    %v2769 = vld [vmem:[#allocation8 + $0x11c] sm:$0xf]
    %v2770 = vld [vmem:[#allocation8 + $0x120] sm:$0xf]
    %v2771 = vld [vmem:[#allocation8 + $0x124] sm:$0xf]
    %v2772 = vld [vmem:[#allocation8 + $0x128] sm:$0xf]
    %v2773 = vld [vmem:[#allocation8 + $0x12c] sm:$0xf]
    %v2774 = vld [vmem:[#allocation8 + $0x130] sm:$0xf]
    %v2775 = vld [vmem:[#allocation8 + $0x134] sm:$0xf]
    %v2776 = vld [vmem:[#allocation8 + $0x138] sm:$0xf]
    %v2777 = vld [vmem:[#allocation8 + $0x13c] sm:$0xf]
    %v2778 = vld [vmem:[#allocation8 + $0x140] sm:$0xf]
    %v2779 = vld [vmem:[#allocation8 + $0x144] sm:$0xf]
    %v2780 = vld [vmem:[#allocation8 + $0x148] sm:$0xf]
    %v2781 = vld [vmem:[#allocation8 + $0x14c] sm:$0xf]
    %v2782 = vld [vmem:[#allocation8 + $0x150] sm:$0xf]
    %v2783 = vld [vmem:[#allocation8 + $0x154] sm:$0xf]
    %v2784 = vld [vmem:[#allocation8 + $0x158] sm:$0xf]
    %v2785 = vld [vmem:[#allocation8 + $0x15c] sm:$0xf]
    %v2786 = vld [vmem:[#allocation8 + $0x160] sm:$0xf]
    %v2787 = vld [vmem:[#allocation8 + $0x164] sm:$0xf]
    %v2788 = vld [vmem:[#allocation8 + $0x168] sm:$0xf]
    %v2789 = vld [vmem:[#allocation8 + $0x16c] sm:$0xf]
    %v2790 = vld [vmem:[#allocation8 + $0x170] sm:$0xf]
    %v2791 = vld [vmem:[#allocation8 + $0x174] sm:$0xf]
    %v2792 = vld [vmem:[#allocation8 + $0x178] sm:$0xf]
    %v2793 = vld [vmem:[#allocation8 + $0x17c] sm:$0xf]
    %v2794 = vld [vmem:[%s4] sm:$0x1]
    %v2796 = vlaneseq
    %v2797 = vshrl.u32 %v2796, 7
    %v2798 = vsub.s32 0, %v2797
    %v2799 = vrot.slane %v2794, %v2798
    %v2897 = vunpack.c.l.b16 %v2698
    %v2898 = vunpack.c.l.b16 %v2699
    %v2899 = vunpack.c.l.b16 %v2700
    %v2900 = vunpack.c.l.b16 %v2701
    %v2901 = vunpack.c.l.b16 %v2702
    %v2902 = vunpack.c.l.b16 %v2703
    %v2903 = vunpack.c.l.b16 %v2704
    %v2904 = vunpack.c.l.b16 %v2705
    %v2905 = vunpack.c.l.b16 %v2706
    %v2906 = vunpack.c.l.b16 %v2707
    %v2907 = vunpack.c.l.b16 %v2708
    %v2908 = vunpack.c.l.b16 %v2709
    %v2909 = vunpack.c.l.b16 %v2710
    %v2910 = vunpack.c.l.b16 %v2711
    %v2911 = vunpack.c.l.b16 %v2712
    %v2912 = vunpack.c.l.b16 %v2713
    %v2913 = vunpack.c.l.b16 %v2714
    %v2914 = vunpack.c.l.b16 %v2715
    %v2915 = vunpack.c.l.b16 %v2716
    %v2916 = vunpack.c.l.b16 %v2717
    %v2917 = vunpack.c.l.b16 %v2718
    %v2918 = vunpack.c.l.b16 %v2719
    %v2919 = vunpack.c.l.b16 %v2720
    %v2920 = vunpack.c.l.b16 %v2721
    %v2921 = vunpack.c.l.b16 %v2722
    %v2922 = vunpack.c.l.b16 %v2723
    %v2923 = vunpack.c.l.b16 %v2724
    %v2924 = vunpack.c.l.b16 %v2725
    %v2925 = vunpack.c.l.b16 %v2726
    %v2926 = vunpack.c.l.b16 %v2727
    %v2927 = vunpack.c.l.b16 %v2728
    %v2928 = vunpack.c.l.b16 %v2729
    %v2929 = vunpack.c.l.b16 %v2730
    %v2930 = vunpack.c.l.b16 %v2731
    %v2931 = vunpack.c.l.b16 %v2732
    %v2932 = vunpack.c.l.b16 %v2733
    %v2933 = vunpack.c.l.b16 %v2734
    %v2934 = vunpack.c.l.b16 %v2735
    %v2935 = vunpack.c.l.b16 %v2736
    %v2936 = vunpack.c.l.b16 %v2737
    %v2937 = vunpack.c.l.b16 %v2738
    %v2938 = vunpack.c.l.b16 %v2739
    %v2939 = vunpack.c.l.b16 %v2740
    %v2940 = vunpack.c.l.b16 %v2741
    %v2941 = vunpack.c.l.b16 %v2742
    %v2942 = vunpack.c.l.b16 %v2743
    %v2943 = vunpack.c.l.b16 %v2744
    %v2944 = vunpack.c.l.b16 %v2745
    %v2945 = vunpack.c.l.b16 %v2746
    %v2946 = vunpack.c.l.b16 %v2747
    %v2947 = vunpack.c.l.b16 %v2748
    %v2948 = vunpack.c.l.b16 %v2749
    %v2949 = vunpack.c.l.b16 %v2750
    %v2950 = vunpack.c.l.b16 %v2751
    %v2951 = vunpack.c.l.b16 %v2752
    %v2952 = vunpack.c.l.b16 %v2753
    %v2953 = vunpack.c.l.b16 %v2754
    %v2954 = vunpack.c.l.b16 %v2755
    %v2955 = vunpack.c.l.b16 %v2756
    %v2956 = vunpack.c.l.b16 %v2757
    %v2957 = vunpack.c.l.b16 %v2758
    %v2958 = vunpack.c.l.b16 %v2759
    %v2959 = vunpack.c.l.b16 %v2760
    %v2960 = vunpack.c.l.b16 %v2761
    %v2961 = vunpack.c.l.b16 %v2762
    %v2962 = vunpack.c.l.b16 %v2763
    %v2963 = vunpack.c.l.b16 %v2764
    %v2964 = vunpack.c.l.b16 %v2765
    %v2965 = vunpack.c.l.b16 %v2766
    %v2966 = vunpack.c.l.b16 %v2767
    %v2967 = vunpack.c.l.b16 %v2768
    %v2968 = vunpack.c.l.b16 %v2769
    %v2969 = vunpack.c.l.b16 %v2770
    %v2970 = vunpack.c.l.b16 %v2771
    %v2971 = vunpack.c.l.b16 %v2772
    %v2972 = vunpack.c.l.b16 %v2773
    %v2973 = vunpack.c.l.b16 %v2774
    %v2974 = vunpack.c.l.b16 %v2775
    %v2975 = vunpack.c.l.b16 %v2776
    %v2976 = vunpack.c.l.b16 %v2777
    %v2977 = vunpack.c.l.b16 %v2778
    %v2978 = vunpack.c.l.b16 %v2779
    %v2979 = vunpack.c.l.b16 %v2780
    %v2980 = vunpack.c.l.b16 %v2781
    %v2981 = vunpack.c.l.b16 %v2782
    %v2982 = vunpack.c.l.b16 %v2783
    %v2983 = vunpack.c.l.b16 %v2784
    %v2984 = vunpack.c.l.b16 %v2785
    %v2985 = vunpack.c.l.b16 %v2786
    %v2986 = vunpack.c.l.b16 %v2787
    %v2987 = vunpack.c.l.b16 %v2788
    %v2988 = vunpack.c.l.b16 %v2789
    %v2989 = vunpack.c.l.b16 %v2790
    %v2990 = vunpack.c.l.b16 %v2791
    %v2991 = vunpack.c.l.b16 %v2792
    %v2992 = vunpack.c.l.b16 %v2793
    %v2993 = vpack.c.b16 %v2898, %v2897
    %v2994 = vpack.c.b16 %v2900, %v2899
    %v2995 = vpack.c.b16 %v2902, %v2901
    %v2996 = vpack.c.b16 %v2904, %v2903
    %v2997 = vpack.c.b16 %v2906, %v2905
    %v2998 = vpack.c.b16 %v2908, %v2907
    %v2999 = vpack.c.b16 %v2910, %v2909
    %v3000 = vpack.c.b16 %v2912, %v2911
    %v3001 = vpack.c.b16 %v2914, %v2913
    %v3002 = vpack.c.b16 %v2916, %v2915
    %v3003 = vpack.c.b16 %v2918, %v2917
    %v3004 = vpack.c.b16 %v2920, %v2919
    %v3005 = vpack.c.b16 %v2922, %v2921
    %v3006 = vpack.c.b16 %v2924, %v2923
    %v3007 = vpack.c.b16 %v2926, %v2925
    %v3008 = vpack.c.b16 %v2928, %v2927
    %v3009 = vpack.c.b16 %v2930, %v2929
    %v3010 = vpack.c.b16 %v2932, %v2931
    %v3011 = vpack.c.b16 %v2934, %v2933
    %v3012 = vpack.c.b16 %v2936, %v2935
    %v3013 = vpack.c.b16 %v2938, %v2937
    %v3014 = vpack.c.b16 %v2940, %v2939
    %v3015 = vpack.c.b16 %v2942, %v2941
    %v3016 = vpack.c.b16 %v2944, %v2943
    %v3017 = vpack.c.b16 %v2946, %v2945
    %v3018 = vpack.c.b16 %v2948, %v2947
    %v3019 = vpack.c.b16 %v2950, %v2949
    %v3020 = vpack.c.b16 %v2952, %v2951
    %v3021 = vpack.c.b16 %v2954, %v2953
    %v3022 = vpack.c.b16 %v2956, %v2955
    %v3023 = vpack.c.b16 %v2958, %v2957
    %v3024 = vpack.c.b16 %v2960, %v2959
    %v3025 = vpack.c.b16 %v2962, %v2961
    %v3026 = vpack.c.b16 %v2964, %v2963
    %v3027 = vpack.c.b16 %v2966, %v2965
    %v3028 = vpack.c.b16 %v2968, %v2967
    %v3029 = vpack.c.b16 %v2970, %v2969
    %v3030 = vpack.c.b16 %v2972, %v2971
    %v3031 = vpack.c.b16 %v2974, %v2973
    %v3032 = vpack.c.b16 %v2976, %v2975
    %v3033 = vpack.c.b16 %v2978, %v2977
    %v3034 = vpack.c.b16 %v2980, %v2979
    %v3035 = vpack.c.b16 %v2982, %v2981
    %v3036 = vpack.c.b16 %v2984, %v2983
    %v3037 = vpack.c.b16 %v2986, %v2985
    %v3038 = vpack.c.b16 %v2988, %v2987
    %v3039 = vpack.c.b16 %v2990, %v2989
    %v3040 = vpack.c.b16 %v2992, %v2991
    %3089 = vmatprep.subr.bf16.mxu0 0
    %3090 = vmatpush1.bf16.msra.mxu0 %v3000
    %3091 = vmatprep.subr.bf16.mxu0 0
    %3092 = vmatpush1.bf16.msra.mxu0 %v2999
    %3093 = vmatprep.subr.bf16.mxu0 0
    %3094 = vmatpush1.bf16.msra.mxu0 %v2998
    %3095 = vmatprep.subr.bf16.mxu0 0
    %3096 = vmatpush1.bf16.msra.mxu0 %v2997
    %3097 = vmatprep.subr.bf16.mxu0 0
    %3098 = vmatpush1.bf16.msra.mxu0 %v2996
    %3099 = vmatprep.subr.bf16.mxu0 0
    %3100 = vmatpush1.bf16.msra.mxu0 %v2995
    %3101 = vmatprep.subr.bf16.mxu0 0
    %3102 = vmatpush1.bf16.msra.mxu0 %v2994
    %3103 = vmatprep.subr.bf16.mxu0 0
    %3104 = vmatpush1.bf16.msra.mxu0 %v2993
    %3105 = vmatprep.subr.bf16.mxu0 0
    %3106 = vmatpush2.bf16.msra.mxu0 %v3008
    %3107 = vmatprep.subr.bf16.mxu0 0
    %3108 = vmatpush2.bf16.msra.mxu0 %v3007
    %3109 = vmatprep.subr.bf16.mxu0 0
    %3110 = vmatpush2.bf16.msra.mxu0 %v3006
    %3111 = vmatprep.subr.bf16.mxu0 0
    %3112 = vmatpush2.bf16.msra.mxu0 %v3005
    %3113 = vmatprep.subr.bf16.mxu0 0
    %3114 = vmatpush2.bf16.msra.mxu0 %v3004
    %3115 = vmatprep.subr.bf16.mxu0 0
    %3116 = vmatpush2.bf16.msra.mxu0 %v3003
    %3117 = vmatprep.subr.bf16.mxu0 0
    %3118 = vmatpush2.bf16.msra.mxu0 %v3002
    %3119 = vmatprep.subr.bf16.mxu0 0
    %3120 = vmatpush2.bf16.msra.mxu0 %v3001
    %3121 = vmatprep.mubr.bf16.mxu0 %v2693
    %3122 = vmatmul.mubr.bf16.gmra.mxu0 %v2692
    %v3123 = vpop.f32.mrf.mxu0
    %v3124 = vadd.f32 %v2799, %v3123
    %v3125 = vpop.f32.mrf.mxu0
    %v3126 = vpop.f32.mrf.mxu0
    %v3127 = vpop.f32.mrf.mxu0
    %3128 = vdwg.mxu0
    %3129 = vmatprep.subr.bf16.mxu0 0
    %3130 = vmatpush1.bf16.msra.mxu0 %v3016
    %3131 = vmatprep.subr.bf16.mxu0 0
    %3132 = vmatpush1.bf16.msra.mxu0 %v3015
    %3133 = vmatprep.subr.bf16.mxu0 0
    %3134 = vmatpush1.bf16.msra.mxu0 %v3014
    %3135 = vmatprep.subr.bf16.mxu0 0
    %3136 = vmatpush1.bf16.msra.mxu0 %v3013
    %3137 = vmatprep.subr.bf16.mxu0 0
    %3138 = vmatpush1.bf16.msra.mxu0 %v3012
    %3139 = vmatprep.subr.bf16.mxu0 0
    %3140 = vmatpush1.bf16.msra.mxu0 %v3011
    %3141 = vmatprep.subr.bf16.mxu0 0
    %3142 = vmatpush1.bf16.msra.mxu0 %v3010
    %3143 = vmatprep.subr.bf16.mxu0 0
    %3144 = vmatpush1.bf16.msra.mxu0 %v3009
    %3145 = vmatprep.subr.bf16.mxu0 0
    %3146 = vmatpush2.bf16.msra.mxu0 %v3024
    %3147 = vmatprep.subr.bf16.mxu0 0
    %3148 = vmatpush2.bf16.msra.mxu0 %v3023
    %3149 = vmatprep.subr.bf16.mxu0 0
    %3150 = vmatpush2.bf16.msra.mxu0 %v3022
    %3151 = vmatprep.subr.bf16.mxu0 0
    %3152 = vmatpush2.bf16.msra.mxu0 %v3021
    %3153 = vmatprep.subr.bf16.mxu0 0
    %3154 = vmatpush2.bf16.msra.mxu0 %v3020
    %3155 = vmatprep.subr.bf16.mxu0 0
    %3156 = vmatpush2.bf16.msra.mxu0 %v3019
    %3157 = vmatprep.subr.bf16.mxu0 0
    %3158 = vmatpush2.bf16.msra.mxu0 %v3018
    %3159 = vmatprep.subr.bf16.mxu0 0
    %3160 = vmatpush2.bf16.msra.mxu0 %v3017
    %3161 = vmatprep.mubr.bf16.mxu0 %v2695
    %3162 = vmatmul.mubr.bf16.gmra.mxu0 %v2694
    %v3163 = vpop.f32.mrf.mxu0
    %v3164 = vadd.f32 %v3124, %v3163
    %v3165 = vpop.f32.mrf.mxu0
    %v3166 = vpop.f32.mrf.mxu0
    %v3167 = vpop.f32.mrf.mxu0
    %3168 = vdwg.mxu0
    %3169 = vmatprep.subr.bf16.mxu0 0
    %3170 = vmatpush1.bf16.msra.mxu0 %v3032
    %3171 = vmatprep.subr.bf16.mxu0 0
    %3172 = vmatpush1.bf16.msra.mxu0 %v3031
    %3173 = vmatprep.subr.bf16.mxu0 0
    %3174 = vmatpush1.bf16.msra.mxu0 %v3030
    %3175 = vmatprep.subr.bf16.mxu0 0
    %3176 = vmatpush1.bf16.msra.mxu0 %v3029
    %3177 = vmatprep.subr.bf16.mxu0 0
    %3178 = vmatpush1.bf16.msra.mxu0 %v3028
    %3179 = vmatprep.subr.bf16.mxu0 0
    %3180 = vmatpush1.bf16.msra.mxu0 %v3027
    %3181 = vmatprep.subr.bf16.mxu0 0
    %3182 = vmatpush1.bf16.msra.mxu0 %v3026
    %3183 = vmatprep.subr.bf16.mxu0 0
    %3184 = vmatpush1.bf16.msra.mxu0 %v3025
    %3185 = vmatprep.subr.bf16.mxu0 0
    %3186 = vmatpush2.bf16.msra.mxu0 %v3040
    %3187 = vmatprep.subr.bf16.mxu0 0
    %3188 = vmatpush2.bf16.msra.mxu0 %v3039
    %3189 = vmatprep.subr.bf16.mxu0 0
    %3190 = vmatpush2.bf16.msra.mxu0 %v3038
    %3191 = vmatprep.subr.bf16.mxu0 0
    %3192 = vmatpush2.bf16.msra.mxu0 %v3037
    %3193 = vmatprep.subr.bf16.mxu0 0
    %3194 = vmatpush2.bf16.msra.mxu0 %v3036
    %3195 = vmatprep.subr.bf16.mxu0 0
    %3196 = vmatpush2.bf16.msra.mxu0 %v3035
    %3197 = vmatprep.subr.bf16.mxu0 0
    %3198 = vmatpush2.bf16.msra.mxu0 %v3034
    %3199 = vmatprep.subr.bf16.mxu0 0
    %3200 = vmatpush2.bf16.msra.mxu0 %v3033
    %3201 = vmatprep.mubr.bf16.mxu0 %v2697
    %3202 = vmatmul.mubr.bf16.gmra.mxu0 %v2696
    %v3203 = vpop.f32.mrf.mxu0
    %v3204 = vadd.f32 %v3164, %v3203
    %v3205 = vpop.f32.mrf.mxu0
    %v3206 = vpop.f32.mrf.mxu0
    %v3207 = vpop.f32.mrf.mxu0
    %3208 = vdwg.mxu0
    %3209 = vst [vmem:[#allocation9] sm:$0xff] %v3204
    // Predicated region
    $region34: #{tpu_custom_call.1} parent=1 // pred_check
      _
    $region35: #{tpu_custom_call.1} parent=1 // pred_check_branch
      %3211 = sbr.rel (0) target = $region37
    $region36: #{tpu_custom_call.1} parent=1 // pred_region
      %s3213 = ssub.s32 128, 32
      %3214 = vsyncadd [#allocation5], %s3213
      %s3215 = sshll.u32 [#allocation9], 4
      %s3216 = int_to_ptr.vmem [resolvable:$true] %s3215
      %3221 = dma.vmem_to_hbm [thread:$0]  %s3216, 32, %s5, [#allocation5], 32, 32, 2
    $region37: #{tpu_custom_call.1} parent=1 // pred_fallthru
      _
    // Predicated region
    $region38: #{tpu_custom_call.1} parent=1 // pred_check
      _
    $region39: #{tpu_custom_call.1} parent=1 // pred_check_branch
      %3223 = sbr.rel (0) target = $region41
    $region40: #{tpu_custom_call.1} parent=1 // pred_region
      %3224 = dma.done [#allocation5], 128
    $region41: #{tpu_custom_call.1} parent=1 // pred_fallthru
      _
    %3225 = vsyncpa [#allocation4], 1
    %3226 = vsyncpa [#allocation7], 1
    %3227 = vsyncpa [#allocation5], 1

</llo_original>
